<compile_context>
chip_gen: v7x
topology: tpu7x:2x2x1
jax: 0.10.0
libtpu: 0.0.40
codegen_flags: <defaults>
</compile_context>

<pallas_src>
import functools

import jax
import jax.numpy as jnp
from jax.experimental import pallas as pl
from jax.experimental.pallas import tpu as pltpu

LANE = 128    # TPU lane width (last dim)
SUBLANE = 8   # f32 sublane width (second-to-last dim)


def _round_up(x, m):
    return (x + m - 1) // m * m


def lstm_classifier_kernel(gx_ref, whh_ref, wfc_ref, bfc_ref, out_ref,
                           h_sc, c_sc, *, unroll):
    """One (batch_block, time_chunk) grid step.

    gx_ref  : (Tc, Bb, 4*Hp) f32   pre-projected gate inputs  x @ W_ih + b
    whh_ref : (Hp, 4*Hp)     bf16  hidden->gate weights (gate-blocked, padded)
    wfc_ref : (Hp, Cp)       bf16  final Linear weight
    bfc_ref : (1, Cp)        f32   final Linear bias
    out_ref : (Bb, Cp)       f32   logits (block resident across chunk axis)
    h_sc/c_sc : (Bb, Hp)     f32   carried LSTM state (persists across chunks)
    """
    chunk = pl.program_id(1)
    Tc = gx_ref.shape[0]
    Hp = h_sc.shape[-1]

    # Initialize carried state at the first time chunk of each batch block.
    @pl.when(chunk == 0)
    def _():
        h_sc[...] = jnp.zeros_like(h_sc)
        c_sc[...] = jnp.zeros_like(c_sc)

    def step(t, carry):
        h, c = carry
        # Serial critical path: one bf16 (Bb,Hp)@(Hp,4Hp) MXU matmul with f32
        # accumulation.  W_hh is read from its ref inside the body so it is
        # not pinned as a live vreg value across the loop.
        gates = gx_ref[t] + jnp.dot(h.astype(jnp.bfloat16), whh_ref[...],
                                    preferred_element_type=jnp.float32)
        # PyTorch LSTM gate order: input, forget, cell(g), output.
        # Hp is a multiple of 128 -> lane-aligned static slices (no masking).
        i_g = jax.nn.sigmoid(gates[:, 0 * Hp:1 * Hp])
        f_g = jax.nn.sigmoid(gates[:, 1 * Hp:2 * Hp])
        g_g = jnp.tanh(gates[:, 2 * Hp:3 * Hp])
        o_g = jax.nn.sigmoid(gates[:, 3 * Hp:4 * Hp])
        c_new = f_g * c + i_g * g_g
        h_new = o_g * jnp.tanh(c_new)
        return h_new, c_new

    # Partial unroll: keeps LLO scheduling visibility without spilling vregs.
    h_f, c_f = jax.lax.fori_loop(0, Tc, step, (h_sc[...], c_sc[...]),
                                 unroll=unroll)
    h_sc[...] = h_f
    c_sc[...] = c_f

    # Final Linear on the last hidden state; lane-dense (Cp = 128) store.
    @pl.when(chunk == pl.num_programs(1) - 1)
    def _():
        logits = jnp.dot(h_f.astype(jnp.bfloat16), wfc_ref[...],
                         preferred_element_type=jnp.float32)
        out_ref[...] = (logits + bfc_ref[...]).astype(out_ref.dtype)


def _pad_gate_cols(a, h, h_to):
    """Zero-pad the gate-blocked last dim of a (rows, 4*h) array to 4*h_to."""
    rows = a.shape[0]
    a = a.reshape(rows, 4, h)
    a = jnp.pad(a, ((0, 0), (0, 0), (0, h_to - h)))
    return a.reshape(rows, 4 * h_to)


@functools.partial(
    jax.jit, static_argnames=("t_chunk", "b_block", "single_buffer_weights"))
def rnn_classifier_forward(tokens, params, *, t_chunk=None, b_block=None,
                           single_buffer_weights=True):
    """tokens: (B, T) int32 token ids.  Returns logits (B, num_class)."""
    emb = params["embedding"]            # (V, E)
    w_ih = params["w_ih"]                # (E, 4H)   (already transposed)
    w_hh = params["w_hh"]                # (H, 4H)
    b = params["b"]                      # (1, 4H)   (b_ih + b_hh)
    w_fc = params["w_fc"]                # (H, C)
    b_fc = params["b_fc"]                # (1, C)

    B, T = tokens.shape
    H = w_hh.shape[0]
    C = w_fc.shape[1]

    # Lane/sublane-aligned padded sizes.
    Hp = _round_up(H, LANE)
    Cp = _round_up(C, LANE)
    Bp = _round_up(B, SUBLANE)

    # Batch block: keep the MXU M dimension as full as possible; split in two
    # only when each half still has >= 128 rows (shards the "parallel" axis
    # across both TensorCores on 2-TC chips; ~0 delta on 1-TC chips).
    if b_block is None:
        if Bp >= 2 * LANE and Bp % (2 * SUBLANE) == 0:
            Bb = Bp // 2
        else:
            Bb = Bp
    else:
        Bb = b_block
    assert Bp % Bb == 0 and Bb % SUBLANE == 0
    num_bblocks = Bp // Bb

    # Time chunk: amortize the ~0.35us/grid-step overhead over many LSTM steps
    # while keeping the double-buffered streamed gx chunk within a modest VMEM
    # budget (v7x has only 64 MiB total VMEM).
    if t_chunk is None:
        step_bytes = Bb * 4 * Hp * 4                       # one f32 time step
        Tc = max(1, min(T, (8 * 1024 * 1024) // max(step_bytes, 1)))
        while T % Tc:                                      # largest divisor
            Tc -= 1
    else:
        Tc = t_chunk
    assert T % Tc == 0
    num_chunks = T // Tc

    # --- Pre-fused embedding + input projection -> gate pre-activation table.
    gate_table = jnp.dot(emb, w_ih) + b                    # (V, 4H) f32
    gate_table = _pad_gate_cols(gate_table, H, Hp)         # (V, 4*Hp)

    # Time-major row gather (no separate transpose); batch zero-padded.
    gx = jnp.take(gate_table, tokens.T, axis=0)            # (T, B, 4*Hp)
    gx = jnp.pad(gx, ((0, 0), (0, Bp - B), (0, 0)))        # (T, Bp, 4*Hp)

    # Weights: bf16 MXU operands, zero-padded (padded hidden/class units stay
    # inert: their gate pre-activations are 0 -> c=h=0, fc columns are 0).
    w_hh_p = _pad_gate_cols(jnp.pad(w_hh, ((0, Hp - H), (0, 0))), H, Hp)
    w_hh_p = w_hh_p.astype(jnp.bfloat16)                   # (Hp, 4*Hp) bf16
    w_fc_p = jnp.pad(w_fc, ((0, Hp - H), (0, Cp - C))).astype(jnp.bfloat16)
    b_fc_p = jnp.pad(b_fc, ((0, 0), (0, Cp - C)))          # (1, Cp) f32

    # Grid-invariant weights: single-buffered (no re-DMA / 2x VMEM).
    if single_buffer_weights:
        def w_spec(shape):
            return pl.BlockSpec(shape, lambda bb, c: (0, 0),
                                pipeline_mode=pl.Buffered(1))
    else:
        def w_spec(shape):
            return pl.BlockSpec(shape, lambda bb, c: (0, 0))

    # Advisory cost for XLA scheduling around the kernel.
    flops = 2 * T * Bp * Hp * 4 * Hp + 2 * Bp * Hp * Cp
    transcendentals = 5 * T * Bp * Hp
    bytes_accessed = (gx.size * 4 + w_hh_p.size * 2 + w_fc_p.size * 2
                      + b_fc_p.size * 4 + Bp * Cp * 4)

    # Explicit VMEM budget (double-buffered gx + single weights + out + state),
    # with 2x headroom; keeps v7x (64 MiB) honest, raises the 32 MiB default
    # scoped limit only when actually needed.
    vmem_bytes = (2 * Tc * Bb * 4 * Hp * 4
                  + Hp * 4 * Hp * 2 + Hp * Cp * 2 + Cp * 4
                  + 2 * Bb * Cp * 4
                  + 2 * Bb * Hp * 4)
    vmem_limit = int(min(max(2 * vmem_bytes, 32 * 1024 * 1024),
                         100 * 1024 * 1024))

    out = pl.pallas_call(
        functools.partial(lstm_classifier_kernel, unroll=min(8, Tc)),
        out_shape=jax.ShapeDtypeStruct((Bp, Cp), jnp.float32),
        grid_spec=pltpu.PrefetchScalarGridSpec(
            num_scalar_prefetch=0,
            grid=(num_bblocks, num_chunks),
            in_specs=[
                pl.BlockSpec((Tc, Bb, 4 * Hp), lambda bb, c: (c, bb, 0)),  # gx
                w_spec((Hp, 4 * Hp)),        # W_hh^T (bf16)
                w_spec((Hp, Cp)),            # W_fc^T (bf16)
                w_spec((1, Cp)),             # b_fc
            ],
            out_specs=pl.BlockSpec((Bb, Cp), lambda bb, c: (bb, 0)),
            scratch_shapes=[
                pltpu.VMEM((Bb, Hp), jnp.float32),   # h state (f32)
                pltpu.VMEM((Bb, Hp), jnp.float32),   # c state (f32)
            ],
        ),
        compiler_params=pltpu.CompilerParams(
            # Batch blocks are independent; the time-chunk axis is a serial
            # recurrence with state carried in VMEM scratch.
            dimension_semantics=("parallel", "arbitrary"),
            vmem_limit_bytes=vmem_limit,
        ),
        cost_estimate=pl.CostEstimate(
            flops=int(flops),
            transcendentals=int(transcendentals),
            bytes_accessed=int(bytes_accessed)),
    )(gx, w_hh_p, w_fc_p, b_fc_p)

    return out[:B, :C]


def rnn_classifier_reference(tokens, params):
    """Plain-JAX reference (matches the PyTorch forward semantics)."""
    x = jnp.take(params["embedding"], tokens, axis=0)   # (B, T, E)
    B = x.shape[0]
    H = params["w_hh"].shape[0]

    def step(carry, x_t):
        h, c = carry
        gates = x_t @ params["w_ih"] + h @ params["w_hh"] + params["b"][0]
        i, f, g, o = jnp.split(gates, 4, axis=-1)
        c = jax.nn.sigmoid(f) * c + jax.nn.sigmoid(i) * jnp.tanh(g)
        h = jax.nn.sigmoid(o) * jnp.tanh(c)
        return (h, c), None

    h0 = jnp.zeros((B, H), jnp.float32)
    c0 = jnp.zeros((B, H), jnp.float32)
    (h, _), _ = jax.lax.scan(step, (h0, c0), jnp.swapaxes(x, 0, 1))
    return h @ params["w_fc"] + params["b_fc"][0]


def init_params(key, vocab_size, embed_dim, hidden_dim, num_class):
    ks = jax.random.split(key, 7)
    scale = 0.1
    # word_vectors ~ U[0,1) (mirrors np.random.rand in the reference script).
    embedding = jax.random.uniform(ks[0], (vocab_size, embed_dim), dtype=jnp.float32)
    w_ih = scale * jax.random.normal(ks[1], (embed_dim, 4 * hidden_dim), jnp.float32)
    w_hh = scale * jax.random.normal(ks[2], (hidden_dim, 4 * hidden_dim), jnp.float32)
    b_ih = scale * jax.random.normal(ks[3], (1, 4 * hidden_dim), jnp.float32)
    b_hh = scale * jax.random.normal(ks[4], (1, 4 * hidden_dim), jnp.float32)
    w_fc = scale * jax.random.normal(ks[5], (hidden_dim, num_class), jnp.float32)
    b_fc = scale * jax.random.normal(ks[6], (1, num_class), jnp.float32)
    return {
        "embedding": embedding,
        "w_ih": w_ih,
        "w_hh": w_hh,
        "b": b_ih + b_hh,
        "w_fc": w_fc,
        "b_fc": b_fc,
    }


if __name__ == "__main__":
    # Small shapes consistent with the forward pass.
    vocab_size, embed_dim, hidden_dim, num_class = 50, 32, 32, 2
    batch, seq_len = 2, 8

    key = jax.random.PRNGKey(0)
    pkey, tkey = jax.random.split(key)
    params = init_params(pkey, vocab_size, embed_dim, hidden_dim, num_class)
    tokens = jax.random.randint(tkey, (batch, seq_len), 0, vocab_size,
                                dtype=jnp.int32)

    try:
        logits = rnn_classifier_forward(tokens, params)
        jax.block_until_ready(logits)
    except Exception:
        # Fallback for JAX versions whose Mosaic lowering rejects
        # pl.Buffered(1) single-buffered grid-invariant weights.
        logits = rnn_classifier_forward(tokens, params,
                                        single_buffer_weights=False)
        jax.block_until_ready(logits)

    assert logits.shape == (batch, num_class)

    ref = rnn_classifier_reference(tokens, params)
    max_err = float(jnp.max(jnp.abs(logits - ref)))
    # bf16 MXU operands => bf16-class matmul accuracy (same class as TPU's
    # default f32 matmul precision); gate math / state are exact f32.
    assert max_err < 5e-3, f"mismatch vs reference: max abs err {max_err}"

    print("KERNEL_OK")
</pallas_src>

<mosaic_0001>
module attributes {stable_mosaic.version = 11 : i64} {
  func.func @lstm_classifier_kernel(%arg0: i32, %arg1: i32, %arg2: memref<8x8x512xf32, #tpu.memory_space<vmem>>, %arg3: memref<128x512xbf16, #tpu.memory_space<vmem>>, %arg4: memref<128x128xbf16, #tpu.memory_space<vmem>>, %arg5: memref<1x128xf32, #tpu.memory_space<vmem>>, %arg6: memref<8x128xf32, #tpu.memory_space<vmem>>, %arg7: memref<8x128xf32, #tpu.memory_space<vmem>>, %arg8: memref<8x128xf32, #tpu.memory_space<vmem>>) attributes {dimension_semantics = [#tpu.dimension_semantics<parallel>, #tpu.dimension_semantics<arbitrary>], iteration_bounds = array<i64: 1, 1>, scalar_prefetch = 0 : i64, scratch_operands = 2 : i64, tpu.core_type = #tpu.core_type<tc>, window_params = [{transform_indices = @transform_0, window_bounds = array<i64: 8, 8, 512>}, {pipeline_mode = #tpu.pipeline_mode<synchronous>, transform_indices = @transform_1, window_bounds = array<i64: 128, 512>}, {pipeline_mode = #tpu.pipeline_mode<synchronous>, transform_indices = @transform_2, window_bounds = array<i64: 128, 128>}, {pipeline_mode = #tpu.pipeline_mode<synchronous>, transform_indices = @transform_3, window_bounds = array<i64: 1, 128>}, {transform_indices = @transform_4, window_bounds = array<i64: 8, 128>}]} {
    %c0_i32 = arith.constant 0 : i32
    %0 = arith.cmpi eq, %arg1, %c0_i32 : i32
    %1 = arith.extui %0 : i1 to i32
    %c0_i32_0 = arith.constant 0 : i32
    %2 = arith.cmpi ne, %1, %c0_i32_0 : i32
    scf.if %2 {
      %cst_74 = arith.constant 0.000000e+00 : f32
      %266 = vector.broadcast %cst_74 : f32 to vector<8x128xf32>
      %c0_75 = arith.constant 0 : index
      %c0_76 = arith.constant 0 : index
      %267 = vector.load %arg7[%c0_75, %c0_76] : memref<8x128xf32, #tpu.memory_space<vmem>>, vector<8x128xf32>
      tpu.vector_store %arg7[%c0_75, %c0_76], %266 {strides = array<i32>} : memref<8x128xf32, #tpu.memory_space<vmem>>, vector<8x128xf32>,
      %cst_77 = arith.constant 0.000000e+00 : f32
      %268 = vector.broadcast %cst_77 : f32 to vector<8x128xf32>
      %c0_78 = arith.constant 0 : index
      %c0_79 = arith.constant 0 : index
      %269 = vector.load %arg8[%c0_78, %c0_79] : memref<8x128xf32, #tpu.memory_space<vmem>>, vector<8x128xf32>
      tpu.vector_store %arg8[%c0_78, %c0_79], %268 {strides = array<i32>} : memref<8x128xf32, #tpu.memory_space<vmem>>, vector<8x128xf32>,
    } else {
    }
    %c0 = arith.constant 0 : index
    %c0_1 = arith.constant 0 : index
    %3 = vector.load %arg7[%c0, %c0_1] : memref<8x128xf32, #tpu.memory_space<vmem>>, vector<8x128xf32>
    %c0_2 = arith.constant 0 : index
    %c0_3 = arith.constant 0 : index
    %4 = vector.load %arg8[%c0_2, %c0_3] : memref<8x128xf32, #tpu.memory_space<vmem>>, vector<8x128xf32>
    %c0_i32_4 = arith.constant 0 : i32
    %5 = arith.index_cast %c0_i32_4 : i32 to index
    %c0_5 = arith.constant 0 : index
    %c0_6 = arith.constant 0 : index
    %6 = vector.load %arg2[%5, %c0_5, %c0_6] : memref<8x8x512xf32, #tpu.memory_space<vmem>>, vector<1x8x512xf32>
    %7 = vector.shape_cast %6 : vector<1x8x512xf32> to vector<8x512xf32>
    %8 = arith.truncf %3 : vector<8x128xf32> to vector<8x128xbf16>
    %c0_7 = arith.constant 0 : index
    %c0_8 = arith.constant 0 : index
    %9 = vector.load %arg3[%c0_7, %c0_8] : memref<128x512xbf16, #tpu.memory_space<vmem>>, vector<128x512xbf16>
    %cst = arith.constant dense<0.000000e+00> : vector<8x512xf32>
    %10 = tpu.matmul %8, %9, %cst {dimension_numbers = #tpu.dot_dimension_numbers<[1], [0], [0], [1], [0, 0, 1, 1], [], []>} : vector<8x128xbf16>, vector<128x512xbf16>, vector<8x512xf32> -> vector<8x512xf32>
    %11 = arith.addf %7, %10 : vector<8x512xf32>
    %12 = vector.extract_strided_slice %11 {offsets = [0, 0], sizes = [8, 128], strides = [1, 1]} : vector<8x512xf32> to vector<8x128xf32>
    %13 = arith.negf %12 : vector<8x128xf32>
    %14 = math.exp %13 : vector<8x128xf32>
    %cst_9 = arith.constant 1.000000e+00 : f32
    %15 = vector.broadcast %cst_9 : f32 to vector<8x128xf32>
    %16 = arith.addf %15, %14 : vector<8x128xf32>
    %17 = arith.divf %15, %16 : vector<8x128xf32>
    %18 = vector.extract_strided_slice %11 {offsets = [0, 128], sizes = [8, 128], strides = [1, 1]} : vector<8x512xf32> to vector<8x128xf32>
    %19 = arith.negf %18 : vector<8x128xf32>
    %20 = math.exp %19 : vector<8x128xf32>
    %cst_10 = arith.constant 1.000000e+00 : f32
    %21 = vector.broadcast %cst_10 : f32 to vector<8x128xf32>
    %22 = arith.addf %21, %20 : vector<8x128xf32>
    %23 = arith.divf %21, %22 : vector<8x128xf32>
    %24 = vector.extract_strided_slice %11 {offsets = [0, 256], sizes = [8, 128], strides = [1, 1]} : vector<8x512xf32> to vector<8x128xf32>
    %25 = math.tanh %24 : vector<8x128xf32>
    %26 = vector.extract_strided_slice %11 {offsets = [0, 384], sizes = [8, 128], strides = [1, 1]} : vector<8x512xf32> to vector<8x128xf32>
    %27 = arith.negf %26 : vector<8x128xf32>
    %28 = math.exp %27 : vector<8x128xf32>
    %cst_11 = arith.constant 1.000000e+00 : f32
    %29 = vector.broadcast %cst_11 : f32 to vector<8x128xf32>
    %30 = arith.addf %29, %28 : vector<8x128xf32>
    %31 = arith.divf %29, %30 : vector<8x128xf32>
    %32 = arith.mulf %23, %4 : vector<8x128xf32>
    %33 = arith.mulf %17, %25 : vector<8x128xf32>
    %34 = arith.addf %32, %33 : vector<8x128xf32>
    %35 = math.tanh %34 : vector<8x128xf32>
    %36 = arith.mulf %31, %35 : vector<8x128xf32>
    %c1_i32 = arith.constant 1 : i32
    %37 = arith.index_cast %c1_i32 : i32 to index
    %c0_12 = arith.constant 0 : index
    %c0_13 = arith.constant 0 : index
    %38 = vector.load %arg2[%37, %c0_12, %c0_13] : memref<8x8x512xf32, #tpu.memory_space<vmem>>, vector<1x8x512xf32>
    %39 = vector.shape_cast %38 : vector<1x8x512xf32> to vector<8x512xf32>
    %40 = arith.truncf %36 : vector<8x128xf32> to vector<8x128xbf16>
    %c0_14 = arith.constant 0 : index
    %c0_15 = arith.constant 0 : index
    %41 = vector.load %arg3[%c0_14, %c0_15] : memref<128x512xbf16, #tpu.memory_space<vmem>>, vector<128x512xbf16>
    %cst_16 = arith.constant dense<0.000000e+00> : vector<8x512xf32>
    %42 = tpu.matmul %40, %41, %cst_16 {dimension_numbers = #tpu.dot_dimension_numbers<[1], [0], [0], [1], [0, 0, 1, 1], [], []>} : vector<8x128xbf16>, vector<128x512xbf16>, vector<8x512xf32> -> vector<8x512xf32>
    %43 = arith.addf %39, %42 : vector<8x512xf32>
    %44 = vector.extract_strided_slice %43 {offsets = [0, 0], sizes = [8, 128], strides = [1, 1]} : vector<8x512xf32> to vector<8x128xf32>
    %45 = arith.negf %44 : vector<8x128xf32>
    %46 = math.exp %45 : vector<8x128xf32>
    %cst_17 = arith.constant 1.000000e+00 : f32
    %47 = vector.broadcast %cst_17 : f32 to vector<8x128xf32>
    %48 = arith.addf %47, %46 : vector<8x128xf32>
    %49 = arith.divf %47, %48 : vector<8x128xf32>
    %50 = vector.extract_strided_slice %43 {offsets = [0, 128], sizes = [8, 128], strides = [1, 1]} : vector<8x512xf32> to vector<8x128xf32>
    %51 = arith.negf %50 : vector<8x128xf32>
    %52 = math.exp %51 : vector<8x128xf32>
    %cst_18 = arith.constant 1.000000e+00 : f32
    %53 = vector.broadcast %cst_18 : f32 to vector<8x128xf32>
    %54 = arith.addf %53, %52 : vector<8x128xf32>
    %55 = arith.divf %53, %54 : vector<8x128xf32>
    %56 = vector.extract_strided_slice %43 {offsets = [0, 256], sizes = [8, 128], strides = [1, 1]} : vector<8x512xf32> to vector<8x128xf32>
    %57 = math.tanh %56 : vector<8x128xf32>
    %58 = vector.extract_strided_slice %43 {offsets = [0, 384], sizes = [8, 128], strides = [1, 1]} : vector<8x512xf32> to vector<8x128xf32>
    %59 = arith.negf %58 : vector<8x128xf32>
    %60 = math.exp %59 : vector<8x128xf32>
    %cst_19 = arith.constant 1.000000e+00 : f32
    %61 = vector.broadcast %cst_19 : f32 to vector<8x128xf32>
    %62 = arith.addf %61, %60 : vector<8x128xf32>
    %63 = arith.divf %61, %62 : vector<8x128xf32>
    %64 = arith.mulf %55, %34 : vector<8x128xf32>
    %65 = arith.mulf %49, %57 : vector<8x128xf32>
    %66 = arith.addf %64, %65 : vector<8x128xf32>
    %67 = math.tanh %66 : vector<8x128xf32>
    %68 = arith.mulf %63, %67 : vector<8x128xf32>
    %c2_i32 = arith.constant 2 : i32
    %69 = arith.index_cast %c2_i32 : i32 to index
    %c0_20 = arith.constant 0 : index
    %c0_21 = arith.constant 0 : index
    %70 = vector.load %arg2[%69, %c0_20, %c0_21] : memref<8x8x512xf32, #tpu.memory_space<vmem>>, vector<1x8x512xf32>
    %71 = vector.shape_cast %70 : vector<1x8x512xf32> to vector<8x512xf32>
    %72 = arith.truncf %68 : vector<8x128xf32> to vector<8x128xbf16>
    %c0_22 = arith.constant 0 : index
    %c0_23 = arith.constant 0 : index
    %73 = vector.load %arg3[%c0_22, %c0_23] : memref<128x512xbf16, #tpu.memory_space<vmem>>, vector<128x512xbf16>
    %cst_24 = arith.constant dense<0.000000e+00> : vector<8x512xf32>
    %74 = tpu.matmul %72, %73, %cst_24 {dimension_numbers = #tpu.dot_dimension_numbers<[1], [0], [0], [1], [0, 0, 1, 1], [], []>} : vector<8x128xbf16>, vector<128x512xbf16>, vector<8x512xf32> -> vector<8x512xf32>
    %75 = arith.addf %71, %74 : vector<8x512xf32>
    %76 = vector.extract_strided_slice %75 {offsets = [0, 0], sizes = [8, 128], strides = [1, 1]} : vector<8x512xf32> to vector<8x128xf32>
    %77 = arith.negf %76 : vector<8x128xf32>
    %78 = math.exp %77 : vector<8x128xf32>
    %cst_25 = arith.constant 1.000000e+00 : f32
    %79 = vector.broadcast %cst_25 : f32 to vector<8x128xf32>
    %80 = arith.addf %79, %78 : vector<8x128xf32>
    %81 = arith.divf %79, %80 : vector<8x128xf32>
    %82 = vector.extract_strided_slice %75 {offsets = [0, 128], sizes = [8, 128], strides = [1, 1]} : vector<8x512xf32> to vector<8x128xf32>
    %83 = arith.negf %82 : vector<8x128xf32>
    %84 = math.exp %83 : vector<8x128xf32>
    %cst_26 = arith.constant 1.000000e+00 : f32
    %85 = vector.broadcast %cst_26 : f32 to vector<8x128xf32>
    %86 = arith.addf %85, %84 : vector<8x128xf32>
    %87 = arith.divf %85, %86 : vector<8x128xf32>
    %88 = vector.extract_strided_slice %75 {offsets = [0, 256], sizes = [8, 128], strides = [1, 1]} : vector<8x512xf32> to vector<8x128xf32>
    %89 = math.tanh %88 : vector<8x128xf32>
    %90 = vector.extract_strided_slice %75 {offsets = [0, 384], sizes = [8, 128], strides = [1, 1]} : vector<8x512xf32> to vector<8x128xf32>
    %91 = arith.negf %90 : vector<8x128xf32>
    %92 = math.exp %91 : vector<8x128xf32>
    %cst_27 = arith.constant 1.000000e+00 : f32
    %93 = vector.broadcast %cst_27 : f32 to vector<8x128xf32>
    %94 = arith.addf %93, %92 : vector<8x128xf32>
    %95 = arith.divf %93, %94 : vector<8x128xf32>
    %96 = arith.mulf %87, %66 : vector<8x128xf32>
    %97 = arith.mulf %81, %89 : vector<8x128xf32>
    %98 = arith.addf %96, %97 : vector<8x128xf32>
    %99 = math.tanh %98 : vector<8x128xf32>
    %100 = arith.mulf %95, %99 : vector<8x128xf32>
    %c3_i32 = arith.constant 3 : i32
    %101 = arith.index_cast %c3_i32 : i32 to index
    %c0_28 = arith.constant 0 : index
    %c0_29 = arith.constant 0 : index
    %102 = vector.load %arg2[%101, %c0_28, %c0_29] : memref<8x8x512xf32, #tpu.memory_space<vmem>>, vector<1x8x512xf32>
    %103 = vector.shape_cast %102 : vector<1x8x512xf32> to vector<8x512xf32>
    %104 = arith.truncf %100 : vector<8x128xf32> to vector<8x128xbf16>
    %c0_30 = arith.constant 0 : index
    %c0_31 = arith.constant 0 : index
    %105 = vector.load %arg3[%c0_30, %c0_31] : memref<128x512xbf16, #tpu.memory_space<vmem>>, vector<128x512xbf16>
    %cst_32 = arith.constant dense<0.000000e+00> : vector<8x512xf32>
    %106 = tpu.matmul %104, %105, %cst_32 {dimension_numbers = #tpu.dot_dimension_numbers<[1], [0], [0], [1], [0, 0, 1, 1], [], []>} : vector<8x128xbf16>, vector<128x512xbf16>, vector<8x512xf32> -> vector<8x512xf32>
    %107 = arith.addf %103, %106 : vector<8x512xf32>
    %108 = vector.extract_strided_slice %107 {offsets = [0, 0], sizes = [8, 128], strides = [1, 1]} : vector<8x512xf32> to vector<8x128xf32>
    %109 = arith.negf %108 : vector<8x128xf32>
    %110 = math.exp %109 : vector<8x128xf32>
    %cst_33 = arith.constant 1.000000e+00 : f32
    %111 = vector.broadcast %cst_33 : f32 to vector<8x128xf32>
    %112 = arith.addf %111, %110 : vector<8x128xf32>
    %113 = arith.divf %111, %112 : vector<8x128xf32>
    %114 = vector.extract_strided_slice %107 {offsets = [0, 128], sizes = [8, 128], strides = [1, 1]} : vector<8x512xf32> to vector<8x128xf32>
    %115 = arith.negf %114 : vector<8x128xf32>
    %116 = math.exp %115 : vector<8x128xf32>
    %cst_34 = arith.constant 1.000000e+00 : f32
    %117 = vector.broadcast %cst_34 : f32 to vector<8x128xf32>
    %118 = arith.addf %117, %116 : vector<8x128xf32>
    %119 = arith.divf %117, %118 : vector<8x128xf32>
    %120 = vector.extract_strided_slice %107 {offsets = [0, 256], sizes = [8, 128], strides = [1, 1]} : vector<8x512xf32> to vector<8x128xf32>
    %121 = math.tanh %120 : vector<8x128xf32>
    %122 = vector.extract_strided_slice %107 {offsets = [0, 384], sizes = [8, 128], strides = [1, 1]} : vector<8x512xf32> to vector<8x128xf32>
    %123 = arith.negf %122 : vector<8x128xf32>
    %124 = math.exp %123 : vector<8x128xf32>
    %cst_35 = arith.constant 1.000000e+00 : f32
    %125 = vector.broadcast %cst_35 : f32 to vector<8x128xf32>
    %126 = arith.addf %125, %124 : vector<8x128xf32>
    %127 = arith.divf %125, %126 : vector<8x128xf32>
    %128 = arith.mulf %119, %98 : vector<8x128xf32>
    %129 = arith.mulf %113, %121 : vector<8x128xf32>
    %130 = arith.addf %128, %129 : vector<8x128xf32>
    %131 = math.tanh %130 : vector<8x128xf32>
    %132 = arith.mulf %127, %131 : vector<8x128xf32>
    %c4_i32 = arith.constant 4 : i32
    %133 = arith.index_cast %c4_i32 : i32 to index
    %c0_36 = arith.constant 0 : index
    %c0_37 = arith.constant 0 : index
    %134 = vector.load %arg2[%133, %c0_36, %c0_37] : memref<8x8x512xf32, #tpu.memory_space<vmem>>, vector<1x8x512xf32>
    %135 = vector.shape_cast %134 : vector<1x8x512xf32> to vector<8x512xf32>
    %136 = arith.truncf %132 : vector<8x128xf32> to vector<8x128xbf16>
    %c0_38 = arith.constant 0 : index
    %c0_39 = arith.constant 0 : index
    %137 = vector.load %arg3[%c0_38, %c0_39] : memref<128x512xbf16, #tpu.memory_space<vmem>>, vector<128x512xbf16>
    %cst_40 = arith.constant dense<0.000000e+00> : vector<8x512xf32>
    %138 = tpu.matmul %136, %137, %cst_40 {dimension_numbers = #tpu.dot_dimension_numbers<[1], [0], [0], [1], [0, 0, 1, 1], [], []>} : vector<8x128xbf16>, vector<128x512xbf16>, vector<8x512xf32> -> vector<8x512xf32>
    %139 = arith.addf %135, %138 : vector<8x512xf32>
    %140 = vector.extract_strided_slice %139 {offsets = [0, 0], sizes = [8, 128], strides = [1, 1]} : vector<8x512xf32> to vector<8x128xf32>
    %141 = arith.negf %140 : vector<8x128xf32>
    %142 = math.exp %141 : vector<8x128xf32>
    %cst_41 = arith.constant 1.000000e+00 : f32
    %143 = vector.broadcast %cst_41 : f32 to vector<8x128xf32>
    %144 = arith.addf %143, %142 : vector<8x128xf32>
    %145 = arith.divf %143, %144 : vector<8x128xf32>
    %146 = vector.extract_strided_slice %139 {offsets = [0, 128], sizes = [8, 128], strides = [1, 1]} : vector<8x512xf32> to vector<8x128xf32>
    %147 = arith.negf %146 : vector<8x128xf32>
    %148 = math.exp %147 : vector<8x128xf32>
    %cst_42 = arith.constant 1.000000e+00 : f32
    %149 = vector.broadcast %cst_42 : f32 to vector<8x128xf32>
    %150 = arith.addf %149, %148 : vector<8x128xf32>
    %151 = arith.divf %149, %150 : vector<8x128xf32>
    %152 = vector.extract_strided_slice %139 {offsets = [0, 256], sizes = [8, 128], strides = [1, 1]} : vector<8x512xf32> to vector<8x128xf32>
    %153 = math.tanh %152 : vector<8x128xf32>
    %154 = vector.extract_strided_slice %139 {offsets = [0, 384], sizes = [8, 128], strides = [1, 1]} : vector<8x512xf32> to vector<8x128xf32>
    %155 = arith.negf %154 : vector<8x128xf32>
    %156 = math.exp %155 : vector<8x128xf32>
    %cst_43 = arith.constant 1.000000e+00 : f32
    %157 = vector.broadcast %cst_43 : f32 to vector<8x128xf32>
    %158 = arith.addf %157, %156 : vector<8x128xf32>
    %159 = arith.divf %157, %158 : vector<8x128xf32>
    %160 = arith.mulf %151, %130 : vector<8x128xf32>
    %161 = arith.mulf %145, %153 : vector<8x128xf32>
    %162 = arith.addf %160, %161 : vector<8x128xf32>
    %163 = math.tanh %162 : vector<8x128xf32>
    %164 = arith.mulf %159, %163 : vector<8x128xf32>
    %c5_i32 = arith.constant 5 : i32
    %165 = arith.index_cast %c5_i32 : i32 to index
    %c0_44 = arith.constant 0 : index
    %c0_45 = arith.constant 0 : index
    %166 = vector.load %arg2[%165, %c0_44, %c0_45] : memref<8x8x512xf32, #tpu.memory_space<vmem>>, vector<1x8x512xf32>
    %167 = vector.shape_cast %166 : vector<1x8x512xf32> to vector<8x512xf32>
    %168 = arith.truncf %164 : vector<8x128xf32> to vector<8x128xbf16>
    %c0_46 = arith.constant 0 : index
    %c0_47 = arith.constant 0 : index
    %169 = vector.load %arg3[%c0_46, %c0_47] : memref<128x512xbf16, #tpu.memory_space<vmem>>, vector<128x512xbf16>
    %cst_48 = arith.constant dense<0.000000e+00> : vector<8x512xf32>
    %170 = tpu.matmul %168, %169, %cst_48 {dimension_numbers = #tpu.dot_dimension_numbers<[1], [0], [0], [1], [0, 0, 1, 1], [], []>} : vector<8x128xbf16>, vector<128x512xbf16>, vector<8x512xf32> -> vector<8x512xf32>
    %171 = arith.addf %167, %170 : vector<8x512xf32>
    %172 = vector.extract_strided_slice %171 {offsets = [0, 0], sizes = [8, 128], strides = [1, 1]} : vector<8x512xf32> to vector<8x128xf32>
    %173 = arith.negf %172 : vector<8x128xf32>
    %174 = math.exp %173 : vector<8x128xf32>
    %cst_49 = arith.constant 1.000000e+00 : f32
    %175 = vector.broadcast %cst_49 : f32 to vector<8x128xf32>
    %176 = arith.addf %175, %174 : vector<8x128xf32>
    %177 = arith.divf %175, %176 : vector<8x128xf32>
    %178 = vector.extract_strided_slice %171 {offsets = [0, 128], sizes = [8, 128], strides = [1, 1]} : vector<8x512xf32> to vector<8x128xf32>
    %179 = arith.negf %178 : vector<8x128xf32>
    %180 = math.exp %179 : vector<8x128xf32>
    %cst_50 = arith.constant 1.000000e+00 : f32
    %181 = vector.broadcast %cst_50 : f32 to vector<8x128xf32>
    %182 = arith.addf %181, %180 : vector<8x128xf32>
    %183 = arith.divf %181, %182 : vector<8x128xf32>
    %184 = vector.extract_strided_slice %171 {offsets = [0, 256], sizes = [8, 128], strides = [1, 1]} : vector<8x512xf32> to vector<8x128xf32>
    %185 = math.tanh %184 : vector<8x128xf32>
    %186 = vector.extract_strided_slice %171 {offsets = [0, 384], sizes = [8, 128], strides = [1, 1]} : vector<8x512xf32> to vector<8x128xf32>
    %187 = arith.negf %186 : vector<8x128xf32>
    %188 = math.exp %187 : vector<8x128xf32>
    %cst_51 = arith.constant 1.000000e+00 : f32
    %189 = vector.broadcast %cst_51 : f32 to vector<8x128xf32>
    %190 = arith.addf %189, %188 : vector<8x128xf32>
    %191 = arith.divf %189, %190 : vector<8x128xf32>
    %192 = arith.mulf %183, %162 : vector<8x128xf32>
    %193 = arith.mulf %177, %185 : vector<8x128xf32>
    %194 = arith.addf %192, %193 : vector<8x128xf32>
    %195 = math.tanh %194 : vector<8x128xf32>
    %196 = arith.mulf %191, %195 : vector<8x128xf32>
    %c6_i32 = arith.constant 6 : i32
    %197 = arith.index_cast %c6_i32 : i32 to index
    %c0_52 = arith.constant 0 : index
    %c0_53 = arith.constant 0 : index
    %198 = vector.load %arg2[%197, %c0_52, %c0_53] : memref<8x8x512xf32, #tpu.memory_space<vmem>>, vector<1x8x512xf32>
    %199 = vector.shape_cast %198 : vector<1x8x512xf32> to vector<8x512xf32>
    %200 = arith.truncf %196 : vector<8x128xf32> to vector<8x128xbf16>
    %c0_54 = arith.constant 0 : index
    %c0_55 = arith.constant 0 : index
    %201 = vector.load %arg3[%c0_54, %c0_55] : memref<128x512xbf16, #tpu.memory_space<vmem>>, vector<128x512xbf16>
    %cst_56 = arith.constant dense<0.000000e+00> : vector<8x512xf32>
    %202 = tpu.matmul %200, %201, %cst_56 {dimension_numbers = #tpu.dot_dimension_numbers<[1], [0], [0], [1], [0, 0, 1, 1], [], []>} : vector<8x128xbf16>, vector<128x512xbf16>, vector<8x512xf32> -> vector<8x512xf32>
    %203 = arith.addf %199, %202 : vector<8x512xf32>
    %204 = vector.extract_strided_slice %203 {offsets = [0, 0], sizes = [8, 128], strides = [1, 1]} : vector<8x512xf32> to vector<8x128xf32>
    %205 = arith.negf %204 : vector<8x128xf32>
    %206 = math.exp %205 : vector<8x128xf32>
    %cst_57 = arith.constant 1.000000e+00 : f32
    %207 = vector.broadcast %cst_57 : f32 to vector<8x128xf32>
    %208 = arith.addf %207, %206 : vector<8x128xf32>
    %209 = arith.divf %207, %208 : vector<8x128xf32>
    %210 = vector.extract_strided_slice %203 {offsets = [0, 128], sizes = [8, 128], strides = [1, 1]} : vector<8x512xf32> to vector<8x128xf32>
    %211 = arith.negf %210 : vector<8x128xf32>
    %212 = math.exp %211 : vector<8x128xf32>
    %cst_58 = arith.constant 1.000000e+00 : f32
    %213 = vector.broadcast %cst_58 : f32 to vector<8x128xf32>
    %214 = arith.addf %213, %212 : vector<8x128xf32>
    %215 = arith.divf %213, %214 : vector<8x128xf32>
    %216 = vector.extract_strided_slice %203 {offsets = [0, 256], sizes = [8, 128], strides = [1, 1]} : vector<8x512xf32> to vector<8x128xf32>
    %217 = math.tanh %216 : vector<8x128xf32>
    %218 = vector.extract_strided_slice %203 {offsets = [0, 384], sizes = [8, 128], strides = [1, 1]} : vector<8x512xf32> to vector<8x128xf32>
    %219 = arith.negf %218 : vector<8x128xf32>
    %220 = math.exp %219 : vector<8x128xf32>
    %cst_59 = arith.constant 1.000000e+00 : f32
    %221 = vector.broadcast %cst_59 : f32 to vector<8x128xf32>
    %222 = arith.addf %221, %220 : vector<8x128xf32>
    %223 = arith.divf %221, %222 : vector<8x128xf32>
    %224 = arith.mulf %215, %194 : vector<8x128xf32>
    %225 = arith.mulf %209, %217 : vector<8x128xf32>
    %226 = arith.addf %224, %225 : vector<8x128xf32>
    %227 = math.tanh %226 : vector<8x128xf32>
    %228 = arith.mulf %223, %227 : vector<8x128xf32>
    %c7_i32 = arith.constant 7 : i32
    %229 = arith.index_cast %c7_i32 : i32 to index
    %c0_60 = arith.constant 0 : index
    %c0_61 = arith.constant 0 : index
    %230 = vector.load %arg2[%229, %c0_60, %c0_61] : memref<8x8x512xf32, #tpu.memory_space<vmem>>, vector<1x8x512xf32>
    %231 = vector.shape_cast %230 : vector<1x8x512xf32> to vector<8x512xf32>
    %232 = arith.truncf %228 : vector<8x128xf32> to vector<8x128xbf16>
    %c0_62 = arith.constant 0 : index
    %c0_63 = arith.constant 0 : index
    %233 = vector.load %arg3[%c0_62, %c0_63] : memref<128x512xbf16, #tpu.memory_space<vmem>>, vector<128x512xbf16>
    %cst_64 = arith.constant dense<0.000000e+00> : vector<8x512xf32>
    %234 = tpu.matmul %232, %233, %cst_64 {dimension_numbers = #tpu.dot_dimension_numbers<[1], [0], [0], [1], [0, 0, 1, 1], [], []>} : vector<8x128xbf16>, vector<128x512xbf16>, vector<8x512xf32> -> vector<8x512xf32>
    %235 = arith.addf %231, %234 : vector<8x512xf32>
    %236 = vector.extract_strided_slice %235 {offsets = [0, 0], sizes = [8, 128], strides = [1, 1]} : vector<8x512xf32> to vector<8x128xf32>
    %237 = arith.negf %236 : vector<8x128xf32>
    %238 = math.exp %237 : vector<8x128xf32>
    %cst_65 = arith.constant 1.000000e+00 : f32
    %239 = vector.broadcast %cst_65 : f32 to vector<8x128xf32>
    %240 = arith.addf %239, %238 : vector<8x128xf32>
    %241 = arith.divf %239, %240 : vector<8x128xf32>
    %242 = vector.extract_strided_slice %235 {offsets = [0, 128], sizes = [8, 128], strides = [1, 1]} : vector<8x512xf32> to vector<8x128xf32>
    %243 = arith.negf %242 : vector<8x128xf32>
    %244 = math.exp %243 : vector<8x128xf32>
    %cst_66 = arith.constant 1.000000e+00 : f32
    %245 = vector.broadcast %cst_66 : f32 to vector<8x128xf32>
    %246 = arith.addf %245, %244 : vector<8x128xf32>
    %247 = arith.divf %245, %246 : vector<8x128xf32>
    %248 = vector.extract_strided_slice %235 {offsets = [0, 256], sizes = [8, 128], strides = [1, 1]} : vector<8x512xf32> to vector<8x128xf32>
    %249 = math.tanh %248 : vector<8x128xf32>
    %250 = vector.extract_strided_slice %235 {offsets = [0, 384], sizes = [8, 128], strides = [1, 1]} : vector<8x512xf32> to vector<8x128xf32>
    %251 = arith.negf %250 : vector<8x128xf32>
    %252 = math.exp %251 : vector<8x128xf32>
    %cst_67 = arith.constant 1.000000e+00 : f32
    %253 = vector.broadcast %cst_67 : f32 to vector<8x128xf32>
    %254 = arith.addf %253, %252 : vector<8x128xf32>
    %255 = arith.divf %253, %254 : vector<8x128xf32>
    %256 = arith.mulf %247, %226 : vector<8x128xf32>
    %257 = arith.mulf %241, %249 : vector<8x128xf32>
    %258 = arith.addf %256, %257 : vector<8x128xf32>
    %259 = math.tanh %258 : vector<8x128xf32>
    %260 = arith.mulf %255, %259 : vector<8x128xf32>
    %c8_i32 = arith.constant 8 : i32
    %c0_68 = arith.constant 0 : index
    %c0_69 = arith.constant 0 : index
    %261 = vector.load %arg7[%c0_68, %c0_69] : memref<8x128xf32, #tpu.memory_space<vmem>>, vector<8x128xf32>
    tpu.vector_store %arg7[%c0_68, %c0_69], %260 {strides = array<i32>} : memref<8x128xf32, #tpu.memory_space<vmem>>, vector<8x128xf32>,
    %c0_70 = arith.constant 0 : index
    %c0_71 = arith.constant 0 : index
    %262 = vector.load %arg8[%c0_70, %c0_71] : memref<8x128xf32, #tpu.memory_space<vmem>>, vector<8x128xf32>
    tpu.vector_store %arg8[%c0_70, %c0_71], %258 {strides = array<i32>} : memref<8x128xf32, #tpu.memory_space<vmem>>, vector<8x128xf32>,
    %c0_i32_72 = arith.constant 0 : i32
    %263 = arith.cmpi eq, %arg1, %c0_i32_72 : i32
    %264 = arith.extui %263 : i1 to i32
    %c0_i32_73 = arith.constant 0 : i32
    %265 = arith.cmpi ne, %264, %c0_i32_73 : i32
    scf.if %265 {
      %266 = arith.truncf %260 : vector<8x128xf32> to vector<8x128xbf16>
      %c0_74 = arith.constant 0 : index
      %c0_75 = arith.constant 0 : index
      %267 = vector.load %arg4[%c0_74, %c0_75] : memref<128x128xbf16, #tpu.memory_space<vmem>>, vector<128x128xbf16>
      %cst_76 = arith.constant dense<0.000000e+00> : vector<8x128xf32>
      %268 = tpu.matmul %266, %267, %cst_76 {dimension_numbers = #tpu.dot_dimension_numbers<[1], [0], [0], [1], [0, 0, 1, 1], [], []>} : vector<8x128xbf16>, vector<128x128xbf16>, vector<8x128xf32> -> vector<8x128xf32>
      %c0_77 = arith.constant 0 : index
      %c0_78 = arith.constant 0 : index
      %269 = vector.load %arg5[%c0_77, %c0_78] : memref<1x128xf32, #tpu.memory_space<vmem>>, vector<1x128xf32>
      %270 = vector.broadcast %269 : vector<1x128xf32> to vector<8x128xf32>
      %271 = arith.addf %268, %270 : vector<8x128xf32>
      %c0_79 = arith.constant 0 : index
      %c0_80 = arith.constant 0 : index
      %272 = vector.load %arg6[%c0_79, %c0_80] : memref<8x128xf32, #tpu.memory_space<vmem>>, vector<8x128xf32>
      tpu.vector_store %arg6[%c0_79, %c0_80], %271 {strides = array<i32>} : memref<8x128xf32, #tpu.memory_space<vmem>>, vector<8x128xf32>,
    } else {
    }
    return
  }
  func.func @transform_0(%arg0: i32, %arg1: i32) -> (i32, i32, i32) {
    %c0_i32 = arith.constant 0 : i32
    %c0_i32_0 = arith.constant 0 : i32
    return %arg1, %arg0, %c0_i32 : i32, i32, i32
  }
  func.func @transform_1(%arg0: i32, %arg1: i32) -> (i32, i32) {
    %c0_i32 = arith.constant 0 : i32
    %c0_i32_0 = arith.constant 0 : i32
    %c0_i32_1 = arith.constant 0 : i32
    return %c0_i32, %c0_i32_0 : i32, i32
  }
  func.func @transform_2(%arg0: i32, %arg1: i32) -> (i32, i32) {
    %c0_i32 = arith.constant 0 : i32
    %c0_i32_0 = arith.constant 0 : i32
    %c0_i32_1 = arith.constant 0 : i32
    return %c0_i32, %c0_i32_0 : i32, i32
  }
  func.func @transform_3(%arg0: i32, %arg1: i32) -> (i32, i32) {
    %c0_i32 = arith.constant 0 : i32
    %c0_i32_0 = arith.constant 0 : i32
    %c0_i32_1 = arith.constant 0 : i32
    return %c0_i32, %c0_i32_0 : i32, i32
  }
  func.func @transform_4(%arg0: i32, %arg1: i32) -> (i32, i32) {
    %c0_i32 = arith.constant 0 : i32
    %c0_i32_0 = arith.constant 0 : i32
    return %arg0, %c0_i32 : i32, i32
  }
}

module attributes {stable_mosaic.version = 11 : i64} {
  func.func @lstm_classifier_kernel(%arg0: i32, %arg1: i32, %arg2: memref<8x8x512xf32, #tpu.memory_space<vmem>>, %arg3: memref<128x512xbf16, #tpu.memory_space<vmem>>, %arg4: memref<128x128xbf16, #tpu.memory_space<vmem>>, %arg5: memref<1x128xf32, #tpu.memory_space<vmem>>, %arg6: memref<8x128xf32, #tpu.memory_space<vmem>>, %arg7: memref<8x128xf32, #tpu.memory_space<vmem>>, %arg8: memref<8x128xf32, #tpu.memory_space<vmem>>) attributes {dimension_semantics = [#tpu.dimension_semantics<parallel>, #tpu.dimension_semantics<arbitrary>], iteration_bounds = array<i64: 1, 1>, scalar_prefetch = 0 : i64, scratch_operands = 2 : i64, tpu.core_type = #tpu.core_type<tc>, window_params = [{transform_indices = @transform_0, window_bounds = array<i64: 8, 8, 512>}, {pipeline_mode = #tpu.pipeline_mode<synchronous>, transform_indices = @transform_1, window_bounds = array<i64: 128, 512>}, {pipeline_mode = #tpu.pipeline_mode<synchronous>, transform_indices = @transform_2, window_bounds = array<i64: 128, 128>}, {pipeline_mode = #tpu.pipeline_mode<synchronous>, transform_indices = @transform_3, window_bounds = array<i64: 1, 128>}, {transform_indices = @transform_4, window_bounds = array<i64: 8, 128>}]} {
    %c0_i32 = arith.constant 0 : i32
    %0 = arith.cmpi eq, %arg1, %c0_i32 : i32
    %1 = arith.extui %0 : i1 to i32
    %c0_i32_0 = arith.constant 0 : i32
    %2 = arith.cmpi ne, %1, %c0_i32_0 : i32
    scf.if %2 {
      %cst_74 = arith.constant 0.000000e+00 : f32
      %266 = vector.broadcast %cst_74 : f32 to vector<8x128xf32>
      %c0_75 = arith.constant 0 : index
      %c0_76 = arith.constant 0 : index
      %267 = vector.load %arg7[%c0_75, %c0_76] : memref<8x128xf32, #tpu.memory_space<vmem>>, vector<8x128xf32>
      tpu.vector_store %arg7[%c0_75, %c0_76], %266 {strides = array<i32>} : memref<8x128xf32, #tpu.memory_space<vmem>>, vector<8x128xf32>,
      %cst_77 = arith.constant 0.000000e+00 : f32
      %268 = vector.broadcast %cst_77 : f32 to vector<8x128xf32>
      %c0_78 = arith.constant 0 : index
      %c0_79 = arith.constant 0 : index
      %269 = vector.load %arg8[%c0_78, %c0_79] : memref<8x128xf32, #tpu.memory_space<vmem>>, vector<8x128xf32>
      tpu.vector_store %arg8[%c0_78, %c0_79], %268 {strides = array<i32>} : memref<8x128xf32, #tpu.memory_space<vmem>>, vector<8x128xf32>,
    } else {
    }
    %c0 = arith.constant 0 : index
    %c0_1 = arith.constant 0 : index
    %3 = vector.load %arg7[%c0, %c0_1] : memref<8x128xf32, #tpu.memory_space<vmem>>, vector<8x128xf32>
    %c0_2 = arith.constant 0 : index
    %c0_3 = arith.constant 0 : index
    %4 = vector.load %arg8[%c0_2, %c0_3] : memref<8x128xf32, #tpu.memory_space<vmem>>, vector<8x128xf32>
    %c0_i32_4 = arith.constant 0 : i32
    %5 = arith.index_cast %c0_i32_4 : i32 to index
    %c0_5 = arith.constant 0 : index
    %c0_6 = arith.constant 0 : index
    %6 = vector.load %arg2[%5, %c0_5, %c0_6] : memref<8x8x512xf32, #tpu.memory_space<vmem>>, vector<1x8x512xf32>
    %7 = vector.shape_cast %6 : vector<1x8x512xf32> to vector<8x512xf32>
    %8 = arith.truncf %3 : vector<8x128xf32> to vector<8x128xbf16>
    %c0_7 = arith.constant 0 : index
    %c0_8 = arith.constant 0 : index
    %9 = vector.load %arg3[%c0_7, %c0_8] : memref<128x512xbf16, #tpu.memory_space<vmem>>, vector<128x512xbf16>
    %cst = arith.constant dense<0.000000e+00> : vector<8x512xf32>
    %10 = tpu.matmul %8, %9, %cst {dimension_numbers = #tpu.dot_dimension_numbers<[1], [0], [0], [1], [0, 0, 1, 1], [], []>} : vector<8x128xbf16>, vector<128x512xbf16>, vector<8x512xf32> -> vector<8x512xf32>
    %11 = arith.addf %7, %10 : vector<8x512xf32>
    %12 = vector.extract_strided_slice %11 {offsets = [0, 0], sizes = [8, 128], strides = [1, 1]} : vector<8x512xf32> to vector<8x128xf32>
    %13 = arith.negf %12 : vector<8x128xf32>
    %14 = math.exp %13 : vector<8x128xf32>
    %cst_9 = arith.constant 1.000000e+00 : f32
    %15 = vector.broadcast %cst_9 : f32 to vector<8x128xf32>
    %16 = arith.addf %15, %14 : vector<8x128xf32>
    %17 = arith.divf %15, %16 : vector<8x128xf32>
    %18 = vector.extract_strided_slice %11 {offsets = [0, 128], sizes = [8, 128], strides = [1, 1]} : vector<8x512xf32> to vector<8x128xf32>
    %19 = arith.negf %18 : vector<8x128xf32>
    %20 = math.exp %19 : vector<8x128xf32>
    %cst_10 = arith.constant 1.000000e+00 : f32
    %21 = vector.broadcast %cst_10 : f32 to vector<8x128xf32>
    %22 = arith.addf %21, %20 : vector<8x128xf32>
    %23 = arith.divf %21, %22 : vector<8x128xf32>
    %24 = vector.extract_strided_slice %11 {offsets = [0, 256], sizes = [8, 128], strides = [1, 1]} : vector<8x512xf32> to vector<8x128xf32>
    %25 = math.tanh %24 : vector<8x128xf32>
    %26 = vector.extract_strided_slice %11 {offsets = [0, 384], sizes = [8, 128], strides = [1, 1]} : vector<8x512xf32> to vector<8x128xf32>
    %27 = arith.negf %26 : vector<8x128xf32>
    %28 = math.exp %27 : vector<8x128xf32>
    %cst_11 = arith.constant 1.000000e+00 : f32
    %29 = vector.broadcast %cst_11 : f32 to vector<8x128xf32>
    %30 = arith.addf %29, %28 : vector<8x128xf32>
    %31 = arith.divf %29, %30 : vector<8x128xf32>
    %32 = arith.mulf %23, %4 : vector<8x128xf32>
    %33 = arith.mulf %17, %25 : vector<8x128xf32>
    %34 = arith.addf %32, %33 : vector<8x128xf32>
    %35 = math.tanh %34 : vector<8x128xf32>
    %36 = arith.mulf %31, %35 : vector<8x128xf32>
    %c1_i32 = arith.constant 1 : i32
    %37 = arith.index_cast %c1_i32 : i32 to index
    %c0_12 = arith.constant 0 : index
    %c0_13 = arith.constant 0 : index
    %38 = vector.load %arg2[%37, %c0_12, %c0_13] : memref<8x8x512xf32, #tpu.memory_space<vmem>>, vector<1x8x512xf32>
    %39 = vector.shape_cast %38 : vector<1x8x512xf32> to vector<8x512xf32>
    %40 = arith.truncf %36 : vector<8x128xf32> to vector<8x128xbf16>
    %c0_14 = arith.constant 0 : index
    %c0_15 = arith.constant 0 : index
    %41 = vector.load %arg3[%c0_14, %c0_15] : memref<128x512xbf16, #tpu.memory_space<vmem>>, vector<128x512xbf16>
    %cst_16 = arith.constant dense<0.000000e+00> : vector<8x512xf32>
    %42 = tpu.matmul %40, %41, %cst_16 {dimension_numbers = #tpu.dot_dimension_numbers<[1], [0], [0], [1], [0, 0, 1, 1], [], []>} : vector<8x128xbf16>, vector<128x512xbf16>, vector<8x512xf32> -> vector<8x512xf32>
    %43 = arith.addf %39, %42 : vector<8x512xf32>
    %44 = vector.extract_strided_slice %43 {offsets = [0, 0], sizes = [8, 128], strides = [1, 1]} : vector<8x512xf32> to vector<8x128xf32>
    %45 = arith.negf %44 : vector<8x128xf32>
    %46 = math.exp %45 : vector<8x128xf32>
    %cst_17 = arith.constant 1.000000e+00 : f32
    %47 = vector.broadcast %cst_17 : f32 to vector<8x128xf32>
    %48 = arith.addf %47, %46 : vector<8x128xf32>
    %49 = arith.divf %47, %48 : vector<8x128xf32>
    %50 = vector.extract_strided_slice %43 {offsets = [0, 128], sizes = [8, 128], strides = [1, 1]} : vector<8x512xf32> to vector<8x128xf32>
    %51 = arith.negf %50 : vector<8x128xf32>
    %52 = math.exp %51 : vector<8x128xf32>
    %cst_18 = arith.constant 1.000000e+00 : f32
    %53 = vector.broadcast %cst_18 : f32 to vector<8x128xf32>
    %54 = arith.addf %53, %52 : vector<8x128xf32>
    %55 = arith.divf %53, %54 : vector<8x128xf32>
    %56 = vector.extract_strided_slice %43 {offsets = [0, 256], sizes = [8, 128], strides = [1, 1]} : vector<8x512xf32> to vector<8x128xf32>
    %57 = math.tanh %56 : vector<8x128xf32>
    %58 = vector.extract_strided_slice %43 {offsets = [0, 384], sizes = [8, 128], strides = [1, 1]} : vector<8x512xf32> to vector<8x128xf32>
    %59 = arith.negf %58 : vector<8x128xf32>
    %60 = math.exp %59 : vector<8x128xf32>
    %cst_19 = arith.constant 1.000000e+00 : f32
    %61 = vector.broadcast %cst_19 : f32 to vector<8x128xf32>
    %62 = arith.addf %61, %60 : vector<8x128xf32>
    %63 = arith.divf %61, %62 : vector<8x128xf32>
    %64 = arith.mulf %55, %34 : vector<8x128xf32>
    %65 = arith.mulf %49, %57 : vector<8x128xf32>
    %66 = arith.addf %64, %65 : vector<8x128xf32>
    %67 = math.tanh %66 : vector<8x128xf32>
    %68 = arith.mulf %63, %67 : vector<8x128xf32>
    %c2_i32 = arith.constant 2 : i32
    %69 = arith.index_cast %c2_i32 : i32 to index
    %c0_20 = arith.constant 0 : index
    %c0_21 = arith.constant 0 : index
    %70 = vector.load %arg2[%69, %c0_20, %c0_21] : memref<8x8x512xf32, #tpu.memory_space<vmem>>, vector<1x8x512xf32>
    %71 = vector.shape_cast %70 : vector<1x8x512xf32> to vector<8x512xf32>
    %72 = arith.truncf %68 : vector<8x128xf32> to vector<8x128xbf16>
    %c0_22 = arith.constant 0 : index
    %c0_23 = arith.constant 0 : index
    %73 = vector.load %arg3[%c0_22, %c0_23] : memref<128x512xbf16, #tpu.memory_space<vmem>>, vector<128x512xbf16>
    %cst_24 = arith.constant dense<0.000000e+00> : vector<8x512xf32>
    %74 = tpu.matmul %72, %73, %cst_24 {dimension_numbers = #tpu.dot_dimension_numbers<[1], [0], [0], [1], [0, 0, 1, 1], [], []>} : vector<8x128xbf16>, vector<128x512xbf16>, vector<8x512xf32> -> vector<8x512xf32>
    %75 = arith.addf %71, %74 : vector<8x512xf32>
    %76 = vector.extract_strided_slice %75 {offsets = [0, 0], sizes = [8, 128], strides = [1, 1]} : vector<8x512xf32> to vector<8x128xf32>
    %77 = arith.negf %76 : vector<8x128xf32>
    %78 = math.exp %77 : vector<8x128xf32>
    %cst_25 = arith.constant 1.000000e+00 : f32
    %79 = vector.broadcast %cst_25 : f32 to vector<8x128xf32>
    %80 = arith.addf %79, %78 : vector<8x128xf32>
    %81 = arith.divf %79, %80 : vector<8x128xf32>
    %82 = vector.extract_strided_slice %75 {offsets = [0, 128], sizes = [8, 128], strides = [1, 1]} : vector<8x512xf32> to vector<8x128xf32>
    %83 = arith.negf %82 : vector<8x128xf32>
    %84 = math.exp %83 : vector<8x128xf32>
    %cst_26 = arith.constant 1.000000e+00 : f32
    %85 = vector.broadcast %cst_26 : f32 to vector<8x128xf32>
    %86 = arith.addf %85, %84 : vector<8x128xf32>
    %87 = arith.divf %85, %86 : vector<8x128xf32>
    %88 = vector.extract_strided_slice %75 {offsets = [0, 256], sizes = [8, 128], strides = [1, 1]} : vector<8x512xf32> to vector<8x128xf32>
    %89 = math.tanh %88 : vector<8x128xf32>
    %90 = vector.extract_strided_slice %75 {offsets = [0, 384], sizes = [8, 128], strides = [1, 1]} : vector<8x512xf32> to vector<8x128xf32>
    %91 = arith.negf %90 : vector<8x128xf32>
    %92 = math.exp %91 : vector<8x128xf32>
    %cst_27 = arith.constant 1.000000e+00 : f32
    %93 = vector.broadcast %cst_27 : f32 to vector<8x128xf32>
    %94 = arith.addf %93, %92 : vector<8x128xf32>
    %95 = arith.divf %93, %94 : vector<8x128xf32>
    %96 = arith.mulf %87, %66 : vector<8x128xf32>
    %97 = arith.mulf %81, %89 : vector<8x128xf32>
    %98 = arith.addf %96, %97 : vector<8x128xf32>
    %99 = math.tanh %98 : vector<8x128xf32>
    %100 = arith.mulf %95, %99 : vector<8x128xf32>
    %c3_i32 = arith.constant 3 : i32
    %101 = arith.index_cast %c3_i32 : i32 to index
    %c0_28 = arith.constant 0 : index
    %c0_29 = arith.constant 0 : index
    %102 = vector.load %arg2[%101, %c0_28, %c0_29] : memref<8x8x512xf32, #tpu.memory_space<vmem>>, vector<1x8x512xf32>
    %103 = vector.shape_cast %102 : vector<1x8x512xf32> to vector<8x512xf32>
    %104 = arith.truncf %100 : vector<8x128xf32> to vector<8x128xbf16>
    %c0_30 = arith.constant 0 : index
    %c0_31 = arith.constant 0 : index
    %105 = vector.load %arg3[%c0_30, %c0_31] : memref<128x512xbf16, #tpu.memory_space<vmem>>, vector<128x512xbf16>
    %cst_32 = arith.constant dense<0.000000e+00> : vector<8x512xf32>
    %106 = tpu.matmul %104, %105, %cst_32 {dimension_numbers = #tpu.dot_dimension_numbers<[1], [0], [0], [1], [0, 0, 1, 1], [], []>} : vector<8x128xbf16>, vector<128x512xbf16>, vector<8x512xf32> -> vector<8x512xf32>
    %107 = arith.addf %103, %106 : vector<8x512xf32>
    %108 = vector.extract_strided_slice %107 {offsets = [0, 0], sizes = [8, 128], strides = [1, 1]} : vector<8x512xf32> to vector<8x128xf32>
    %109 = arith.negf %108 : vector<8x128xf32>
    %110 = math.exp %109 : vector<8x128xf32>
    %cst_33 = arith.constant 1.000000e+00 : f32
    %111 = vector.broadcast %cst_33 : f32 to vector<8x128xf32>
    %112 = arith.addf %111, %110 : vector<8x128xf32>
    %113 = arith.divf %111, %112 : vector<8x128xf32>
    %114 = vector.extract_strided_slice %107 {offsets = [0, 128], sizes = [8, 128], strides = [1, 1]} : vector<8x512xf32> to vector<8x128xf32>
    %115 = arith.negf %114 : vector<8x128xf32>
    %116 = math.exp %115 : vector<8x128xf32>
    %cst_34 = arith.constant 1.000000e+00 : f32
    %117 = vector.broadcast %cst_34 : f32 to vector<8x128xf32>
    %118 = arith.addf %117, %116 : vector<8x128xf32>
    %119 = arith.divf %117, %118 : vector<8x128xf32>
    %120 = vector.extract_strided_slice %107 {offsets = [0, 256], sizes = [8, 128], strides = [1, 1]} : vector<8x512xf32> to vector<8x128xf32>
    %121 = math.tanh %120 : vector<8x128xf32>
    %122 = vector.extract_strided_slice %107 {offsets = [0, 384], sizes = [8, 128], strides = [1, 1]} : vector<8x512xf32> to vector<8x128xf32>
    %123 = arith.negf %122 : vector<8x128xf32>
    %124 = math.exp %123 : vector<8x128xf32>
    %cst_35 = arith.constant 1.000000e+00 : f32
    %125 = vector.broadcast %cst_35 : f32 to vector<8x128xf32>
    %126 = arith.addf %125, %124 : vector<8x128xf32>
    %127 = arith.divf %125, %126 : vector<8x128xf32>
    %128 = arith.mulf %119, %98 : vector<8x128xf32>
    %129 = arith.mulf %113, %121 : vector<8x128xf32>
    %130 = arith.addf %128, %129 : vector<8x128xf32>
    %131 = math.tanh %130 : vector<8x128xf32>
    %132 = arith.mulf %127, %131 : vector<8x128xf32>
    %c4_i32 = arith.constant 4 : i32
    %133 = arith.index_cast %c4_i32 : i32 to index
    %c0_36 = arith.constant 0 : index
    %c0_37 = arith.constant 0 : index
    %134 = vector.load %arg2[%133, %c0_36, %c0_37] : memref<8x8x512xf32, #tpu.memory_space<vmem>>, vector<1x8x512xf32>
    %135 = vector.shape_cast %134 : vector<1x8x512xf32> to vector<8x512xf32>
    %136 = arith.truncf %132 : vector<8x128xf32> to vector<8x128xbf16>
    %c0_38 = arith.constant 0 : index
    %c0_39 = arith.constant 0 : index
    %137 = vector.load %arg3[%c0_38, %c0_39] : memref<128x512xbf16, #tpu.memory_space<vmem>>, vector<128x512xbf16>
    %cst_40 = arith.constant dense<0.000000e+00> : vector<8x512xf32>
    %138 = tpu.matmul %136, %137, %cst_40 {dimension_numbers = #tpu.dot_dimension_numbers<[1], [0], [0], [1], [0, 0, 1, 1], [], []>} : vector<8x128xbf16>, vector<128x512xbf16>, vector<8x512xf32> -> vector<8x512xf32>
    %139 = arith.addf %135, %138 : vector<8x512xf32>
    %140 = vector.extract_strided_slice %139 {offsets = [0, 0], sizes = [8, 128], strides = [1, 1]} : vector<8x512xf32> to vector<8x128xf32>
    %141 = arith.negf %140 : vector<8x128xf32>
    %142 = math.exp %141 : vector<8x128xf32>
    %cst_41 = arith.constant 1.000000e+00 : f32
    %143 = vector.broadcast %cst_41 : f32 to vector<8x128xf32>
    %144 = arith.addf %143, %142 : vector<8x128xf32>
    %145 = arith.divf %143, %144 : vector<8x128xf32>
    %146 = vector.extract_strided_slice %139 {offsets = [0, 128], sizes = [8, 128], strides = [1, 1]} : vector<8x512xf32> to vector<8x128xf32>
    %147 = arith.negf %146 : vector<8x128xf32>
    %148 = math.exp %147 : vector<8x128xf32>
    %cst_42 = arith.constant 1.000000e+00 : f32
    %149 = vector.broadcast %cst_42 : f32 to vector<8x128xf32>
    %150 = arith.addf %149, %148 : vector<8x128xf32>
    %151 = arith.divf %149, %150 : vector<8x128xf32>
    %152 = vector.extract_strided_slice %139 {offsets = [0, 256], sizes = [8, 128], strides = [1, 1]} : vector<8x512xf32> to vector<8x128xf32>
    %153 = math.tanh %152 : vector<8x128xf32>
    %154 = vector.extract_strided_slice %139 {offsets = [0, 384], sizes = [8, 128], strides = [1, 1]} : vector<8x512xf32> to vector<8x128xf32>
    %155 = arith.negf %154 : vector<8x128xf32>
    %156 = math.exp %155 : vector<8x128xf32>
    %cst_43 = arith.constant 1.000000e+00 : f32
    %157 = vector.broadcast %cst_43 : f32 to vector<8x128xf32>
    %158 = arith.addf %157, %156 : vector<8x128xf32>
    %159 = arith.divf %157, %158 : vector<8x128xf32>
    %160 = arith.mulf %151, %130 : vector<8x128xf32>
    %161 = arith.mulf %145, %153 : vector<8x128xf32>
    %162 = arith.addf %160, %161 : vector<8x128xf32>
    %163 = math.tanh %162 : vector<8x128xf32>
    %164 = arith.mulf %159, %163 : vector<8x128xf32>
    %c5_i32 = arith.constant 5 : i32
    %165 = arith.index_cast %c5_i32 : i32 to index
    %c0_44 = arith.constant 0 : index
    %c0_45 = arith.constant 0 : index
    %166 = vector.load %arg2[%165, %c0_44, %c0_45] : memref<8x8x512xf32, #tpu.memory_space<vmem>>, vector<1x8x512xf32>
    %167 = vector.shape_cast %166 : vector<1x8x512xf32> to vector<8x512xf32>
    %168 = arith.truncf %164 : vector<8x128xf32> to vector<8x128xbf16>
    %c0_46 = arith.constant 0 : index
    %c0_47 = arith.constant 0 : index
    %169 = vector.load %arg3[%c0_46, %c0_47] : memref<128x512xbf16, #tpu.memory_space<vmem>>, vector<128x512xbf16>
    %cst_48 = arith.constant dense<0.000000e+00> : vector<8x512xf32>
    %170 = tpu.matmul %168, %169, %cst_48 {dimension_numbers = #tpu.dot_dimension_numbers<[1], [0], [0], [1], [0, 0, 1, 1], [], []>} : vector<8x128xbf16>, vector<128x512xbf16>, vector<8x512xf32> -> vector<8x512xf32>
    %171 = arith.addf %167, %170 : vector<8x512xf32>
    %172 = vector.extract_strided_slice %171 {offsets = [0, 0], sizes = [8, 128], strides = [1, 1]} : vector<8x512xf32> to vector<8x128xf32>
    %173 = arith.negf %172 : vector<8x128xf32>
    %174 = math.exp %173 : vector<8x128xf32>
    %cst_49 = arith.constant 1.000000e+00 : f32
    %175 = vector.broadcast %cst_49 : f32 to vector<8x128xf32>
    %176 = arith.addf %175, %174 : vector<8x128xf32>
    %177 = arith.divf %175, %176 : vector<8x128xf32>
    %178 = vector.extract_strided_slice %171 {offsets = [0, 128], sizes = [8, 128], strides = [1, 1]} : vector<8x512xf32> to vector<8x128xf32>
    %179 = arith.negf %178 : vector<8x128xf32>
    %180 = math.exp %179 : vector<8x128xf32>
    %cst_50 = arith.constant 1.000000e+00 : f32
    %181 = vector.broadcast %cst_50 : f32 to vector<8x128xf32>
    %182 = arith.addf %181, %180 : vector<8x128xf32>
    %183 = arith.divf %181, %182 : vector<8x128xf32>
    %184 = vector.extract_strided_slice %171 {offsets = [0, 256], sizes = [8, 128], strides = [1, 1]} : vector<8x512xf32> to vector<8x128xf32>
    %185 = math.tanh %184 : vector<8x128xf32>
    %186 = vector.extract_strided_slice %171 {offsets = [0, 384], sizes = [8, 128], strides = [1, 1]} : vector<8x512xf32> to vector<8x128xf32>
    %187 = arith.negf %186 : vector<8x128xf32>
    %188 = math.exp %187 : vector<8x128xf32>
    %cst_51 = arith.constant 1.000000e+00 : f32
    %189 = vector.broadcast %cst_51 : f32 to vector<8x128xf32>
    %190 = arith.addf %189, %188 : vector<8x128xf32>
    %191 = arith.divf %189, %190 : vector<8x128xf32>
    %192 = arith.mulf %183, %162 : vector<8x128xf32>
    %193 = arith.mulf %177, %185 : vector<8x128xf32>
    %194 = arith.addf %192, %193 : vector<8x128xf32>
    %195 = math.tanh %194 : vector<8x128xf32>
    %196 = arith.mulf %191, %195 : vector<8x128xf32>
    %c6_i32 = arith.constant 6 : i32
    %197 = arith.index_cast %c6_i32 : i32 to index
    %c0_52 = arith.constant 0 : index
    %c0_53 = arith.constant 0 : index
    %198 = vector.load %arg2[%197, %c0_52, %c0_53] : memref<8x8x512xf32, #tpu.memory_space<vmem>>, vector<1x8x512xf32>
    %199 = vector.shape_cast %198 : vector<1x8x512xf32> to vector<8x512xf32>
    %200 = arith.truncf %196 : vector<8x128xf32> to vector<8x128xbf16>
    %c0_54 = arith.constant 0 : index
    %c0_55 = arith.constant 0 : index
    %201 = vector.load %arg3[%c0_54, %c0_55] : memref<128x512xbf16, #tpu.memory_space<vmem>>, vector<128x512xbf16>
    %cst_56 = arith.constant dense<0.000000e+00> : vector<8x512xf32>
    %202 = tpu.matmul %200, %201, %cst_56 {dimension_numbers = #tpu.dot_dimension_numbers<[1], [0], [0], [1], [0, 0, 1, 1], [], []>} : vector<8x128xbf16>, vector<128x512xbf16>, vector<8x512xf32> -> vector<8x512xf32>
    %203 = arith.addf %199, %202 : vector<8x512xf32>
    %204 = vector.extract_strided_slice %203 {offsets = [0, 0], sizes = [8, 128], strides = [1, 1]} : vector<8x512xf32> to vector<8x128xf32>
    %205 = arith.negf %204 : vector<8x128xf32>
    %206 = math.exp %205 : vector<8x128xf32>
    %cst_57 = arith.constant 1.000000e+00 : f32
    %207 = vector.broadcast %cst_57 : f32 to vector<8x128xf32>
    %208 = arith.addf %207, %206 : vector<8x128xf32>
    %209 = arith.divf %207, %208 : vector<8x128xf32>
    %210 = vector.extract_strided_slice %203 {offsets = [0, 128], sizes = [8, 128], strides = [1, 1]} : vector<8x512xf32> to vector<8x128xf32>
    %211 = arith.negf %210 : vector<8x128xf32>
    %212 = math.exp %211 : vector<8x128xf32>
    %cst_58 = arith.constant 1.000000e+00 : f32
    %213 = vector.broadcast %cst_58 : f32 to vector<8x128xf32>
    %214 = arith.addf %213, %212 : vector<8x128xf32>
    %215 = arith.divf %213, %214 : vector<8x128xf32>
    %216 = vector.extract_strided_slice %203 {offsets = [0, 256], sizes = [8, 128], strides = [1, 1]} : vector<8x512xf32> to vector<8x128xf32>
    %217 = math.tanh %216 : vector<8x128xf32>
    %218 = vector.extract_strided_slice %203 {offsets = [0, 384], sizes = [8, 128], strides = [1, 1]} : vector<8x512xf32> to vector<8x128xf32>
    %219 = arith.negf %218 : vector<8x128xf32>
    %220 = math.exp %219 : vector<8x128xf32>
    %cst_59 = arith.constant 1.000000e+00 : f32
    %221 = vector.broadcast %cst_59 : f32 to vector<8x128xf32>
    %222 = arith.addf %221, %220 : vector<8x128xf32>
    %223 = arith.divf %221, %222 : vector<8x128xf32>
    %224 = arith.mulf %215, %194 : vector<8x128xf32>
    %225 = arith.mulf %209, %217 : vector<8x128xf32>
    %226 = arith.addf %224, %225 : vector<8x128xf32>
    %227 = math.tanh %226 : vector<8x128xf32>
    %228 = arith.mulf %223, %227 : vector<8x128xf32>
    %c7_i32 = arith.constant 7 : i32
    %229 = arith.index_cast %c7_i32 : i32 to index
    %c0_60 = arith.constant 0 : index
    %c0_61 = arith.constant 0 : index
    %230 = vector.load %arg2[%229, %c0_60, %c0_61] : memref<8x8x512xf32, #tpu.memory_space<vmem>>, vector<1x8x512xf32>
    %231 = vector.shape_cast %230 : vector<1x8x512xf32> to vector<8x512xf32>
    %232 = arith.truncf %228 : vector<8x128xf32> to vector<8x128xbf16>
    %c0_62 = arith.constant 0 : index
    %c0_63 = arith.constant 0 : index
    %233 = vector.load %arg3[%c0_62, %c0_63] : memref<128x512xbf16, #tpu.memory_space<vmem>>, vector<128x512xbf16>
    %cst_64 = arith.constant dense<0.000000e+00> : vector<8x512xf32>
    %234 = tpu.matmul %232, %233, %cst_64 {dimension_numbers = #tpu.dot_dimension_numbers<[1], [0], [0], [1], [0, 0, 1, 1], [], []>} : vector<8x128xbf16>, vector<128x512xbf16>, vector<8x512xf32> -> vector<8x512xf32>
    %235 = arith.addf %231, %234 : vector<8x512xf32>
    %236 = vector.extract_strided_slice %235 {offsets = [0, 0], sizes = [8, 128], strides = [1, 1]} : vector<8x512xf32> to vector<8x128xf32>
    %237 = arith.negf %236 : vector<8x128xf32>
    %238 = math.exp %237 : vector<8x128xf32>
    %cst_65 = arith.constant 1.000000e+00 : f32
    %239 = vector.broadcast %cst_65 : f32 to vector<8x128xf32>
    %240 = arith.addf %239, %238 : vector<8x128xf32>
    %241 = arith.divf %239, %240 : vector<8x128xf32>
    %242 = vector.extract_strided_slice %235 {offsets = [0, 128], sizes = [8, 128], strides = [1, 1]} : vector<8x512xf32> to vector<8x128xf32>
    %243 = arith.negf %242 : vector<8x128xf32>
    %244 = math.exp %243 : vector<8x128xf32>
    %cst_66 = arith.constant 1.000000e+00 : f32
    %245 = vector.broadcast %cst_66 : f32 to vector<8x128xf32>
    %246 = arith.addf %245, %244 : vector<8x128xf32>
    %247 = arith.divf %245, %246 : vector<8x128xf32>
    %248 = vector.extract_strided_slice %235 {offsets = [0, 256], sizes = [8, 128], strides = [1, 1]} : vector<8x512xf32> to vector<8x128xf32>
    %249 = math.tanh %248 : vector<8x128xf32>
    %250 = vector.extract_strided_slice %235 {offsets = [0, 384], sizes = [8, 128], strides = [1, 1]} : vector<8x512xf32> to vector<8x128xf32>
    %251 = arith.negf %250 : vector<8x128xf32>
    %252 = math.exp %251 : vector<8x128xf32>
    %cst_67 = arith.constant 1.000000e+00 : f32
    %253 = vector.broadcast %cst_67 : f32 to vector<8x128xf32>
    %254 = arith.addf %253, %252 : vector<8x128xf32>
    %255 = arith.divf %253, %254 : vector<8x128xf32>
    %256 = arith.mulf %247, %226 : vector<8x128xf32>
    %257 = arith.mulf %241, %249 : vector<8x128xf32>
    %258 = arith.addf %256, %257 : vector<8x128xf32>
    %259 = math.tanh %258 : vector<8x128xf32>
    %260 = arith.mulf %255, %259 : vector<8x128xf32>
    %c8_i32 = arith.constant 8 : i32
    %c0_68 = arith.constant 0 : index
    %c0_69 = arith.constant 0 : index
    %261 = vector.load %arg7[%c0_68, %c0_69] : memref<8x128xf32, #tpu.memory_space<vmem>>, vector<8x128xf32>
    tpu.vector_store %arg7[%c0_68, %c0_69], %260 {strides = array<i32>} : memref<8x128xf32, #tpu.memory_space<vmem>>, vector<8x128xf32>,
    %c0_70 = arith.constant 0 : index
    %c0_71 = arith.constant 0 : index
    %262 = vector.load %arg8[%c0_70, %c0_71] : memref<8x128xf32, #tpu.memory_space<vmem>>, vector<8x128xf32>
    tpu.vector_store %arg8[%c0_70, %c0_71], %258 {strides = array<i32>} : memref<8x128xf32, #tpu.memory_space<vmem>>, vector<8x128xf32>,
    %c0_i32_72 = arith.constant 0 : i32
    %263 = arith.cmpi eq, %arg1, %c0_i32_72 : i32
    %264 = arith.extui %263 : i1 to i32
    %c0_i32_73 = arith.constant 0 : i32
    %265 = arith.cmpi ne, %264, %c0_i32_73 : i32
    scf.if %265 {
      %266 = arith.truncf %260 : vector<8x128xf32> to vector<8x128xbf16>
      %c0_74 = arith.constant 0 : index
      %c0_75 = arith.constant 0 : index
      %267 = vector.load %arg4[%c0_74, %c0_75] : memref<128x128xbf16, #tpu.memory_space<vmem>>, vector<128x128xbf16>
      %cst_76 = arith.constant dense<0.000000e+00> : vector<8x128xf32>
      %268 = tpu.matmul %266, %267, %cst_76 {dimension_numbers = #tpu.dot_dimension_numbers<[1], [0], [0], [1], [0, 0, 1, 1], [], []>} : vector<8x128xbf16>, vector<128x128xbf16>, vector<8x128xf32> -> vector<8x128xf32>
      %c0_77 = arith.constant 0 : index
      %c0_78 = arith.constant 0 : index
      %269 = vector.load %arg5[%c0_77, %c0_78] : memref<1x128xf32, #tpu.memory_space<vmem>>, vector<1x128xf32>
      %270 = vector.broadcast %269 : vector<1x128xf32> to vector<8x128xf32>
      %271 = arith.addf %268, %270 : vector<8x128xf32>
      %c0_79 = arith.constant 0 : index
      %c0_80 = arith.constant 0 : index
      %272 = vector.load %arg6[%c0_79, %c0_80] : memref<8x128xf32, #tpu.memory_space<vmem>>, vector<8x128xf32>
      tpu.vector_store %arg6[%c0_79, %c0_80], %271 {strides = array<i32>} : memref<8x128xf32, #tpu.memory_space<vmem>>, vector<8x128xf32>,
    } else {
    }
    return
  }
  func.func @transform_0(%arg0: i32, %arg1: i32) -> (i32, i32, i32) {
    %c0_i32 = arith.constant 0 : i32
    %c0_i32_0 = arith.constant 0 : i32
    return %arg1, %arg0, %c0_i32 : i32, i32, i32
  }
  func.func @transform_1(%arg0: i32, %arg1: i32) -> (i32, i32) {
    %c0_i32 = arith.constant 0 : i32
    %c0_i32_0 = arith.constant 0 : i32
    %c0_i32_1 = arith.constant 0 : i32
    return %c0_i32, %c0_i32_0 : i32, i32
  }
  func.func @transform_2(%arg0: i32, %arg1: i32) -> (i32, i32) {
    %c0_i32 = arith.constant 0 : i32
    %c0_i32_0 = arith.constant 0 : i32
    %c0_i32_1 = arith.constant 0 : i32
    return %c0_i32, %c0_i32_0 : i32, i32
  }
  func.func @transform_3(%arg0: i32, %arg1: i32) -> (i32, i32) {
    %c0_i32 = arith.constant 0 : i32
    %c0_i32_0 = arith.constant 0 : i32
    %c0_i32_1 = arith.constant 0 : i32
    return %c0_i32, %c0_i32_0 : i32, i32
  }
  func.func @transform_4(%arg0: i32, %arg1: i32) -> (i32, i32) {
    %c0_i32 = arith.constant 0 : i32
    %c0_i32_0 = arith.constant 0 : i32
    return %arg0, %c0_i32 : i32, i32
  }
}

</mosaic_0001>

<llo_original>
// kernel: rnn_classifier_forward.1
$region0: #{rnn_classifier_forward.1}
  #allocation0 [shape = 'u32[]', space=smem, size = 0x4, offset = 0x4, fixed_abs, tag = 'smem constant byte address 0x4 - core index']
  #allocation1 [shape = 'u32[144,128]{1,0:T(1,128)}', space=vmem, size = 0x12000, scoped, tag = 'internal scratch']
  #allocation2 [shape = 'f32[8,128]{1,0:T(8,128)}', space=vmem, size = 0x1000, scoped, tag = 'scratch operand']
  #allocation3 [shape = 'f32[8,128]{1,0:T(8,128)}', space=vmem, size = 0x1000, scoped, tag = 'scratch operand']
  %s0 = inlined_call_operand.vmem [shape: f32[8,8,512], index: 0, kind: input, shape index: {}]
  %s1 = inlined_call_operand.vmem [shape: bf16[128,512], index: 1, kind: input, shape index: {}]
  %s2 = inlined_call_operand.vmem [shape: bf16[128,128], index: 2, kind: input, shape index: {}]
  %s3 = inlined_call_operand.vmem [shape: f32[1,128], index: 3, kind: input, shape index: {}]
  %s4 = inlined_call_operand.vmem [shape: f32[8,128], index: 4, kind: output, shape index: {}]
  %s5 = sld [smem:[#allocation0]]
  $region34: #{rnn_classifier_forward.1} parent=0
    _
  %s7 = ssub.s32 1, %s5
  %s8 = scalar_select 0, %s7, %s5
  // Predicated region
  $region2: #{rnn_classifier_forward.1} parent=0 // pred_check
    _
  $region3: #{rnn_classifier_forward.1} parent=0 // pred_check_branch
    %10 = sbr.rel (0) target = $region5
  $region4: #{rnn_classifier_forward.1} parent=0 // pred_region
    _
  $region5: #{rnn_classifier_forward.1} parent=0 // pred_fallthru
    _
  // Predicated region
  $region6: #{rnn_classifier_forward.1} parent=0 // pred_check
    _
  $region7: #{rnn_classifier_forward.1} parent=0 // pred_check_branch
    %12 = sbr.rel (0) target = $region9
  $region8: #{rnn_classifier_forward.1} parent=0 // pred_region
    _
  $region9: #{rnn_classifier_forward.1} parent=0 // pred_fallthru
    _
  // Predicated region
  $region10: #{rnn_classifier_forward.1} parent=0 // pred_check
    _
  $region11: #{rnn_classifier_forward.1} parent=0 // pred_check_branch
    %14 = sbr.rel (0) target = $region13
  $region12: #{rnn_classifier_forward.1} parent=0 // pred_region
    _
  $region13: #{rnn_classifier_forward.1} parent=0 // pred_fallthru
    _
  // Predicated region
  $region14: #{rnn_classifier_forward.1} parent=0 // pred_check
    _
  $region15: #{rnn_classifier_forward.1} parent=0 // pred_check_branch
    %16 = sbr.rel (0) target = $region17
  $region16: #{rnn_classifier_forward.1} parent=0 // pred_region
    _
  $region17: #{rnn_classifier_forward.1} parent=0 // pred_fallthru
    _
  %p18 = scmp.eq.s32.totalorder 0, 0
  // Predicated region
  $region18: #{rnn_classifier_forward.1} parent=0 // pred_check
    %p19 = pneg %p18
  $region19: #{rnn_classifier_forward.1} parent=0 // pred_check_branch
    %21 = sbr.rel (%p19) target = $region21
  $region20: #{rnn_classifier_forward.1} parent=0 // pred_region
    %22 = vst [vmem:[#allocation2] sm:$0xff] 0.0
    %23 = vst [vmem:[#allocation3] sm:$0xff] 0.0
  $region21: #{rnn_classifier_forward.1} parent=0 // pred_fallthru
    _
  %v24 = vld [vmem:[#allocation2] sm:$0xff]
  %v25 = vld [vmem:[#allocation3] sm:$0xff]
  %v26 = vld [vmem:[%s0] sm:$0xff]
  %v27 = vld [vmem:[%s0 + $0x8] sm:$0xff]
  %v28 = vld [vmem:[%s0 + $0x10] sm:$0xff]
  %v29 = vld [vmem:[%s0 + $0x18] sm:$0xff]
  %v30 = vpack.c.bf16 %v24, %v24
  %v31 = vld [vmem:[%s1] sm:$0xff]
  %v32 = vld [vmem:[%s1 + $0x8] sm:$0xff]
  %v33 = vld [vmem:[%s1 + $0x10] sm:$0xff]
  %v34 = vld [vmem:[%s1 + $0x18] sm:$0xff]
  %v35 = vld [vmem:[%s1 + $0x20] sm:$0xff]
  %v36 = vld [vmem:[%s1 + $0x28] sm:$0xff]
  %v37 = vld [vmem:[%s1 + $0x30] sm:$0xff]
  %v38 = vld [vmem:[%s1 + $0x38] sm:$0xff]
  %v39 = vld [vmem:[%s1 + $0x40] sm:$0xff]
  %v40 = vld [vmem:[%s1 + $0x48] sm:$0xff]
  %v41 = vld [vmem:[%s1 + $0x50] sm:$0xff]
  %v42 = vld [vmem:[%s1 + $0x58] sm:$0xff]
  %v43 = vld [vmem:[%s1 + $0x60] sm:$0xff]
  %v44 = vld [vmem:[%s1 + $0x68] sm:$0xff]
  %v45 = vld [vmem:[%s1 + $0x70] sm:$0xff]
  %v46 = vld [vmem:[%s1 + $0x78] sm:$0xff]
  %v47 = vld [vmem:[%s1 + $0x80] sm:$0xff]
  %v48 = vld [vmem:[%s1 + $0x88] sm:$0xff]
  %v49 = vld [vmem:[%s1 + $0x90] sm:$0xff]
  %v50 = vld [vmem:[%s1 + $0x98] sm:$0xff]
  %v51 = vld [vmem:[%s1 + $0xa0] sm:$0xff]
  %v52 = vld [vmem:[%s1 + $0xa8] sm:$0xff]
  %v53 = vld [vmem:[%s1 + $0xb0] sm:$0xff]
  %v54 = vld [vmem:[%s1 + $0xb8] sm:$0xff]
  %v55 = vld [vmem:[%s1 + $0xc0] sm:$0xff]
  %v56 = vld [vmem:[%s1 + $0xc8] sm:$0xff]
  %v57 = vld [vmem:[%s1 + $0xd0] sm:$0xff]
  %v58 = vld [vmem:[%s1 + $0xd8] sm:$0xff]
  %v59 = vld [vmem:[%s1 + $0xe0] sm:$0xff]
  %v60 = vld [vmem:[%s1 + $0xe8] sm:$0xff]
  %v61 = vld [vmem:[%s1 + $0xf0] sm:$0xff]
  %v62 = vld [vmem:[%s1 + $0xf8] sm:$0xff]
  %v95 = vunpack.c.l.b16 %v31
  %v96 = vunpack.c.h.b16 %v31
  %v97 = vunpack.c.l.b16 %v32
  %v98 = vunpack.c.h.b16 %v32
  %v99 = vunpack.c.l.b16 %v33
  %v100 = vunpack.c.h.b16 %v33
  %v101 = vunpack.c.l.b16 %v34
  %v102 = vunpack.c.h.b16 %v34
  %v103 = vunpack.c.l.b16 %v35
  %v104 = vunpack.c.h.b16 %v35
  %v105 = vunpack.c.l.b16 %v36
  %v106 = vunpack.c.h.b16 %v36
  %v107 = vunpack.c.l.b16 %v37
  %v108 = vunpack.c.h.b16 %v37
  %v109 = vunpack.c.l.b16 %v38
  %v110 = vunpack.c.h.b16 %v38
  %v111 = vunpack.c.l.b16 %v39
  %v112 = vunpack.c.h.b16 %v39
  %v113 = vunpack.c.l.b16 %v40
  %v114 = vunpack.c.h.b16 %v40
  %v115 = vunpack.c.l.b16 %v41
  %v116 = vunpack.c.h.b16 %v41
  %v117 = vunpack.c.l.b16 %v42
  %v118 = vunpack.c.h.b16 %v42
  %v119 = vunpack.c.l.b16 %v43
  %v120 = vunpack.c.h.b16 %v43
  %v121 = vunpack.c.l.b16 %v44
  %v122 = vunpack.c.h.b16 %v44
  %v123 = vunpack.c.l.b16 %v45
  %v124 = vunpack.c.h.b16 %v45
  %v125 = vunpack.c.l.b16 %v46
  %v126 = vunpack.c.h.b16 %v46
  %v127 = vunpack.c.l.b16 %v47
  %v128 = vunpack.c.h.b16 %v47
  %v129 = vunpack.c.l.b16 %v48
  %v130 = vunpack.c.h.b16 %v48
  %v131 = vunpack.c.l.b16 %v49
  %v132 = vunpack.c.h.b16 %v49
  %v133 = vunpack.c.l.b16 %v50
  %v134 = vunpack.c.h.b16 %v50
  %v135 = vunpack.c.l.b16 %v51
  %v136 = vunpack.c.h.b16 %v51
  %v137 = vunpack.c.l.b16 %v52
  %v138 = vunpack.c.h.b16 %v52
  %v139 = vunpack.c.l.b16 %v53
  %v140 = vunpack.c.h.b16 %v53
  %v141 = vunpack.c.l.b16 %v54
  %v142 = vunpack.c.h.b16 %v54
  %v143 = vunpack.c.l.b16 %v55
  %v144 = vunpack.c.h.b16 %v55
  %v145 = vunpack.c.l.b16 %v56
  %v146 = vunpack.c.h.b16 %v56
  %v147 = vunpack.c.l.b16 %v57
  %v148 = vunpack.c.h.b16 %v57
  %v149 = vunpack.c.l.b16 %v58
  %v150 = vunpack.c.h.b16 %v58
  %v151 = vunpack.c.l.b16 %v59
  %v152 = vunpack.c.h.b16 %v59
  %v153 = vunpack.c.l.b16 %v60
  %v154 = vunpack.c.h.b16 %v60
  %v155 = vunpack.c.l.b16 %v61
  %v156 = vunpack.c.h.b16 %v61
  %v157 = vunpack.c.l.b16 %v62
  %v158 = vunpack.c.h.b16 %v62
  %v159 = vpack.c.b16 %v99, %v95
  %v160 = vpack.c.b16 %v100, %v96
  %v161 = vpack.c.b16 %v101, %v97
  %v162 = vpack.c.b16 %v102, %v98
  %v163 = vpack.c.b16 %v107, %v103
  %v164 = vpack.c.b16 %v108, %v104
  %v165 = vpack.c.b16 %v109, %v105
  %v166 = vpack.c.b16 %v110, %v106
  %v167 = vpack.c.b16 %v115, %v111
  %v168 = vpack.c.b16 %v116, %v112
  %v169 = vpack.c.b16 %v117, %v113
  %v170 = vpack.c.b16 %v118, %v114
  %v171 = vpack.c.b16 %v123, %v119
  %v172 = vpack.c.b16 %v124, %v120
  %v173 = vpack.c.b16 %v125, %v121
  %v174 = vpack.c.b16 %v126, %v122
  %v175 = vpack.c.b16 %v131, %v127
  %v176 = vpack.c.b16 %v132, %v128
  %v177 = vpack.c.b16 %v133, %v129
  %v178 = vpack.c.b16 %v134, %v130
  %v179 = vpack.c.b16 %v139, %v135
  %v180 = vpack.c.b16 %v140, %v136
  %v181 = vpack.c.b16 %v141, %v137
  %v182 = vpack.c.b16 %v142, %v138
  %v183 = vpack.c.b16 %v147, %v143
  %v184 = vpack.c.b16 %v148, %v144
  %v185 = vpack.c.b16 %v149, %v145
  %v186 = vpack.c.b16 %v150, %v146
  %v187 = vpack.c.b16 %v155, %v151
  %v188 = vpack.c.b16 %v156, %v152
  %v189 = vpack.c.b16 %v157, %v153
  %v190 = vpack.c.b16 %v158, %v154
  %223 = vmatprep.subr.bf16.mxu0 %v160
  %224 = vmatpush1.bf16.msra.mxu0 %v159
  %225 = vmatprep.subr.bf16.mxu0 %v164
  %226 = vmatpush1.bf16.msra.mxu0 %v163
  %227 = vmatprep.subr.bf16.mxu0 %v168
  %228 = vmatpush1.bf16.msra.mxu0 %v167
  %229 = vmatprep.subr.bf16.mxu0 %v172
  %230 = vmatpush1.bf16.msra.mxu0 %v171
  %231 = vmatprep.subr.bf16.mxu0 %v176
  %232 = vmatpush1.bf16.msra.mxu0 %v175
  %233 = vmatprep.subr.bf16.mxu0 %v180
  %234 = vmatpush1.bf16.msra.mxu0 %v179
  %235 = vmatprep.subr.bf16.mxu0 %v184
  %236 = vmatpush1.bf16.msra.mxu0 %v183
  %237 = vmatprep.subr.bf16.mxu0 %v188
  %238 = vmatpush1.bf16.msra.mxu0 %v187
  %239 = vmatprep.subr.bf16.mxu0 0
  %240 = vmatpush1.bf16.msra.mxu0 0
  %241 = vmatprep.subr.bf16.mxu0 0
  %242 = vmatpush1.bf16.msra.mxu0 0
  %243 = vmatprep.subr.bf16.mxu0 0
  %244 = vmatpush1.bf16.msra.mxu0 0
  %245 = vmatprep.subr.bf16.mxu0 0
  %246 = vmatpush1.bf16.msra.mxu0 0
  %247 = vmatprep.subr.bf16.mxu0 0
  %248 = vmatpush1.bf16.msra.mxu0 0
  %249 = vmatprep.subr.bf16.mxu0 0
  %250 = vmatpush1.bf16.msra.mxu0 0
  %251 = vmatprep.subr.bf16.mxu0 0
  %252 = vmatpush1.bf16.msra.mxu0 0
  %253 = vmatprep.subr.bf16.mxu0 0
  %254 = vmatpush1.bf16.msra.mxu0 0
  %255 = vmatprep.mubr.bf16.mxu0 0
  %256 = vmatmul.mubr.bf16.gmra.mrb[0].mxu0 %v30
  %v257 = vpop.f32.mrb[0].mxu0
  %v258 = vadd.f32 0.0, %v257
  %v259 = vpop.f32.mrb[0].mxu0
  %v260 = vadd.f32 0.0, %v259
  %v261 = vpop.f32.mrb[0].mxu0
  %v262 = vpop.f32.mrb[0].mxu0
  %263 = vdwg.mxu0
  %264 = vmatprep.subr.bf16.mxu0 %v162
  %265 = vmatpush1.bf16.msra.mxu0 %v161
  %266 = vmatprep.subr.bf16.mxu0 %v166
  %267 = vmatpush1.bf16.msra.mxu0 %v165
  %268 = vmatprep.subr.bf16.mxu0 %v170
  %269 = vmatpush1.bf16.msra.mxu0 %v169
  %270 = vmatprep.subr.bf16.mxu0 %v174
  %271 = vmatpush1.bf16.msra.mxu0 %v173
  %272 = vmatprep.subr.bf16.mxu0 %v178
  %273 = vmatpush1.bf16.msra.mxu0 %v177
  %274 = vmatprep.subr.bf16.mxu0 %v182
  %275 = vmatpush1.bf16.msra.mxu0 %v181
  %276 = vmatprep.subr.bf16.mxu0 %v186
  %277 = vmatpush1.bf16.msra.mxu0 %v185
  %278 = vmatprep.subr.bf16.mxu0 %v190
  %279 = vmatpush1.bf16.msra.mxu0 %v189
  %280 = vmatprep.subr.bf16.mxu0 0
  %281 = vmatpush1.bf16.msra.mxu0 0
  %282 = vmatprep.subr.bf16.mxu0 0
  %283 = vmatpush1.bf16.msra.mxu0 0
  %284 = vmatprep.subr.bf16.mxu0 0
  %285 = vmatpush1.bf16.msra.mxu0 0
  %286 = vmatprep.subr.bf16.mxu0 0
  %287 = vmatpush1.bf16.msra.mxu0 0
  %288 = vmatprep.subr.bf16.mxu0 0
  %289 = vmatpush1.bf16.msra.mxu0 0
  %290 = vmatprep.subr.bf16.mxu0 0
  %291 = vmatpush1.bf16.msra.mxu0 0
  %292 = vmatprep.subr.bf16.mxu0 0
  %293 = vmatpush1.bf16.msra.mxu0 0
  %294 = vmatprep.subr.bf16.mxu0 0
  %295 = vmatpush1.bf16.msra.mxu0 0
  %296 = vmatprep.mubr.bf16.mxu0 0
  %297 = vmatmul.mubr.bf16.gmra.mrb[0].mxu0 %v30
  %v298 = vpop.f32.mrb[0].mxu0
  %v299 = vadd.f32 0.0, %v298
  %v300 = vpop.f32.mrb[0].mxu0
  %v301 = vadd.f32 0.0, %v300
  %v302 = vpop.f32.mrb[0].mxu0
  %v303 = vpop.f32.mrb[0].mxu0
  %304 = vdwg.mxu0
  %v305 = vadd.f32 %v26, %v258
  %v306 = vadd.f32 %v27, %v260
  %v307 = vadd.f32 %v28, %v299
  %v308 = vadd.f32 %v29, %v301
  %v309 = vxor.u32 %v305, 2147483648
  %v310 = vmul.f32 %v309, 1.442695
  %v311 = vpow.pop %v310
  %v312 = vadd.f32 %v311, 1.0
  %v313 = vrcp.pop %v312
  %v314 = vmul.f32 1.0, %v313
  %v315 = vxor.u32 %v306, 2147483648
  %v316 = vmul.f32 %v315, 1.442695
  %v317 = vpow.pop %v316
  %v318 = vadd.f32 %v317, 1.0
  %v319 = vrcp.pop %v318
  %v320 = vmul.f32 1.0, %v319
  %v321 = vtanh.pop %v307
  %v322 = vxor.u32 %v308, 2147483648
  %v323 = vmul.f32 %v322, 1.442695
  %v324 = vpow.pop %v323
  %v325 = vadd.f32 %v324, 1.0
  %v326 = vrcp.pop %v325
  %v327 = vmul.f32 1.0, %v326
  %v328 = vmul.f32 %v320, %v25
  %v329 = vmul.f32 %v314, %v321
  %v330 = vadd.f32 %v328, %v329
  %v331 = vtanh.pop %v330
  %v332 = vmul.f32 %v327, %v331
  %s333 = scalar_lea.vmem %s0, 32
  %v334 = vld [vmem:[%s333] sm:$0xff]
  %v335 = vld [vmem:[%s333 + $0x8] sm:$0xff]
  %v336 = vld [vmem:[%s333 + $0x10] sm:$0xff]
  %v337 = vld [vmem:[%s333 + $0x18] sm:$0xff]
  %v338 = vpack.c.bf16 %v332, %v332
  %339 = vmatprep.subr.bf16.mxu0 %v160
  %340 = vmatpush1.bf16.msra.mxu0 %v159
  %341 = vmatprep.subr.bf16.mxu0 %v164
  %342 = vmatpush1.bf16.msra.mxu0 %v163
  %343 = vmatprep.subr.bf16.mxu0 %v168
  %344 = vmatpush1.bf16.msra.mxu0 %v167
  %345 = vmatprep.subr.bf16.mxu0 %v172
  %346 = vmatpush1.bf16.msra.mxu0 %v171
  %347 = vmatprep.subr.bf16.mxu0 %v176
  %348 = vmatpush1.bf16.msra.mxu0 %v175
  %349 = vmatprep.subr.bf16.mxu0 %v180
  %350 = vmatpush1.bf16.msra.mxu0 %v179
  %351 = vmatprep.subr.bf16.mxu0 %v184
  %352 = vmatpush1.bf16.msra.mxu0 %v183
  %353 = vmatprep.subr.bf16.mxu0 %v188
  %354 = vmatpush1.bf16.msra.mxu0 %v187
  %355 = vmatprep.subr.bf16.mxu0 0
  %356 = vmatpush1.bf16.msra.mxu0 0
  %357 = vmatprep.subr.bf16.mxu0 0
  %358 = vmatpush1.bf16.msra.mxu0 0
  %359 = vmatprep.subr.bf16.mxu0 0
  %360 = vmatpush1.bf16.msra.mxu0 0
  %361 = vmatprep.subr.bf16.mxu0 0
  %362 = vmatpush1.bf16.msra.mxu0 0
  %363 = vmatprep.subr.bf16.mxu0 0
  %364 = vmatpush1.bf16.msra.mxu0 0
  %365 = vmatprep.subr.bf16.mxu0 0
  %366 = vmatpush1.bf16.msra.mxu0 0
  %367 = vmatprep.subr.bf16.mxu0 0
  %368 = vmatpush1.bf16.msra.mxu0 0
  %369 = vmatprep.subr.bf16.mxu0 0
  %370 = vmatpush1.bf16.msra.mxu0 0
  %371 = vmatprep.mubr.bf16.mxu0 0
  %372 = vmatmul.mubr.bf16.gmra.mrb[0].mxu0 %v338
  %v373 = vpop.f32.mrb[0].mxu0
  %v374 = vadd.f32 0.0, %v373
  %v375 = vpop.f32.mrb[0].mxu0
  %v376 = vadd.f32 0.0, %v375
  %v377 = vpop.f32.mrb[0].mxu0
  %v378 = vpop.f32.mrb[0].mxu0
  %379 = vdwg.mxu0
  %380 = vmatprep.subr.bf16.mxu0 %v162
  %381 = vmatpush1.bf16.msra.mxu0 %v161
  %382 = vmatprep.subr.bf16.mxu0 %v166
  %383 = vmatpush1.bf16.msra.mxu0 %v165
  %384 = vmatprep.subr.bf16.mxu0 %v170
  %385 = vmatpush1.bf16.msra.mxu0 %v169
  %386 = vmatprep.subr.bf16.mxu0 %v174
  %387 = vmatpush1.bf16.msra.mxu0 %v173
  %388 = vmatprep.subr.bf16.mxu0 %v178
  %389 = vmatpush1.bf16.msra.mxu0 %v177
  %390 = vmatprep.subr.bf16.mxu0 %v182
  %391 = vmatpush1.bf16.msra.mxu0 %v181
  %392 = vmatprep.subr.bf16.mxu0 %v186
  %393 = vmatpush1.bf16.msra.mxu0 %v185
  %394 = vmatprep.subr.bf16.mxu0 %v190
  %395 = vmatpush1.bf16.msra.mxu0 %v189
  %396 = vmatprep.subr.bf16.mxu0 0
  %397 = vmatpush1.bf16.msra.mxu0 0
  %398 = vmatprep.subr.bf16.mxu0 0
  %399 = vmatpush1.bf16.msra.mxu0 0
  %400 = vmatprep.subr.bf16.mxu0 0
  %401 = vmatpush1.bf16.msra.mxu0 0
  %402 = vmatprep.subr.bf16.mxu0 0
  %403 = vmatpush1.bf16.msra.mxu0 0
  %404 = vmatprep.subr.bf16.mxu0 0
  %405 = vmatpush1.bf16.msra.mxu0 0
  %406 = vmatprep.subr.bf16.mxu0 0
  %407 = vmatpush1.bf16.msra.mxu0 0
  %408 = vmatprep.subr.bf16.mxu0 0
  %409 = vmatpush1.bf16.msra.mxu0 0
  %410 = vmatprep.subr.bf16.mxu0 0
  %411 = vmatpush1.bf16.msra.mxu0 0
  %412 = vmatprep.mubr.bf16.mxu0 0
  %413 = vmatmul.mubr.bf16.gmra.mrb[0].mxu0 %v338
  %v414 = vpop.f32.mrb[0].mxu0
  %v415 = vadd.f32 0.0, %v414
  %v416 = vpop.f32.mrb[0].mxu0
  %v417 = vadd.f32 0.0, %v416
  %v418 = vpop.f32.mrb[0].mxu0
  %v419 = vpop.f32.mrb[0].mxu0
  %420 = vdwg.mxu0
  %v421 = vadd.f32 %v334, %v374
  %v422 = vadd.f32 %v335, %v376
  %v423 = vadd.f32 %v336, %v415
  %v424 = vadd.f32 %v337, %v417
  %v425 = vxor.u32 %v421, 2147483648
  %v426 = vmul.f32 %v425, 1.442695
  %v427 = vpow.pop %v426
  %v428 = vadd.f32 %v427, 1.0
  %v429 = vrcp.pop %v428
  %v430 = vmul.f32 1.0, %v429
  %v431 = vxor.u32 %v422, 2147483648
  %v432 = vmul.f32 %v431, 1.442695
  %v433 = vpow.pop %v432
  %v434 = vadd.f32 %v433, 1.0
  %v435 = vrcp.pop %v434
  %v436 = vmul.f32 1.0, %v435
  %v437 = vtanh.pop %v423
  %v438 = vxor.u32 %v424, 2147483648
  %v439 = vmul.f32 %v438, 1.442695
  %v440 = vpow.pop %v439
  %v441 = vadd.f32 %v440, 1.0
  %v442 = vrcp.pop %v441
  %v443 = vmul.f32 1.0, %v442
  %v444 = vmul.f32 %v436, %v330
  %v445 = vmul.f32 %v430, %v437
  %v446 = vadd.f32 %v444, %v445
  %v447 = vtanh.pop %v446
  %v448 = vmul.f32 %v443, %v447
  %s449 = scalar_lea.vmem %s0, 64
  %v450 = vld [vmem:[%s449] sm:$0xff]
  %v451 = vld [vmem:[%s449 + $0x8] sm:$0xff]
  %v452 = vld [vmem:[%s449 + $0x10] sm:$0xff]
  %v453 = vld [vmem:[%s449 + $0x18] sm:$0xff]
  %v454 = vpack.c.bf16 %v448, %v448
  %455 = vmatprep.subr.bf16.mxu0 %v160
  %456 = vmatpush1.bf16.msra.mxu0 %v159
  %457 = vmatprep.subr.bf16.mxu0 %v164
  %458 = vmatpush1.bf16.msra.mxu0 %v163
  %459 = vmatprep.subr.bf16.mxu0 %v168
  %460 = vmatpush1.bf16.msra.mxu0 %v167
  %461 = vmatprep.subr.bf16.mxu0 %v172
  %462 = vmatpush1.bf16.msra.mxu0 %v171
  %463 = vmatprep.subr.bf16.mxu0 %v176
  %464 = vmatpush1.bf16.msra.mxu0 %v175
  %465 = vmatprep.subr.bf16.mxu0 %v180
  %466 = vmatpush1.bf16.msra.mxu0 %v179
  %467 = vmatprep.subr.bf16.mxu0 %v184
  %468 = vmatpush1.bf16.msra.mxu0 %v183
  %469 = vmatprep.subr.bf16.mxu0 %v188
  %470 = vmatpush1.bf16.msra.mxu0 %v187
  %471 = vmatprep.subr.bf16.mxu0 0
  %472 = vmatpush1.bf16.msra.mxu0 0
  %473 = vmatprep.subr.bf16.mxu0 0
  %474 = vmatpush1.bf16.msra.mxu0 0
  %475 = vmatprep.subr.bf16.mxu0 0
  %476 = vmatpush1.bf16.msra.mxu0 0
  %477 = vmatprep.subr.bf16.mxu0 0
  %478 = vmatpush1.bf16.msra.mxu0 0
  %479 = vmatprep.subr.bf16.mxu0 0
  %480 = vmatpush1.bf16.msra.mxu0 0
  %481 = vmatprep.subr.bf16.mxu0 0
  %482 = vmatpush1.bf16.msra.mxu0 0
  %483 = vmatprep.subr.bf16.mxu0 0
  %484 = vmatpush1.bf16.msra.mxu0 0
  %485 = vmatprep.subr.bf16.mxu0 0
  %486 = vmatpush1.bf16.msra.mxu0 0
  %487 = vmatprep.mubr.bf16.mxu0 0
  %488 = vmatmul.mubr.bf16.gmra.mrb[0].mxu0 %v454
  %v489 = vpop.f32.mrb[0].mxu0
  %v490 = vadd.f32 0.0, %v489
  %v491 = vpop.f32.mrb[0].mxu0
  %v492 = vadd.f32 0.0, %v491
  %v493 = vpop.f32.mrb[0].mxu0
  %v494 = vpop.f32.mrb[0].mxu0
  %495 = vdwg.mxu0
  %496 = vmatprep.subr.bf16.mxu0 %v162
  %497 = vmatpush1.bf16.msra.mxu0 %v161
  %498 = vmatprep.subr.bf16.mxu0 %v166
  %499 = vmatpush1.bf16.msra.mxu0 %v165
  %500 = vmatprep.subr.bf16.mxu0 %v170
  %501 = vmatpush1.bf16.msra.mxu0 %v169
  %502 = vmatprep.subr.bf16.mxu0 %v174
  %503 = vmatpush1.bf16.msra.mxu0 %v173
  %504 = vmatprep.subr.bf16.mxu0 %v178
  %505 = vmatpush1.bf16.msra.mxu0 %v177
  %506 = vmatprep.subr.bf16.mxu0 %v182
  %507 = vmatpush1.bf16.msra.mxu0 %v181
  %508 = vmatprep.subr.bf16.mxu0 %v186
  %509 = vmatpush1.bf16.msra.mxu0 %v185
  %510 = vmatprep.subr.bf16.mxu0 %v190
  %511 = vmatpush1.bf16.msra.mxu0 %v189
  %512 = vmatprep.subr.bf16.mxu0 0
  %513 = vmatpush1.bf16.msra.mxu0 0
  %514 = vmatprep.subr.bf16.mxu0 0
  %515 = vmatpush1.bf16.msra.mxu0 0
  %516 = vmatprep.subr.bf16.mxu0 0
  %517 = vmatpush1.bf16.msra.mxu0 0
  %518 = vmatprep.subr.bf16.mxu0 0
  %519 = vmatpush1.bf16.msra.mxu0 0
  %520 = vmatprep.subr.bf16.mxu0 0
  %521 = vmatpush1.bf16.msra.mxu0 0
  %522 = vmatprep.subr.bf16.mxu0 0
  %523 = vmatpush1.bf16.msra.mxu0 0
  %524 = vmatprep.subr.bf16.mxu0 0
  %525 = vmatpush1.bf16.msra.mxu0 0
  %526 = vmatprep.subr.bf16.mxu0 0
  %527 = vmatpush1.bf16.msra.mxu0 0
  %528 = vmatprep.mubr.bf16.mxu0 0
  %529 = vmatmul.mubr.bf16.gmra.mrb[0].mxu0 %v454
  %v530 = vpop.f32.mrb[0].mxu0
  %v531 = vadd.f32 0.0, %v530
  %v532 = vpop.f32.mrb[0].mxu0
  %v533 = vadd.f32 0.0, %v532
  %v534 = vpop.f32.mrb[0].mxu0
  %v535 = vpop.f32.mrb[0].mxu0
  %536 = vdwg.mxu0
  %v537 = vadd.f32 %v450, %v490
  %v538 = vadd.f32 %v451, %v492
  %v539 = vadd.f32 %v452, %v531
  %v540 = vadd.f32 %v453, %v533
  %v541 = vxor.u32 %v537, 2147483648
  %v542 = vmul.f32 %v541, 1.442695
  %v543 = vpow.pop %v542
  %v544 = vadd.f32 %v543, 1.0
  %v545 = vrcp.pop %v544
  %v546 = vmul.f32 1.0, %v545
  %v547 = vxor.u32 %v538, 2147483648
  %v548 = vmul.f32 %v547, 1.442695
  %v549 = vpow.pop %v548
  %v550 = vadd.f32 %v549, 1.0
  %v551 = vrcp.pop %v550
  %v552 = vmul.f32 1.0, %v551
  %v553 = vtanh.pop %v539
  %v554 = vxor.u32 %v540, 2147483648
  %v555 = vmul.f32 %v554, 1.442695
  %v556 = vpow.pop %v555
  %v557 = vadd.f32 %v556, 1.0
  %v558 = vrcp.pop %v557
  %v559 = vmul.f32 1.0, %v558
  %v560 = vmul.f32 %v552, %v446
  %v561 = vmul.f32 %v546, %v553
  %v562 = vadd.f32 %v560, %v561
  %v563 = vtanh.pop %v562
  %v564 = vmul.f32 %v559, %v563
  %s565 = scalar_lea.vmem %s0, 96
  %v566 = vld [vmem:[%s565] sm:$0xff]
  %v567 = vld [vmem:[%s565 + $0x8] sm:$0xff]
  %v568 = vld [vmem:[%s565 + $0x10] sm:$0xff]
  %v569 = vld [vmem:[%s565 + $0x18] sm:$0xff]
  %v570 = vpack.c.bf16 %v564, %v564
  %571 = vmatprep.subr.bf16.mxu0 %v160
  %572 = vmatpush1.bf16.msra.mxu0 %v159
  %573 = vmatprep.subr.bf16.mxu0 %v164
  %574 = vmatpush1.bf16.msra.mxu0 %v163
  %575 = vmatprep.subr.bf16.mxu0 %v168
  %576 = vmatpush1.bf16.msra.mxu0 %v167
  %577 = vmatprep.subr.bf16.mxu0 %v172
  %578 = vmatpush1.bf16.msra.mxu0 %v171
  %579 = vmatprep.subr.bf16.mxu0 %v176
  %580 = vmatpush1.bf16.msra.mxu0 %v175
  %581 = vmatprep.subr.bf16.mxu0 %v180
  %582 = vmatpush1.bf16.msra.mxu0 %v179
  %583 = vmatprep.subr.bf16.mxu0 %v184
  %584 = vmatpush1.bf16.msra.mxu0 %v183
  %585 = vmatprep.subr.bf16.mxu0 %v188
  %586 = vmatpush1.bf16.msra.mxu0 %v187
  %587 = vmatprep.subr.bf16.mxu0 0
  %588 = vmatpush1.bf16.msra.mxu0 0
  %589 = vmatprep.subr.bf16.mxu0 0
  %590 = vmatpush1.bf16.msra.mxu0 0
  %591 = vmatprep.subr.bf16.mxu0 0
  %592 = vmatpush1.bf16.msra.mxu0 0
  %593 = vmatprep.subr.bf16.mxu0 0
  %594 = vmatpush1.bf16.msra.mxu0 0
  %595 = vmatprep.subr.bf16.mxu0 0
  %596 = vmatpush1.bf16.msra.mxu0 0
  %597 = vmatprep.subr.bf16.mxu0 0
  %598 = vmatpush1.bf16.msra.mxu0 0
  %599 = vmatprep.subr.bf16.mxu0 0
  %600 = vmatpush1.bf16.msra.mxu0 0
  %601 = vmatprep.subr.bf16.mxu0 0
  %602 = vmatpush1.bf16.msra.mxu0 0
  %603 = vmatprep.mubr.bf16.mxu0 0
  %604 = vmatmul.mubr.bf16.gmra.mrb[0].mxu0 %v570
  %v605 = vpop.f32.mrb[0].mxu0
  %v606 = vadd.f32 0.0, %v605
  %v607 = vpop.f32.mrb[0].mxu0
  %v608 = vadd.f32 0.0, %v607
  %v609 = vpop.f32.mrb[0].mxu0
  %v610 = vpop.f32.mrb[0].mxu0
  %611 = vdwg.mxu0
  %612 = vmatprep.subr.bf16.mxu0 %v162
  %613 = vmatpush1.bf16.msra.mxu0 %v161
  %614 = vmatprep.subr.bf16.mxu0 %v166
  %615 = vmatpush1.bf16.msra.mxu0 %v165
  %616 = vmatprep.subr.bf16.mxu0 %v170
  %617 = vmatpush1.bf16.msra.mxu0 %v169
  %618 = vmatprep.subr.bf16.mxu0 %v174
  %619 = vmatpush1.bf16.msra.mxu0 %v173
  %620 = vmatprep.subr.bf16.mxu0 %v178
  %621 = vmatpush1.bf16.msra.mxu0 %v177
  %622 = vmatprep.subr.bf16.mxu0 %v182
  %623 = vmatpush1.bf16.msra.mxu0 %v181
  %624 = vmatprep.subr.bf16.mxu0 %v186
  %625 = vmatpush1.bf16.msra.mxu0 %v185
  %626 = vmatprep.subr.bf16.mxu0 %v190
  %627 = vmatpush1.bf16.msra.mxu0 %v189
  %628 = vmatprep.subr.bf16.mxu0 0
  %629 = vmatpush1.bf16.msra.mxu0 0
  %630 = vmatprep.subr.bf16.mxu0 0
  %631 = vmatpush1.bf16.msra.mxu0 0
  %632 = vmatprep.subr.bf16.mxu0 0
  %633 = vmatpush1.bf16.msra.mxu0 0
  %634 = vmatprep.subr.bf16.mxu0 0
  %635 = vmatpush1.bf16.msra.mxu0 0
  %636 = vmatprep.subr.bf16.mxu0 0
  %637 = vmatpush1.bf16.msra.mxu0 0
  %638 = vmatprep.subr.bf16.mxu0 0
  %639 = vmatpush1.bf16.msra.mxu0 0
  %640 = vmatprep.subr.bf16.mxu0 0
  %641 = vmatpush1.bf16.msra.mxu0 0
  %642 = vmatprep.subr.bf16.mxu0 0
  %643 = vmatpush1.bf16.msra.mxu0 0
  %644 = vmatprep.mubr.bf16.mxu0 0
  %645 = vmatmul.mubr.bf16.gmra.mrb[0].mxu0 %v570
  %v646 = vpop.f32.mrb[0].mxu0
  %v647 = vadd.f32 0.0, %v646
  %v648 = vpop.f32.mrb[0].mxu0
  %v649 = vadd.f32 0.0, %v648
  %v650 = vpop.f32.mrb[0].mxu0
  %v651 = vpop.f32.mrb[0].mxu0
  %652 = vdwg.mxu0
  %v653 = vadd.f32 %v566, %v606
  %v654 = vadd.f32 %v567, %v608
  %v655 = vadd.f32 %v568, %v647
  %v656 = vadd.f32 %v569, %v649
  %v657 = vxor.u32 %v653, 2147483648
  %v658 = vmul.f32 %v657, 1.442695
  %v659 = vpow.pop %v658
  %v660 = vadd.f32 %v659, 1.0
  %v661 = vrcp.pop %v660
  %v662 = vmul.f32 1.0, %v661
  %v663 = vxor.u32 %v654, 2147483648
  %v664 = vmul.f32 %v663, 1.442695
  %v665 = vpow.pop %v664
  %v666 = vadd.f32 %v665, 1.0
  %v667 = vrcp.pop %v666
  %v668 = vmul.f32 1.0, %v667
  %v669 = vtanh.pop %v655
  %v670 = vxor.u32 %v656, 2147483648
  %v671 = vmul.f32 %v670, 1.442695
  %v672 = vpow.pop %v671
  %v673 = vadd.f32 %v672, 1.0
  %v674 = vrcp.pop %v673
  %v675 = vmul.f32 1.0, %v674
  %v676 = vmul.f32 %v668, %v562
  %v677 = vmul.f32 %v662, %v669
  %v678 = vadd.f32 %v676, %v677
  %v679 = vtanh.pop %v678
  %v680 = vmul.f32 %v675, %v679
  %s681 = scalar_lea.vmem %s0, 128
  %v682 = vld [vmem:[%s681] sm:$0xff]
  %v683 = vld [vmem:[%s681 + $0x8] sm:$0xff]
  %v684 = vld [vmem:[%s681 + $0x10] sm:$0xff]
  %v685 = vld [vmem:[%s681 + $0x18] sm:$0xff]
  %v686 = vpack.c.bf16 %v680, %v680
  %687 = vmatprep.subr.bf16.mxu0 %v160
  %688 = vmatpush1.bf16.msra.mxu0 %v159
  %689 = vmatprep.subr.bf16.mxu0 %v164
  %690 = vmatpush1.bf16.msra.mxu0 %v163
  %691 = vmatprep.subr.bf16.mxu0 %v168
  %692 = vmatpush1.bf16.msra.mxu0 %v167
  %693 = vmatprep.subr.bf16.mxu0 %v172
  %694 = vmatpush1.bf16.msra.mxu0 %v171
  %695 = vmatprep.subr.bf16.mxu0 %v176
  %696 = vmatpush1.bf16.msra.mxu0 %v175
  %697 = vmatprep.subr.bf16.mxu0 %v180
  %698 = vmatpush1.bf16.msra.mxu0 %v179
  %699 = vmatprep.subr.bf16.mxu0 %v184
  %700 = vmatpush1.bf16.msra.mxu0 %v183
  %701 = vmatprep.subr.bf16.mxu0 %v188
  %702 = vmatpush1.bf16.msra.mxu0 %v187
  %703 = vmatprep.subr.bf16.mxu0 0
  %704 = vmatpush1.bf16.msra.mxu0 0
  %705 = vmatprep.subr.bf16.mxu0 0
  %706 = vmatpush1.bf16.msra.mxu0 0
  %707 = vmatprep.subr.bf16.mxu0 0
  %708 = vmatpush1.bf16.msra.mxu0 0
  %709 = vmatprep.subr.bf16.mxu0 0
  %710 = vmatpush1.bf16.msra.mxu0 0
  %711 = vmatprep.subr.bf16.mxu0 0
  %712 = vmatpush1.bf16.msra.mxu0 0
  %713 = vmatprep.subr.bf16.mxu0 0
  %714 = vmatpush1.bf16.msra.mxu0 0
  %715 = vmatprep.subr.bf16.mxu0 0
  %716 = vmatpush1.bf16.msra.mxu0 0
  %717 = vmatprep.subr.bf16.mxu0 0
  %718 = vmatpush1.bf16.msra.mxu0 0
  %719 = vmatprep.mubr.bf16.mxu0 0
  %720 = vmatmul.mubr.bf16.gmra.mrb[0].mxu0 %v686
  %v721 = vpop.f32.mrb[0].mxu0
  %v722 = vadd.f32 0.0, %v721
  %v723 = vpop.f32.mrb[0].mxu0
  %v724 = vadd.f32 0.0, %v723
  %v725 = vpop.f32.mrb[0].mxu0
  %v726 = vpop.f32.mrb[0].mxu0
  %727 = vdwg.mxu0
  %728 = vmatprep.subr.bf16.mxu0 %v162
  %729 = vmatpush1.bf16.msra.mxu0 %v161
  %730 = vmatprep.subr.bf16.mxu0 %v166
  %731 = vmatpush1.bf16.msra.mxu0 %v165
  %732 = vmatprep.subr.bf16.mxu0 %v170
  %733 = vmatpush1.bf16.msra.mxu0 %v169
  %734 = vmatprep.subr.bf16.mxu0 %v174
  %735 = vmatpush1.bf16.msra.mxu0 %v173
  %736 = vmatprep.subr.bf16.mxu0 %v178
  %737 = vmatpush1.bf16.msra.mxu0 %v177
  %738 = vmatprep.subr.bf16.mxu0 %v182
  %739 = vmatpush1.bf16.msra.mxu0 %v181
  %740 = vmatprep.subr.bf16.mxu0 %v186
  %741 = vmatpush1.bf16.msra.mxu0 %v185
  %742 = vmatprep.subr.bf16.mxu0 %v190
  %743 = vmatpush1.bf16.msra.mxu0 %v189
  %744 = vmatprep.subr.bf16.mxu0 0
  %745 = vmatpush1.bf16.msra.mxu0 0
  %746 = vmatprep.subr.bf16.mxu0 0
  %747 = vmatpush1.bf16.msra.mxu0 0
  %748 = vmatprep.subr.bf16.mxu0 0
  %749 = vmatpush1.bf16.msra.mxu0 0
  %750 = vmatprep.subr.bf16.mxu0 0
  %751 = vmatpush1.bf16.msra.mxu0 0
  %752 = vmatprep.subr.bf16.mxu0 0
  %753 = vmatpush1.bf16.msra.mxu0 0
  %754 = vmatprep.subr.bf16.mxu0 0
  %755 = vmatpush1.bf16.msra.mxu0 0
  %756 = vmatprep.subr.bf16.mxu0 0
  %757 = vmatpush1.bf16.msra.mxu0 0
  %758 = vmatprep.subr.bf16.mxu0 0
  %759 = vmatpush1.bf16.msra.mxu0 0
  %760 = vmatprep.mubr.bf16.mxu0 0
  %761 = vmatmul.mubr.bf16.gmra.mrb[0].mxu0 %v686
  %v762 = vpop.f32.mrb[0].mxu0
  %v763 = vadd.f32 0.0, %v762
  %v764 = vpop.f32.mrb[0].mxu0
  %v765 = vadd.f32 0.0, %v764
  %v766 = vpop.f32.mrb[0].mxu0
  %v767 = vpop.f32.mrb[0].mxu0
  %768 = vdwg.mxu0
  %v769 = vadd.f32 %v682, %v722
  %v770 = vadd.f32 %v683, %v724
  %v771 = vadd.f32 %v684, %v763
  %v772 = vadd.f32 %v685, %v765
  %v773 = vxor.u32 %v769, 2147483648
  %v774 = vmul.f32 %v773, 1.442695
  %v775 = vpow.pop %v774
  %v776 = vadd.f32 %v775, 1.0
  %v777 = vrcp.pop %v776
  %v778 = vmul.f32 1.0, %v777
  %v779 = vxor.u32 %v770, 2147483648
  %v780 = vmul.f32 %v779, 1.442695
  %v781 = vpow.pop %v780
  %v782 = vadd.f32 %v781, 1.0
  %v783 = vrcp.pop %v782
  %v784 = vmul.f32 1.0, %v783
  %v785 = vtanh.pop %v771
  %v786 = vxor.u32 %v772, 2147483648
  %v787 = vmul.f32 %v786, 1.442695
  %v788 = vpow.pop %v787
  %v789 = vadd.f32 %v788, 1.0
  %v790 = vrcp.pop %v789
  %v791 = vmul.f32 1.0, %v790
  %v792 = vmul.f32 %v784, %v678
  %v793 = vmul.f32 %v778, %v785
  %v794 = vadd.f32 %v792, %v793
  %v795 = vtanh.pop %v794
  %v796 = vmul.f32 %v791, %v795
  %s797 = scalar_lea.vmem %s0, 160
  %v798 = vld [vmem:[%s797] sm:$0xff]
  %v799 = vld [vmem:[%s797 + $0x8] sm:$0xff]
  %v800 = vld [vmem:[%s797 + $0x10] sm:$0xff]
  %v801 = vld [vmem:[%s797 + $0x18] sm:$0xff]
  %v802 = vpack.c.bf16 %v796, %v796
  %803 = vmatprep.subr.bf16.mxu0 %v160
  %804 = vmatpush1.bf16.msra.mxu0 %v159
  %805 = vmatprep.subr.bf16.mxu0 %v164
  %806 = vmatpush1.bf16.msra.mxu0 %v163
  %807 = vmatprep.subr.bf16.mxu0 %v168
  %808 = vmatpush1.bf16.msra.mxu0 %v167
  %809 = vmatprep.subr.bf16.mxu0 %v172
  %810 = vmatpush1.bf16.msra.mxu0 %v171
  %811 = vmatprep.subr.bf16.mxu0 %v176
  %812 = vmatpush1.bf16.msra.mxu0 %v175
  %813 = vmatprep.subr.bf16.mxu0 %v180
  %814 = vmatpush1.bf16.msra.mxu0 %v179
  %815 = vmatprep.subr.bf16.mxu0 %v184
  %816 = vmatpush1.bf16.msra.mxu0 %v183
  %817 = vmatprep.subr.bf16.mxu0 %v188
  %818 = vmatpush1.bf16.msra.mxu0 %v187
  %819 = vmatprep.subr.bf16.mxu0 0
  %820 = vmatpush1.bf16.msra.mxu0 0
  %821 = vmatprep.subr.bf16.mxu0 0
  %822 = vmatpush1.bf16.msra.mxu0 0
  %823 = vmatprep.subr.bf16.mxu0 0
  %824 = vmatpush1.bf16.msra.mxu0 0
  %825 = vmatprep.subr.bf16.mxu0 0
  %826 = vmatpush1.bf16.msra.mxu0 0
  %827 = vmatprep.subr.bf16.mxu0 0
  %828 = vmatpush1.bf16.msra.mxu0 0
  %829 = vmatprep.subr.bf16.mxu0 0
  %830 = vmatpush1.bf16.msra.mxu0 0
  %831 = vmatprep.subr.bf16.mxu0 0
  %832 = vmatpush1.bf16.msra.mxu0 0
  %833 = vmatprep.subr.bf16.mxu0 0
  %834 = vmatpush1.bf16.msra.mxu0 0
  %835 = vmatprep.mubr.bf16.mxu0 0
  %836 = vmatmul.mubr.bf16.gmra.mrb[0].mxu0 %v802
  %v837 = vpop.f32.mrb[0].mxu0
  %v838 = vadd.f32 0.0, %v837
  %v839 = vpop.f32.mrb[0].mxu0
  %v840 = vadd.f32 0.0, %v839
  %v841 = vpop.f32.mrb[0].mxu0
  %v842 = vpop.f32.mrb[0].mxu0
  %843 = vdwg.mxu0
  %844 = vmatprep.subr.bf16.mxu0 %v162
  %845 = vmatpush1.bf16.msra.mxu0 %v161
  %846 = vmatprep.subr.bf16.mxu0 %v166
  %847 = vmatpush1.bf16.msra.mxu0 %v165
  %848 = vmatprep.subr.bf16.mxu0 %v170
  %849 = vmatpush1.bf16.msra.mxu0 %v169
  %850 = vmatprep.subr.bf16.mxu0 %v174
  %851 = vmatpush1.bf16.msra.mxu0 %v173
  %852 = vmatprep.subr.bf16.mxu0 %v178
  %853 = vmatpush1.bf16.msra.mxu0 %v177
  %854 = vmatprep.subr.bf16.mxu0 %v182
  %855 = vmatpush1.bf16.msra.mxu0 %v181
  %856 = vmatprep.subr.bf16.mxu0 %v186
  %857 = vmatpush1.bf16.msra.mxu0 %v185
  %858 = vmatprep.subr.bf16.mxu0 %v190
  %859 = vmatpush1.bf16.msra.mxu0 %v189
  %860 = vmatprep.subr.bf16.mxu0 0
  %861 = vmatpush1.bf16.msra.mxu0 0
  %862 = vmatprep.subr.bf16.mxu0 0
  %863 = vmatpush1.bf16.msra.mxu0 0
  %864 = vmatprep.subr.bf16.mxu0 0
  %865 = vmatpush1.bf16.msra.mxu0 0
  %866 = vmatprep.subr.bf16.mxu0 0
  %867 = vmatpush1.bf16.msra.mxu0 0
  %868 = vmatprep.subr.bf16.mxu0 0
  %869 = vmatpush1.bf16.msra.mxu0 0
  %870 = vmatprep.subr.bf16.mxu0 0
  %871 = vmatpush1.bf16.msra.mxu0 0
  %872 = vmatprep.subr.bf16.mxu0 0
  %873 = vmatpush1.bf16.msra.mxu0 0
  %874 = vmatprep.subr.bf16.mxu0 0
  %875 = vmatpush1.bf16.msra.mxu0 0
  %876 = vmatprep.mubr.bf16.mxu0 0
  %877 = vmatmul.mubr.bf16.gmra.mrb[0].mxu0 %v802
  %v878 = vpop.f32.mrb[0].mxu0
  %v879 = vadd.f32 0.0, %v878
  %v880 = vpop.f32.mrb[0].mxu0
  %v881 = vadd.f32 0.0, %v880
  %v882 = vpop.f32.mrb[0].mxu0
  %v883 = vpop.f32.mrb[0].mxu0
  %884 = vdwg.mxu0
  %v885 = vadd.f32 %v798, %v838
  %v886 = vadd.f32 %v799, %v840
  %v887 = vadd.f32 %v800, %v879
  %v888 = vadd.f32 %v801, %v881
  %v889 = vxor.u32 %v885, 2147483648
  %v890 = vmul.f32 %v889, 1.442695
  %v891 = vpow.pop %v890
  %v892 = vadd.f32 %v891, 1.0
  %v893 = vrcp.pop %v892
  %v894 = vmul.f32 1.0, %v893
  %v895 = vxor.u32 %v886, 2147483648
  %v896 = vmul.f32 %v895, 1.442695
  %v897 = vpow.pop %v896
  %v898 = vadd.f32 %v897, 1.0
  %v899 = vrcp.pop %v898
  %v900 = vmul.f32 1.0, %v899
  %v901 = vtanh.pop %v887
  %v902 = vxor.u32 %v888, 2147483648
  %v903 = vmul.f32 %v902, 1.442695
  %v904 = vpow.pop %v903
  %v905 = vadd.f32 %v904, 1.0
  %v906 = vrcp.pop %v905
  %v907 = vmul.f32 1.0, %v906
  %v908 = vmul.f32 %v900, %v794
  %v909 = vmul.f32 %v894, %v901
  %v910 = vadd.f32 %v908, %v909
  %v911 = vtanh.pop %v910
  %v912 = vmul.f32 %v907, %v911
  %s913 = scalar_lea.vmem %s0, 192
  %v914 = vld [vmem:[%s913] sm:$0xff]
  %v915 = vld [vmem:[%s913 + $0x8] sm:$0xff]
  %v916 = vld [vmem:[%s913 + $0x10] sm:$0xff]
  %v917 = vld [vmem:[%s913 + $0x18] sm:$0xff]
  %v918 = vpack.c.bf16 %v912, %v912
  %919 = vmatprep.subr.bf16.mxu0 %v160
  %920 = vmatpush1.bf16.msra.mxu0 %v159
  %921 = vmatprep.subr.bf16.mxu0 %v164
  %922 = vmatpush1.bf16.msra.mxu0 %v163
  %923 = vmatprep.subr.bf16.mxu0 %v168
  %924 = vmatpush1.bf16.msra.mxu0 %v167
  %925 = vmatprep.subr.bf16.mxu0 %v172
  %926 = vmatpush1.bf16.msra.mxu0 %v171
  %927 = vmatprep.subr.bf16.mxu0 %v176
  %928 = vmatpush1.bf16.msra.mxu0 %v175
  %929 = vmatprep.subr.bf16.mxu0 %v180
  %930 = vmatpush1.bf16.msra.mxu0 %v179
  %931 = vmatprep.subr.bf16.mxu0 %v184
  %932 = vmatpush1.bf16.msra.mxu0 %v183
  %933 = vmatprep.subr.bf16.mxu0 %v188
  %934 = vmatpush1.bf16.msra.mxu0 %v187
  %935 = vmatprep.subr.bf16.mxu0 0
  %936 = vmatpush1.bf16.msra.mxu0 0
  %937 = vmatprep.subr.bf16.mxu0 0
  %938 = vmatpush1.bf16.msra.mxu0 0
  %939 = vmatprep.subr.bf16.mxu0 0
  %940 = vmatpush1.bf16.msra.mxu0 0
  %941 = vmatprep.subr.bf16.mxu0 0
  %942 = vmatpush1.bf16.msra.mxu0 0
  %943 = vmatprep.subr.bf16.mxu0 0
  %944 = vmatpush1.bf16.msra.mxu0 0
  %945 = vmatprep.subr.bf16.mxu0 0
  %946 = vmatpush1.bf16.msra.mxu0 0
  %947 = vmatprep.subr.bf16.mxu0 0
  %948 = vmatpush1.bf16.msra.mxu0 0
  %949 = vmatprep.subr.bf16.mxu0 0
  %950 = vmatpush1.bf16.msra.mxu0 0
  %951 = vmatprep.mubr.bf16.mxu0 0
  %952 = vmatmul.mubr.bf16.gmra.mrb[0].mxu0 %v918
  %v953 = vpop.f32.mrb[0].mxu0
  %v954 = vadd.f32 0.0, %v953
  %v955 = vpop.f32.mrb[0].mxu0
  %v956 = vadd.f32 0.0, %v955
  %v957 = vpop.f32.mrb[0].mxu0
  %v958 = vpop.f32.mrb[0].mxu0
  %959 = vdwg.mxu0
  %960 = vmatprep.subr.bf16.mxu0 %v162
  %961 = vmatpush1.bf16.msra.mxu0 %v161
  %962 = vmatprep.subr.bf16.mxu0 %v166
  %963 = vmatpush1.bf16.msra.mxu0 %v165
  %964 = vmatprep.subr.bf16.mxu0 %v170
  %965 = vmatpush1.bf16.msra.mxu0 %v169
  %966 = vmatprep.subr.bf16.mxu0 %v174
  %967 = vmatpush1.bf16.msra.mxu0 %v173
  %968 = vmatprep.subr.bf16.mxu0 %v178
  %969 = vmatpush1.bf16.msra.mxu0 %v177
  %970 = vmatprep.subr.bf16.mxu0 %v182
  %971 = vmatpush1.bf16.msra.mxu0 %v181
  %972 = vmatprep.subr.bf16.mxu0 %v186
  %973 = vmatpush1.bf16.msra.mxu0 %v185
  %974 = vmatprep.subr.bf16.mxu0 %v190
  %975 = vmatpush1.bf16.msra.mxu0 %v189
  %976 = vmatprep.subr.bf16.mxu0 0
  %977 = vmatpush1.bf16.msra.mxu0 0
  %978 = vmatprep.subr.bf16.mxu0 0
  %979 = vmatpush1.bf16.msra.mxu0 0
  %980 = vmatprep.subr.bf16.mxu0 0
  %981 = vmatpush1.bf16.msra.mxu0 0
  %982 = vmatprep.subr.bf16.mxu0 0
  %983 = vmatpush1.bf16.msra.mxu0 0
  %984 = vmatprep.subr.bf16.mxu0 0
  %985 = vmatpush1.bf16.msra.mxu0 0
  %986 = vmatprep.subr.bf16.mxu0 0
  %987 = vmatpush1.bf16.msra.mxu0 0
  %988 = vmatprep.subr.bf16.mxu0 0
  %989 = vmatpush1.bf16.msra.mxu0 0
  %990 = vmatprep.subr.bf16.mxu0 0
  %991 = vmatpush1.bf16.msra.mxu0 0
  %992 = vmatprep.mubr.bf16.mxu0 0
  %993 = vmatmul.mubr.bf16.gmra.mrb[0].mxu0 %v918
  %v994 = vpop.f32.mrb[0].mxu0
  %v995 = vadd.f32 0.0, %v994
  %v996 = vpop.f32.mrb[0].mxu0
  %v997 = vadd.f32 0.0, %v996
  %v998 = vpop.f32.mrb[0].mxu0
  %v999 = vpop.f32.mrb[0].mxu0
  %1000 = vdwg.mxu0
  %v1001 = vadd.f32 %v914, %v954
  %v1002 = vadd.f32 %v915, %v956
  %v1003 = vadd.f32 %v916, %v995
  %v1004 = vadd.f32 %v917, %v997
  %v1005 = vxor.u32 %v1001, 2147483648
  %v1006 = vmul.f32 %v1005, 1.442695
  %v1007 = vpow.pop %v1006
  %v1008 = vadd.f32 %v1007, 1.0
  %v1009 = vrcp.pop %v1008
  %v1010 = vmul.f32 1.0, %v1009
  %v1011 = vxor.u32 %v1002, 2147483648
  %v1012 = vmul.f32 %v1011, 1.442695
  %v1013 = vpow.pop %v1012
  %v1014 = vadd.f32 %v1013, 1.0
  %v1015 = vrcp.pop %v1014
  %v1016 = vmul.f32 1.0, %v1015
  %v1017 = vtanh.pop %v1003
  %v1018 = vxor.u32 %v1004, 2147483648
  %v1019 = vmul.f32 %v1018, 1.442695
  %v1020 = vpow.pop %v1019
  %v1021 = vadd.f32 %v1020, 1.0
  %v1022 = vrcp.pop %v1021
  %v1023 = vmul.f32 1.0, %v1022
  %v1024 = vmul.f32 %v1016, %v910
  %v1025 = vmul.f32 %v1010, %v1017
  %v1026 = vadd.f32 %v1024, %v1025
  %v1027 = vtanh.pop %v1026
  %v1028 = vmul.f32 %v1023, %v1027
  %s1029 = scalar_lea.vmem %s0, 224
  %v1030 = vld [vmem:[%s1029] sm:$0xff]
  %v1031 = vld [vmem:[%s1029 + $0x8] sm:$0xff]
  %v1032 = vld [vmem:[%s1029 + $0x10] sm:$0xff]
  %v1033 = vld [vmem:[%s1029 + $0x18] sm:$0xff]
  %v1034 = vpack.c.bf16 %v1028, %v1028
  %1035 = vmatprep.subr.bf16.mxu0 %v160
  %1036 = vmatpush1.bf16.msra.mxu0 %v159
  %1037 = vmatprep.subr.bf16.mxu0 %v164
  %1038 = vmatpush1.bf16.msra.mxu0 %v163
  %1039 = vmatprep.subr.bf16.mxu0 %v168
  %1040 = vmatpush1.bf16.msra.mxu0 %v167
  %1041 = vmatprep.subr.bf16.mxu0 %v172
  %1042 = vmatpush1.bf16.msra.mxu0 %v171
  %1043 = vmatprep.subr.bf16.mxu0 %v176
  %1044 = vmatpush1.bf16.msra.mxu0 %v175
  %1045 = vmatprep.subr.bf16.mxu0 %v180
  %1046 = vmatpush1.bf16.msra.mxu0 %v179
  %1047 = vmatprep.subr.bf16.mxu0 %v184
  %1048 = vmatpush1.bf16.msra.mxu0 %v183
  %1049 = vmatprep.subr.bf16.mxu0 %v188
  %1050 = vmatpush1.bf16.msra.mxu0 %v187
  %1051 = vmatprep.subr.bf16.mxu0 0
  %1052 = vmatpush1.bf16.msra.mxu0 0
  %1053 = vmatprep.subr.bf16.mxu0 0
  %1054 = vmatpush1.bf16.msra.mxu0 0
  %1055 = vmatprep.subr.bf16.mxu0 0
  %1056 = vmatpush1.bf16.msra.mxu0 0
  %1057 = vmatprep.subr.bf16.mxu0 0
  %1058 = vmatpush1.bf16.msra.mxu0 0
  %1059 = vmatprep.subr.bf16.mxu0 0
  %1060 = vmatpush1.bf16.msra.mxu0 0
  %1061 = vmatprep.subr.bf16.mxu0 0
  %1062 = vmatpush1.bf16.msra.mxu0 0
  %1063 = vmatprep.subr.bf16.mxu0 0
  %1064 = vmatpush1.bf16.msra.mxu0 0
  %1065 = vmatprep.subr.bf16.mxu0 0
  %1066 = vmatpush1.bf16.msra.mxu0 0
  %1067 = vmatprep.mubr.bf16.mxu0 0
  %1068 = vmatmul.mubr.bf16.gmra.mrb[0].mxu0 %v1034
  %v1069 = vpop.f32.mrb[0].mxu0
  %v1070 = vadd.f32 0.0, %v1069
  %v1071 = vpop.f32.mrb[0].mxu0
  %v1072 = vadd.f32 0.0, %v1071
  %v1073 = vpop.f32.mrb[0].mxu0
  %v1074 = vpop.f32.mrb[0].mxu0
  %1075 = vdwg.mxu0
  %1076 = vmatprep.subr.bf16.mxu0 %v162
  %1077 = vmatpush1.bf16.msra.mxu0 %v161
  %1078 = vmatprep.subr.bf16.mxu0 %v166
  %1079 = vmatpush1.bf16.msra.mxu0 %v165
  %1080 = vmatprep.subr.bf16.mxu0 %v170
  %1081 = vmatpush1.bf16.msra.mxu0 %v169
  %1082 = vmatprep.subr.bf16.mxu0 %v174
  %1083 = vmatpush1.bf16.msra.mxu0 %v173
  %1084 = vmatprep.subr.bf16.mxu0 %v178
  %1085 = vmatpush1.bf16.msra.mxu0 %v177
  %1086 = vmatprep.subr.bf16.mxu0 %v182
  %1087 = vmatpush1.bf16.msra.mxu0 %v181
  %1088 = vmatprep.subr.bf16.mxu0 %v186
  %1089 = vmatpush1.bf16.msra.mxu0 %v185
  %1090 = vmatprep.subr.bf16.mxu0 %v190
  %1091 = vmatpush1.bf16.msra.mxu0 %v189
  %1092 = vmatprep.subr.bf16.mxu0 0
  %1093 = vmatpush1.bf16.msra.mxu0 0
  %1094 = vmatprep.subr.bf16.mxu0 0
  %1095 = vmatpush1.bf16.msra.mxu0 0
  %1096 = vmatprep.subr.bf16.mxu0 0
  %1097 = vmatpush1.bf16.msra.mxu0 0
  %1098 = vmatprep.subr.bf16.mxu0 0
  %1099 = vmatpush1.bf16.msra.mxu0 0
  %1100 = vmatprep.subr.bf16.mxu0 0
  %1101 = vmatpush1.bf16.msra.mxu0 0
  %1102 = vmatprep.subr.bf16.mxu0 0
  %1103 = vmatpush1.bf16.msra.mxu0 0
  %1104 = vmatprep.subr.bf16.mxu0 0
  %1105 = vmatpush1.bf16.msra.mxu0 0
  %1106 = vmatprep.subr.bf16.mxu0 0
  %1107 = vmatpush1.bf16.msra.mxu0 0
  %1108 = vmatprep.mubr.bf16.mxu0 0
  %1109 = vmatmul.mubr.bf16.gmra.mrb[0].mxu0 %v1034
  %v1110 = vpop.f32.mrb[0].mxu0
  %v1111 = vadd.f32 0.0, %v1110
  %v1112 = vpop.f32.mrb[0].mxu0
  %v1113 = vadd.f32 0.0, %v1112
  %v1114 = vpop.f32.mrb[0].mxu0
  %v1115 = vpop.f32.mrb[0].mxu0
  %1116 = vdwg.mxu0
  %v1117 = vadd.f32 %v1030, %v1070
  %v1118 = vadd.f32 %v1031, %v1072
  %v1119 = vadd.f32 %v1032, %v1111
  %v1120 = vadd.f32 %v1033, %v1113
  %v1121 = vxor.u32 %v1117, 2147483648
  %v1122 = vmul.f32 %v1121, 1.442695
  %v1123 = vpow.pop %v1122
  %v1124 = vadd.f32 %v1123, 1.0
  %v1125 = vrcp.pop %v1124
  %v1126 = vmul.f32 1.0, %v1125
  %v1127 = vxor.u32 %v1118, 2147483648
  %v1128 = vmul.f32 %v1127, 1.442695
  %v1129 = vpow.pop %v1128
  %v1130 = vadd.f32 %v1129, 1.0
  %v1131 = vrcp.pop %v1130
  %v1132 = vmul.f32 1.0, %v1131
  %v1133 = vtanh.pop %v1119
  %v1134 = vxor.u32 %v1120, 2147483648
  %v1135 = vmul.f32 %v1134, 1.442695
  %v1136 = vpow.pop %v1135
  %v1137 = vadd.f32 %v1136, 1.0
  %v1138 = vrcp.pop %v1137
  %v1139 = vmul.f32 1.0, %v1138
  %v1140 = vmul.f32 %v1132, %v1026
  %v1141 = vmul.f32 %v1126, %v1133
  %v1142 = vadd.f32 %v1140, %v1141
  %v1143 = vtanh.pop %v1142
  %v1144 = vmul.f32 %v1139, %v1143
  %1145 = vst [vmem:[#allocation2] sm:$0xff] %v1144
  %1146 = vst [vmem:[#allocation3] sm:$0xff] %v1142
  // Predicated region
  $region22: #{rnn_classifier_forward.1} parent=0 // pred_check
    %p1147 = pneg %p18
  $region23: #{rnn_classifier_forward.1} parent=0 // pred_check_branch
    %1149 = sbr.rel (%p1147) target = $region25
  $region24: #{rnn_classifier_forward.1} parent=0 // pred_region
    %v1150 = vpack.c.bf16 %v1144, %v1144
    %v1151 = vld [vmem:[%s2] sm:$0xf]
    %v1152 = vld [vmem:[%s2 + $0x4] sm:$0xf]
    %v1153 = vld [vmem:[%s2 + $0x8] sm:$0xf]
    %v1154 = vld [vmem:[%s2 + $0xc] sm:$0xf]
    %v1155 = vld [vmem:[%s2 + $0x10] sm:$0xf]
    %v1156 = vld [vmem:[%s2 + $0x14] sm:$0xf]
    %v1157 = vld [vmem:[%s2 + $0x18] sm:$0xf]
    %v1158 = vld [vmem:[%s2 + $0x1c] sm:$0xf]
    %v1159 = vld [vmem:[%s2 + $0x20] sm:$0xf]
    %v1160 = vld [vmem:[%s2 + $0x24] sm:$0xf]
    %v1161 = vld [vmem:[%s2 + $0x28] sm:$0xf]
    %v1162 = vld [vmem:[%s2 + $0x2c] sm:$0xf]
    %v1163 = vld [vmem:[%s2 + $0x30] sm:$0xf]
    %v1164 = vld [vmem:[%s2 + $0x34] sm:$0xf]
    %v1165 = vld [vmem:[%s2 + $0x38] sm:$0xf]
    %v1166 = vld [vmem:[%s2 + $0x3c] sm:$0xf]
    %v1167 = vld [vmem:[%s3] sm:$0x1]
    %v1169 = vlaneseq
    %v1170 = vshrl.u32 %v1169, 7
    %v1171 = vsub.s32 0, %v1170
    %v1172 = vrot.slane %v1167, %v1171
    %v1190 = vunpack.c.l.b16 %v1151
    %v1191 = vunpack.c.l.b16 %v1152
    %v1192 = vunpack.c.l.b16 %v1153
    %v1193 = vunpack.c.l.b16 %v1154
    %v1194 = vunpack.c.l.b16 %v1155
    %v1195 = vunpack.c.l.b16 %v1156
    %v1196 = vunpack.c.l.b16 %v1157
    %v1197 = vunpack.c.l.b16 %v1158
    %v1198 = vunpack.c.l.b16 %v1159
    %v1199 = vunpack.c.l.b16 %v1160
    %v1200 = vunpack.c.l.b16 %v1161
    %v1201 = vunpack.c.l.b16 %v1162
    %v1202 = vunpack.c.l.b16 %v1163
    %v1203 = vunpack.c.l.b16 %v1164
    %v1204 = vunpack.c.l.b16 %v1165
    %v1205 = vunpack.c.l.b16 %v1166
    %v1206 = vpack.c.b16 %v1191, %v1190
    %v1207 = vpack.c.b16 %v1193, %v1192
    %v1208 = vpack.c.b16 %v1195, %v1194
    %v1209 = vpack.c.b16 %v1197, %v1196
    %v1210 = vpack.c.b16 %v1199, %v1198
    %v1211 = vpack.c.b16 %v1201, %v1200
    %v1212 = vpack.c.b16 %v1203, %v1202
    %v1213 = vpack.c.b16 %v1205, %v1204
    %1222 = vmatprep.subr.bf16.mxu0 0
    %1223 = vmatpush1.bf16.msra.mxu0 %v1206
    %1224 = vmatprep.subr.bf16.mxu0 0
    %1225 = vmatpush1.bf16.msra.mxu0 %v1207
    %1226 = vmatprep.subr.bf16.mxu0 0
    %1227 = vmatpush1.bf16.msra.mxu0 %v1208
    %1228 = vmatprep.subr.bf16.mxu0 0
    %1229 = vmatpush1.bf16.msra.mxu0 %v1209
    %1230 = vmatprep.subr.bf16.mxu0 0
    %1231 = vmatpush1.bf16.msra.mxu0 %v1210
    %1232 = vmatprep.subr.bf16.mxu0 0
    %1233 = vmatpush1.bf16.msra.mxu0 %v1211
    %1234 = vmatprep.subr.bf16.mxu0 0
    %1235 = vmatpush1.bf16.msra.mxu0 %v1212
    %1236 = vmatprep.subr.bf16.mxu0 0
    %1237 = vmatpush1.bf16.msra.mxu0 %v1213
    %1238 = vmatprep.subr.bf16.mxu0 0
    %1239 = vmatpush1.bf16.msra.mxu0 0
    %1240 = vmatprep.subr.bf16.mxu0 0
    %1241 = vmatpush1.bf16.msra.mxu0 0
    %1242 = vmatprep.subr.bf16.mxu0 0
    %1243 = vmatpush1.bf16.msra.mxu0 0
    %1244 = vmatprep.subr.bf16.mxu0 0
    %1245 = vmatpush1.bf16.msra.mxu0 0
    %1246 = vmatprep.subr.bf16.mxu0 0
    %1247 = vmatpush1.bf16.msra.mxu0 0
    %1248 = vmatprep.subr.bf16.mxu0 0
    %1249 = vmatpush1.bf16.msra.mxu0 0
    %1250 = vmatprep.subr.bf16.mxu0 0
    %1251 = vmatpush1.bf16.msra.mxu0 0
    %1252 = vmatprep.subr.bf16.mxu0 0
    %1253 = vmatpush1.bf16.msra.mxu0 0
    %1254 = vmatprep.mubr.bf16.mxu0 0
    %1255 = vmatmul.mubr.bf16.gmra.mrb[0].mxu0 %v1150
    %v1256 = vpop.f32.mrb[0].mxu0
    %v1257 = vadd.f32 %v1172, %v1256
    %v1258 = vpop.f32.mrb[0].mxu0
    %v1259 = vpop.f32.mrb[0].mxu0
    %v1260 = vpop.f32.mrb[0].mxu0
    %1261 = vdwg.mxu0
    %1262 = vst [vmem:[%s4] sm:$0xff] %v1257
  $region25: #{rnn_classifier_forward.1} parent=0 // pred_fallthru
    _
  // Predicated region
  $region26: #{rnn_classifier_forward.1} parent=0 // pred_check
    _
  $region27: #{rnn_classifier_forward.1} parent=0 // pred_check_branch
    %1264 = sbr.rel (0) target = $region29
  $region28: #{rnn_classifier_forward.1} parent=0 // pred_region
    _
  $region29: #{rnn_classifier_forward.1} parent=0 // pred_fallthru
    _
  // Predicated region
  $region30: #{rnn_classifier_forward.1} parent=0 // pred_check
    _
  $region31: #{rnn_classifier_forward.1} parent=0 // pred_check_branch
    %1266 = sbr.rel (0) target = $region33
  $region32: #{rnn_classifier_forward.1} parent=0 // pred_region
    _
  $region33: #{rnn_classifier_forward.1} parent=0 // pred_fallthru
    _

// kernel: rnn_classifier_forward.1
$region0: #{rnn_classifier_forward.1}
  #allocation0 [shape = 'u32[]', space=smem, size = 0x4, offset = 0x4, fixed_abs, tag = 'smem constant byte address 0x4 - core index']
  #allocation1 [shape = 'u32[144,128]{1,0:T(1,128)}', space=vmem, size = 0x12000, scoped, tag = 'internal scratch']
  #allocation2 [shape = 'f32[8,128]{1,0:T(8,128)}', space=vmem, size = 0x1000, scoped, tag = 'scratch operand']
  #allocation3 [shape = 'f32[8,128]{1,0:T(8,128)}', space=vmem, size = 0x1000, scoped, tag = 'scratch operand']
  %s0 = inlined_call_operand.vmem [shape: f32[8,8,512], index: 0, kind: input, shape index: {}]
  %s1 = inlined_call_operand.vmem [shape: bf16[128,512], index: 1, kind: input, shape index: {}]
  %s2 = inlined_call_operand.vmem [shape: bf16[128,128], index: 2, kind: input, shape index: {}]
  %s3 = inlined_call_operand.vmem [shape: f32[1,128], index: 3, kind: input, shape index: {}]
  %s4 = inlined_call_operand.vmem [shape: f32[8,128], index: 4, kind: output, shape index: {}]
  %s5 = sld [smem:[#allocation0]]
  $region34: #{rnn_classifier_forward.1} parent=0
    _
  %s7 = ssub.s32 1, %s5
  %s8 = scalar_select 0, %s7, %s5
  // Predicated region
  $region2: #{rnn_classifier_forward.1} parent=0 // pred_check
    _
  $region3: #{rnn_classifier_forward.1} parent=0 // pred_check_branch
    %10 = sbr.rel (0) target = $region5
  $region4: #{rnn_classifier_forward.1} parent=0 // pred_region
    _
  $region5: #{rnn_classifier_forward.1} parent=0 // pred_fallthru
    _
  // Predicated region
  $region6: #{rnn_classifier_forward.1} parent=0 // pred_check
    _
  $region7: #{rnn_classifier_forward.1} parent=0 // pred_check_branch
    %12 = sbr.rel (0) target = $region9
  $region8: #{rnn_classifier_forward.1} parent=0 // pred_region
    _
  $region9: #{rnn_classifier_forward.1} parent=0 // pred_fallthru
    _
  // Predicated region
  $region10: #{rnn_classifier_forward.1} parent=0 // pred_check
    _
  $region11: #{rnn_classifier_forward.1} parent=0 // pred_check_branch
    %14 = sbr.rel (0) target = $region13
  $region12: #{rnn_classifier_forward.1} parent=0 // pred_region
    _
  $region13: #{rnn_classifier_forward.1} parent=0 // pred_fallthru
    _
  // Predicated region
  $region14: #{rnn_classifier_forward.1} parent=0 // pred_check
    _
  $region15: #{rnn_classifier_forward.1} parent=0 // pred_check_branch
    %16 = sbr.rel (0) target = $region17
  $region16: #{rnn_classifier_forward.1} parent=0 // pred_region
    _
  $region17: #{rnn_classifier_forward.1} parent=0 // pred_fallthru
    _
  %p18 = scmp.eq.s32.totalorder 0, 0
  // Predicated region
  $region18: #{rnn_classifier_forward.1} parent=0 // pred_check
    %p19 = pneg %p18
  $region19: #{rnn_classifier_forward.1} parent=0 // pred_check_branch
    %21 = sbr.rel (%p19) target = $region21
  $region20: #{rnn_classifier_forward.1} parent=0 // pred_region
    %22 = vst [vmem:[#allocation2] sm:$0xff] 0.0
    %23 = vst [vmem:[#allocation3] sm:$0xff] 0.0
  $region21: #{rnn_classifier_forward.1} parent=0 // pred_fallthru
    _
  %v24 = vld [vmem:[#allocation2] sm:$0xff]
  %v25 = vld [vmem:[#allocation3] sm:$0xff]
  %v26 = vld [vmem:[%s0] sm:$0xff]
  %v27 = vld [vmem:[%s0 + $0x8] sm:$0xff]
  %v28 = vld [vmem:[%s0 + $0x10] sm:$0xff]
  %v29 = vld [vmem:[%s0 + $0x18] sm:$0xff]
  %v30 = vpack.c.bf16 %v24, %v24
  %v31 = vld [vmem:[%s1] sm:$0xff]
  %v32 = vld [vmem:[%s1 + $0x8] sm:$0xff]
  %v33 = vld [vmem:[%s1 + $0x10] sm:$0xff]
  %v34 = vld [vmem:[%s1 + $0x18] sm:$0xff]
  %v35 = vld [vmem:[%s1 + $0x20] sm:$0xff]
  %v36 = vld [vmem:[%s1 + $0x28] sm:$0xff]
  %v37 = vld [vmem:[%s1 + $0x30] sm:$0xff]
  %v38 = vld [vmem:[%s1 + $0x38] sm:$0xff]
  %v39 = vld [vmem:[%s1 + $0x40] sm:$0xff]
  %v40 = vld [vmem:[%s1 + $0x48] sm:$0xff]
  %v41 = vld [vmem:[%s1 + $0x50] sm:$0xff]
  %v42 = vld [vmem:[%s1 + $0x58] sm:$0xff]
  %v43 = vld [vmem:[%s1 + $0x60] sm:$0xff]
  %v44 = vld [vmem:[%s1 + $0x68] sm:$0xff]
  %v45 = vld [vmem:[%s1 + $0x70] sm:$0xff]
  %v46 = vld [vmem:[%s1 + $0x78] sm:$0xff]
  %v47 = vld [vmem:[%s1 + $0x80] sm:$0xff]
  %v48 = vld [vmem:[%s1 + $0x88] sm:$0xff]
  %v49 = vld [vmem:[%s1 + $0x90] sm:$0xff]
  %v50 = vld [vmem:[%s1 + $0x98] sm:$0xff]
  %v51 = vld [vmem:[%s1 + $0xa0] sm:$0xff]
  %v52 = vld [vmem:[%s1 + $0xa8] sm:$0xff]
  %v53 = vld [vmem:[%s1 + $0xb0] sm:$0xff]
  %v54 = vld [vmem:[%s1 + $0xb8] sm:$0xff]
  %v55 = vld [vmem:[%s1 + $0xc0] sm:$0xff]
  %v56 = vld [vmem:[%s1 + $0xc8] sm:$0xff]
  %v57 = vld [vmem:[%s1 + $0xd0] sm:$0xff]
  %v58 = vld [vmem:[%s1 + $0xd8] sm:$0xff]
  %v59 = vld [vmem:[%s1 + $0xe0] sm:$0xff]
  %v60 = vld [vmem:[%s1 + $0xe8] sm:$0xff]
  %v61 = vld [vmem:[%s1 + $0xf0] sm:$0xff]
  %v62 = vld [vmem:[%s1 + $0xf8] sm:$0xff]
  %v95 = vunpack.c.l.b16 %v31
  %v96 = vunpack.c.h.b16 %v31
  %v97 = vunpack.c.l.b16 %v32
  %v98 = vunpack.c.h.b16 %v32
  %v99 = vunpack.c.l.b16 %v33
  %v100 = vunpack.c.h.b16 %v33
  %v101 = vunpack.c.l.b16 %v34
  %v102 = vunpack.c.h.b16 %v34
  %v103 = vunpack.c.l.b16 %v35
  %v104 = vunpack.c.h.b16 %v35
  %v105 = vunpack.c.l.b16 %v36
  %v106 = vunpack.c.h.b16 %v36
  %v107 = vunpack.c.l.b16 %v37
  %v108 = vunpack.c.h.b16 %v37
  %v109 = vunpack.c.l.b16 %v38
  %v110 = vunpack.c.h.b16 %v38
  %v111 = vunpack.c.l.b16 %v39
  %v112 = vunpack.c.h.b16 %v39
  %v113 = vunpack.c.l.b16 %v40
  %v114 = vunpack.c.h.b16 %v40
  %v115 = vunpack.c.l.b16 %v41
  %v116 = vunpack.c.h.b16 %v41
  %v117 = vunpack.c.l.b16 %v42
  %v118 = vunpack.c.h.b16 %v42
  %v119 = vunpack.c.l.b16 %v43
  %v120 = vunpack.c.h.b16 %v43
  %v121 = vunpack.c.l.b16 %v44
  %v122 = vunpack.c.h.b16 %v44
  %v123 = vunpack.c.l.b16 %v45
  %v124 = vunpack.c.h.b16 %v45
  %v125 = vunpack.c.l.b16 %v46
  %v126 = vunpack.c.h.b16 %v46
  %v127 = vunpack.c.l.b16 %v47
  %v128 = vunpack.c.h.b16 %v47
  %v129 = vunpack.c.l.b16 %v48
  %v130 = vunpack.c.h.b16 %v48
  %v131 = vunpack.c.l.b16 %v49
  %v132 = vunpack.c.h.b16 %v49
  %v133 = vunpack.c.l.b16 %v50
  %v134 = vunpack.c.h.b16 %v50
  %v135 = vunpack.c.l.b16 %v51
  %v136 = vunpack.c.h.b16 %v51
  %v137 = vunpack.c.l.b16 %v52
  %v138 = vunpack.c.h.b16 %v52
  %v139 = vunpack.c.l.b16 %v53
  %v140 = vunpack.c.h.b16 %v53
  %v141 = vunpack.c.l.b16 %v54
  %v142 = vunpack.c.h.b16 %v54
  %v143 = vunpack.c.l.b16 %v55
  %v144 = vunpack.c.h.b16 %v55
  %v145 = vunpack.c.l.b16 %v56
  %v146 = vunpack.c.h.b16 %v56
  %v147 = vunpack.c.l.b16 %v57
  %v148 = vunpack.c.h.b16 %v57
  %v149 = vunpack.c.l.b16 %v58
  %v150 = vunpack.c.h.b16 %v58
  %v151 = vunpack.c.l.b16 %v59
  %v152 = vunpack.c.h.b16 %v59
  %v153 = vunpack.c.l.b16 %v60
  %v154 = vunpack.c.h.b16 %v60
  %v155 = vunpack.c.l.b16 %v61
  %v156 = vunpack.c.h.b16 %v61
  %v157 = vunpack.c.l.b16 %v62
  %v158 = vunpack.c.h.b16 %v62
  %v159 = vpack.c.b16 %v99, %v95
  %v160 = vpack.c.b16 %v100, %v96
  %v161 = vpack.c.b16 %v101, %v97
  %v162 = vpack.c.b16 %v102, %v98
  %v163 = vpack.c.b16 %v107, %v103
  %v164 = vpack.c.b16 %v108, %v104
  %v165 = vpack.c.b16 %v109, %v105
  %v166 = vpack.c.b16 %v110, %v106
  %v167 = vpack.c.b16 %v115, %v111
  %v168 = vpack.c.b16 %v116, %v112
  %v169 = vpack.c.b16 %v117, %v113
  %v170 = vpack.c.b16 %v118, %v114
  %v171 = vpack.c.b16 %v123, %v119
  %v172 = vpack.c.b16 %v124, %v120
  %v173 = vpack.c.b16 %v125, %v121
  %v174 = vpack.c.b16 %v126, %v122
  %v175 = vpack.c.b16 %v131, %v127
  %v176 = vpack.c.b16 %v132, %v128
  %v177 = vpack.c.b16 %v133, %v129
  %v178 = vpack.c.b16 %v134, %v130
  %v179 = vpack.c.b16 %v139, %v135
  %v180 = vpack.c.b16 %v140, %v136
  %v181 = vpack.c.b16 %v141, %v137
  %v182 = vpack.c.b16 %v142, %v138
  %v183 = vpack.c.b16 %v147, %v143
  %v184 = vpack.c.b16 %v148, %v144
  %v185 = vpack.c.b16 %v149, %v145
  %v186 = vpack.c.b16 %v150, %v146
  %v187 = vpack.c.b16 %v155, %v151
  %v188 = vpack.c.b16 %v156, %v152
  %v189 = vpack.c.b16 %v157, %v153
  %v190 = vpack.c.b16 %v158, %v154
  %223 = vmatprep.subr.bf16.mxu0 %v160
  %224 = vmatpush1.bf16.msra.mxu0 %v159
  %225 = vmatprep.subr.bf16.mxu0 %v164
  %226 = vmatpush1.bf16.msra.mxu0 %v163
  %227 = vmatprep.subr.bf16.mxu0 %v168
  %228 = vmatpush1.bf16.msra.mxu0 %v167
  %229 = vmatprep.subr.bf16.mxu0 %v172
  %230 = vmatpush1.bf16.msra.mxu0 %v171
  %231 = vmatprep.subr.bf16.mxu0 %v176
  %232 = vmatpush1.bf16.msra.mxu0 %v175
  %233 = vmatprep.subr.bf16.mxu0 %v180
  %234 = vmatpush1.bf16.msra.mxu0 %v179
  %235 = vmatprep.subr.bf16.mxu0 %v184
  %236 = vmatpush1.bf16.msra.mxu0 %v183
  %237 = vmatprep.subr.bf16.mxu0 %v188
  %238 = vmatpush1.bf16.msra.mxu0 %v187
  %239 = vmatprep.subr.bf16.mxu0 0
  %240 = vmatpush1.bf16.msra.mxu0 0
  %241 = vmatprep.subr.bf16.mxu0 0
  %242 = vmatpush1.bf16.msra.mxu0 0
  %243 = vmatprep.subr.bf16.mxu0 0
  %244 = vmatpush1.bf16.msra.mxu0 0
  %245 = vmatprep.subr.bf16.mxu0 0
  %246 = vmatpush1.bf16.msra.mxu0 0
  %247 = vmatprep.subr.bf16.mxu0 0
  %248 = vmatpush1.bf16.msra.mxu0 0
  %249 = vmatprep.subr.bf16.mxu0 0
  %250 = vmatpush1.bf16.msra.mxu0 0
  %251 = vmatprep.subr.bf16.mxu0 0
  %252 = vmatpush1.bf16.msra.mxu0 0
  %253 = vmatprep.subr.bf16.mxu0 0
  %254 = vmatpush1.bf16.msra.mxu0 0
  %255 = vmatprep.mubr.bf16.mxu0 0
  %256 = vmatmul.mubr.bf16.gmra.mrb[0].mxu0 %v30
  %v257 = vpop.f32.mrb[0].mxu0
  %v258 = vadd.f32 0.0, %v257
  %v259 = vpop.f32.mrb[0].mxu0
  %v260 = vadd.f32 0.0, %v259
  %v261 = vpop.f32.mrb[0].mxu0
  %v262 = vpop.f32.mrb[0].mxu0
  %263 = vdwg.mxu0
  %264 = vmatprep.subr.bf16.mxu0 %v162
  %265 = vmatpush1.bf16.msra.mxu0 %v161
  %266 = vmatprep.subr.bf16.mxu0 %v166
  %267 = vmatpush1.bf16.msra.mxu0 %v165
  %268 = vmatprep.subr.bf16.mxu0 %v170
  %269 = vmatpush1.bf16.msra.mxu0 %v169
  %270 = vmatprep.subr.bf16.mxu0 %v174
  %271 = vmatpush1.bf16.msra.mxu0 %v173
  %272 = vmatprep.subr.bf16.mxu0 %v178
  %273 = vmatpush1.bf16.msra.mxu0 %v177
  %274 = vmatprep.subr.bf16.mxu0 %v182
  %275 = vmatpush1.bf16.msra.mxu0 %v181
  %276 = vmatprep.subr.bf16.mxu0 %v186
  %277 = vmatpush1.bf16.msra.mxu0 %v185
  %278 = vmatprep.subr.bf16.mxu0 %v190
  %279 = vmatpush1.bf16.msra.mxu0 %v189
  %280 = vmatprep.subr.bf16.mxu0 0
  %281 = vmatpush1.bf16.msra.mxu0 0
  %282 = vmatprep.subr.bf16.mxu0 0
  %283 = vmatpush1.bf16.msra.mxu0 0
  %284 = vmatprep.subr.bf16.mxu0 0
  %285 = vmatpush1.bf16.msra.mxu0 0
  %286 = vmatprep.subr.bf16.mxu0 0
  %287 = vmatpush1.bf16.msra.mxu0 0
  %288 = vmatprep.subr.bf16.mxu0 0
  %289 = vmatpush1.bf16.msra.mxu0 0
  %290 = vmatprep.subr.bf16.mxu0 0
  %291 = vmatpush1.bf16.msra.mxu0 0
  %292 = vmatprep.subr.bf16.mxu0 0
  %293 = vmatpush1.bf16.msra.mxu0 0
  %294 = vmatprep.subr.bf16.mxu0 0
  %295 = vmatpush1.bf16.msra.mxu0 0
  %296 = vmatprep.mubr.bf16.mxu0 0
  %297 = vmatmul.mubr.bf16.gmra.mrb[0].mxu0 %v30
  %v298 = vpop.f32.mrb[0].mxu0
  %v299 = vadd.f32 0.0, %v298
  %v300 = vpop.f32.mrb[0].mxu0
  %v301 = vadd.f32 0.0, %v300
  %v302 = vpop.f32.mrb[0].mxu0
  %v303 = vpop.f32.mrb[0].mxu0
  %304 = vdwg.mxu0
  %v305 = vadd.f32 %v26, %v258
  %v306 = vadd.f32 %v27, %v260
  %v307 = vadd.f32 %v28, %v299
  %v308 = vadd.f32 %v29, %v301
  %v309 = vxor.u32 %v305, 2147483648
  %v310 = vmul.f32 %v309, 1.442695
  %v311 = vpow.pop %v310
  %v312 = vadd.f32 %v311, 1.0
  %v313 = vrcp.pop %v312
  %v314 = vmul.f32 1.0, %v313
  %v315 = vxor.u32 %v306, 2147483648
  %v316 = vmul.f32 %v315, 1.442695
  %v317 = vpow.pop %v316
  %v318 = vadd.f32 %v317, 1.0
  %v319 = vrcp.pop %v318
  %v320 = vmul.f32 1.0, %v319
  %v321 = vtanh.pop %v307
  %v322 = vxor.u32 %v308, 2147483648
  %v323 = vmul.f32 %v322, 1.442695
  %v324 = vpow.pop %v323
  %v325 = vadd.f32 %v324, 1.0
  %v326 = vrcp.pop %v325
  %v327 = vmul.f32 1.0, %v326
  %v328 = vmul.f32 %v320, %v25
  %v329 = vmul.f32 %v314, %v321
  %v330 = vadd.f32 %v328, %v329
  %v331 = vtanh.pop %v330
  %v332 = vmul.f32 %v327, %v331
  %s333 = scalar_lea.vmem %s0, 32
  %v334 = vld [vmem:[%s333] sm:$0xff]
  %v335 = vld [vmem:[%s333 + $0x8] sm:$0xff]
  %v336 = vld [vmem:[%s333 + $0x10] sm:$0xff]
  %v337 = vld [vmem:[%s333 + $0x18] sm:$0xff]
  %v338 = vpack.c.bf16 %v332, %v332
  %339 = vmatprep.subr.bf16.mxu0 %v160
  %340 = vmatpush1.bf16.msra.mxu0 %v159
  %341 = vmatprep.subr.bf16.mxu0 %v164
  %342 = vmatpush1.bf16.msra.mxu0 %v163
  %343 = vmatprep.subr.bf16.mxu0 %v168
  %344 = vmatpush1.bf16.msra.mxu0 %v167
  %345 = vmatprep.subr.bf16.mxu0 %v172
  %346 = vmatpush1.bf16.msra.mxu0 %v171
  %347 = vmatprep.subr.bf16.mxu0 %v176
  %348 = vmatpush1.bf16.msra.mxu0 %v175
  %349 = vmatprep.subr.bf16.mxu0 %v180
  %350 = vmatpush1.bf16.msra.mxu0 %v179
  %351 = vmatprep.subr.bf16.mxu0 %v184
  %352 = vmatpush1.bf16.msra.mxu0 %v183
  %353 = vmatprep.subr.bf16.mxu0 %v188
  %354 = vmatpush1.bf16.msra.mxu0 %v187
  %355 = vmatprep.subr.bf16.mxu0 0
  %356 = vmatpush1.bf16.msra.mxu0 0
  %357 = vmatprep.subr.bf16.mxu0 0
  %358 = vmatpush1.bf16.msra.mxu0 0
  %359 = vmatprep.subr.bf16.mxu0 0
  %360 = vmatpush1.bf16.msra.mxu0 0
  %361 = vmatprep.subr.bf16.mxu0 0
  %362 = vmatpush1.bf16.msra.mxu0 0
  %363 = vmatprep.subr.bf16.mxu0 0
  %364 = vmatpush1.bf16.msra.mxu0 0
  %365 = vmatprep.subr.bf16.mxu0 0
  %366 = vmatpush1.bf16.msra.mxu0 0
  %367 = vmatprep.subr.bf16.mxu0 0
  %368 = vmatpush1.bf16.msra.mxu0 0
  %369 = vmatprep.subr.bf16.mxu0 0
  %370 = vmatpush1.bf16.msra.mxu0 0
  %371 = vmatprep.mubr.bf16.mxu0 0
  %372 = vmatmul.mubr.bf16.gmra.mrb[0].mxu0 %v338
  %v373 = vpop.f32.mrb[0].mxu0
  %v374 = vadd.f32 0.0, %v373
  %v375 = vpop.f32.mrb[0].mxu0
  %v376 = vadd.f32 0.0, %v375
  %v377 = vpop.f32.mrb[0].mxu0
  %v378 = vpop.f32.mrb[0].mxu0
  %379 = vdwg.mxu0
  %380 = vmatprep.subr.bf16.mxu0 %v162
  %381 = vmatpush1.bf16.msra.mxu0 %v161
  %382 = vmatprep.subr.bf16.mxu0 %v166
  %383 = vmatpush1.bf16.msra.mxu0 %v165
  %384 = vmatprep.subr.bf16.mxu0 %v170
  %385 = vmatpush1.bf16.msra.mxu0 %v169
  %386 = vmatprep.subr.bf16.mxu0 %v174
  %387 = vmatpush1.bf16.msra.mxu0 %v173
  %388 = vmatprep.subr.bf16.mxu0 %v178
  %389 = vmatpush1.bf16.msra.mxu0 %v177
  %390 = vmatprep.subr.bf16.mxu0 %v182
  %391 = vmatpush1.bf16.msra.mxu0 %v181
  %392 = vmatprep.subr.bf16.mxu0 %v186
  %393 = vmatpush1.bf16.msra.mxu0 %v185
  %394 = vmatprep.subr.bf16.mxu0 %v190
  %395 = vmatpush1.bf16.msra.mxu0 %v189
  %396 = vmatprep.subr.bf16.mxu0 0
  %397 = vmatpush1.bf16.msra.mxu0 0
  %398 = vmatprep.subr.bf16.mxu0 0
  %399 = vmatpush1.bf16.msra.mxu0 0
  %400 = vmatprep.subr.bf16.mxu0 0
  %401 = vmatpush1.bf16.msra.mxu0 0
  %402 = vmatprep.subr.bf16.mxu0 0
  %403 = vmatpush1.bf16.msra.mxu0 0
  %404 = vmatprep.subr.bf16.mxu0 0
  %405 = vmatpush1.bf16.msra.mxu0 0
  %406 = vmatprep.subr.bf16.mxu0 0
  %407 = vmatpush1.bf16.msra.mxu0 0
  %408 = vmatprep.subr.bf16.mxu0 0
  %409 = vmatpush1.bf16.msra.mxu0 0
  %410 = vmatprep.subr.bf16.mxu0 0
  %411 = vmatpush1.bf16.msra.mxu0 0
  %412 = vmatprep.mubr.bf16.mxu0 0
  %413 = vmatmul.mubr.bf16.gmra.mrb[0].mxu0 %v338
  %v414 = vpop.f32.mrb[0].mxu0
  %v415 = vadd.f32 0.0, %v414
  %v416 = vpop.f32.mrb[0].mxu0
  %v417 = vadd.f32 0.0, %v416
  %v418 = vpop.f32.mrb[0].mxu0
  %v419 = vpop.f32.mrb[0].mxu0
  %420 = vdwg.mxu0
  %v421 = vadd.f32 %v334, %v374
  %v422 = vadd.f32 %v335, %v376
  %v423 = vadd.f32 %v336, %v415
  %v424 = vadd.f32 %v337, %v417
  %v425 = vxor.u32 %v421, 2147483648
  %v426 = vmul.f32 %v425, 1.442695
  %v427 = vpow.pop %v426
  %v428 = vadd.f32 %v427, 1.0
  %v429 = vrcp.pop %v428
  %v430 = vmul.f32 1.0, %v429
  %v431 = vxor.u32 %v422, 2147483648
  %v432 = vmul.f32 %v431, 1.442695
  %v433 = vpow.pop %v432
  %v434 = vadd.f32 %v433, 1.0
  %v435 = vrcp.pop %v434
  %v436 = vmul.f32 1.0, %v435
  %v437 = vtanh.pop %v423
  %v438 = vxor.u32 %v424, 2147483648
  %v439 = vmul.f32 %v438, 1.442695
  %v440 = vpow.pop %v439
  %v441 = vadd.f32 %v440, 1.0
  %v442 = vrcp.pop %v441
  %v443 = vmul.f32 1.0, %v442
  %v444 = vmul.f32 %v436, %v330
  %v445 = vmul.f32 %v430, %v437
  %v446 = vadd.f32 %v444, %v445
  %v447 = vtanh.pop %v446
  %v448 = vmul.f32 %v443, %v447
  %s449 = scalar_lea.vmem %s0, 64
  %v450 = vld [vmem:[%s449] sm:$0xff]
  %v451 = vld [vmem:[%s449 + $0x8] sm:$0xff]
  %v452 = vld [vmem:[%s449 + $0x10] sm:$0xff]
  %v453 = vld [vmem:[%s449 + $0x18] sm:$0xff]
  %v454 = vpack.c.bf16 %v448, %v448
  %455 = vmatprep.subr.bf16.mxu0 %v160
  %456 = vmatpush1.bf16.msra.mxu0 %v159
  %457 = vmatprep.subr.bf16.mxu0 %v164
  %458 = vmatpush1.bf16.msra.mxu0 %v163
  %459 = vmatprep.subr.bf16.mxu0 %v168
  %460 = vmatpush1.bf16.msra.mxu0 %v167
  %461 = vmatprep.subr.bf16.mxu0 %v172
  %462 = vmatpush1.bf16.msra.mxu0 %v171
  %463 = vmatprep.subr.bf16.mxu0 %v176
  %464 = vmatpush1.bf16.msra.mxu0 %v175
  %465 = vmatprep.subr.bf16.mxu0 %v180
  %466 = vmatpush1.bf16.msra.mxu0 %v179
  %467 = vmatprep.subr.bf16.mxu0 %v184
  %468 = vmatpush1.bf16.msra.mxu0 %v183
  %469 = vmatprep.subr.bf16.mxu0 %v188
  %470 = vmatpush1.bf16.msra.mxu0 %v187
  %471 = vmatprep.subr.bf16.mxu0 0
  %472 = vmatpush1.bf16.msra.mxu0 0
  %473 = vmatprep.subr.bf16.mxu0 0
  %474 = vmatpush1.bf16.msra.mxu0 0
  %475 = vmatprep.subr.bf16.mxu0 0
  %476 = vmatpush1.bf16.msra.mxu0 0
  %477 = vmatprep.subr.bf16.mxu0 0
  %478 = vmatpush1.bf16.msra.mxu0 0
  %479 = vmatprep.subr.bf16.mxu0 0
  %480 = vmatpush1.bf16.msra.mxu0 0
  %481 = vmatprep.subr.bf16.mxu0 0
  %482 = vmatpush1.bf16.msra.mxu0 0
  %483 = vmatprep.subr.bf16.mxu0 0
  %484 = vmatpush1.bf16.msra.mxu0 0
  %485 = vmatprep.subr.bf16.mxu0 0
  %486 = vmatpush1.bf16.msra.mxu0 0
  %487 = vmatprep.mubr.bf16.mxu0 0
  %488 = vmatmul.mubr.bf16.gmra.mrb[0].mxu0 %v454
  %v489 = vpop.f32.mrb[0].mxu0
  %v490 = vadd.f32 0.0, %v489
  %v491 = vpop.f32.mrb[0].mxu0
  %v492 = vadd.f32 0.0, %v491
  %v493 = vpop.f32.mrb[0].mxu0
  %v494 = vpop.f32.mrb[0].mxu0
  %495 = vdwg.mxu0
  %496 = vmatprep.subr.bf16.mxu0 %v162
  %497 = vmatpush1.bf16.msra.mxu0 %v161
  %498 = vmatprep.subr.bf16.mxu0 %v166
  %499 = vmatpush1.bf16.msra.mxu0 %v165
  %500 = vmatprep.subr.bf16.mxu0 %v170
  %501 = vmatpush1.bf16.msra.mxu0 %v169
  %502 = vmatprep.subr.bf16.mxu0 %v174
  %503 = vmatpush1.bf16.msra.mxu0 %v173
  %504 = vmatprep.subr.bf16.mxu0 %v178
  %505 = vmatpush1.bf16.msra.mxu0 %v177
  %506 = vmatprep.subr.bf16.mxu0 %v182
  %507 = vmatpush1.bf16.msra.mxu0 %v181
  %508 = vmatprep.subr.bf16.mxu0 %v186
  %509 = vmatpush1.bf16.msra.mxu0 %v185
  %510 = vmatprep.subr.bf16.mxu0 %v190
  %511 = vmatpush1.bf16.msra.mxu0 %v189
  %512 = vmatprep.subr.bf16.mxu0 0
  %513 = vmatpush1.bf16.msra.mxu0 0
  %514 = vmatprep.subr.bf16.mxu0 0
  %515 = vmatpush1.bf16.msra.mxu0 0
  %516 = vmatprep.subr.bf16.mxu0 0
  %517 = vmatpush1.bf16.msra.mxu0 0
  %518 = vmatprep.subr.bf16.mxu0 0
  %519 = vmatpush1.bf16.msra.mxu0 0
  %520 = vmatprep.subr.bf16.mxu0 0
  %521 = vmatpush1.bf16.msra.mxu0 0
  %522 = vmatprep.subr.bf16.mxu0 0
  %523 = vmatpush1.bf16.msra.mxu0 0
  %524 = vmatprep.subr.bf16.mxu0 0
  %525 = vmatpush1.bf16.msra.mxu0 0
  %526 = vmatprep.subr.bf16.mxu0 0
  %527 = vmatpush1.bf16.msra.mxu0 0
  %528 = vmatprep.mubr.bf16.mxu0 0
  %529 = vmatmul.mubr.bf16.gmra.mrb[0].mxu0 %v454
  %v530 = vpop.f32.mrb[0].mxu0
  %v531 = vadd.f32 0.0, %v530
  %v532 = vpop.f32.mrb[0].mxu0
  %v533 = vadd.f32 0.0, %v532
  %v534 = vpop.f32.mrb[0].mxu0
  %v535 = vpop.f32.mrb[0].mxu0
  %536 = vdwg.mxu0
  %v537 = vadd.f32 %v450, %v490
  %v538 = vadd.f32 %v451, %v492
  %v539 = vadd.f32 %v452, %v531
  %v540 = vadd.f32 %v453, %v533
  %v541 = vxor.u32 %v537, 2147483648
  %v542 = vmul.f32 %v541, 1.442695
  %v543 = vpow.pop %v542
  %v544 = vadd.f32 %v543, 1.0
  %v545 = vrcp.pop %v544
  %v546 = vmul.f32 1.0, %v545
  %v547 = vxor.u32 %v538, 2147483648
  %v548 = vmul.f32 %v547, 1.442695
  %v549 = vpow.pop %v548
  %v550 = vadd.f32 %v549, 1.0
  %v551 = vrcp.pop %v550
  %v552 = vmul.f32 1.0, %v551
  %v553 = vtanh.pop %v539
  %v554 = vxor.u32 %v540, 2147483648
  %v555 = vmul.f32 %v554, 1.442695
  %v556 = vpow.pop %v555
  %v557 = vadd.f32 %v556, 1.0
  %v558 = vrcp.pop %v557
  %v559 = vmul.f32 1.0, %v558
  %v560 = vmul.f32 %v552, %v446
  %v561 = vmul.f32 %v546, %v553
  %v562 = vadd.f32 %v560, %v561
  %v563 = vtanh.pop %v562
  %v564 = vmul.f32 %v559, %v563
  %s565 = scalar_lea.vmem %s0, 96
  %v566 = vld [vmem:[%s565] sm:$0xff]
  %v567 = vld [vmem:[%s565 + $0x8] sm:$0xff]
  %v568 = vld [vmem:[%s565 + $0x10] sm:$0xff]
  %v569 = vld [vmem:[%s565 + $0x18] sm:$0xff]
  %v570 = vpack.c.bf16 %v564, %v564
  %571 = vmatprep.subr.bf16.mxu0 %v160
  %572 = vmatpush1.bf16.msra.mxu0 %v159
  %573 = vmatprep.subr.bf16.mxu0 %v164
  %574 = vmatpush1.bf16.msra.mxu0 %v163
  %575 = vmatprep.subr.bf16.mxu0 %v168
  %576 = vmatpush1.bf16.msra.mxu0 %v167
  %577 = vmatprep.subr.bf16.mxu0 %v172
  %578 = vmatpush1.bf16.msra.mxu0 %v171
  %579 = vmatprep.subr.bf16.mxu0 %v176
  %580 = vmatpush1.bf16.msra.mxu0 %v175
  %581 = vmatprep.subr.bf16.mxu0 %v180
  %582 = vmatpush1.bf16.msra.mxu0 %v179
  %583 = vmatprep.subr.bf16.mxu0 %v184
  %584 = vmatpush1.bf16.msra.mxu0 %v183
  %585 = vmatprep.subr.bf16.mxu0 %v188
  %586 = vmatpush1.bf16.msra.mxu0 %v187
  %587 = vmatprep.subr.bf16.mxu0 0
  %588 = vmatpush1.bf16.msra.mxu0 0
  %589 = vmatprep.subr.bf16.mxu0 0
  %590 = vmatpush1.bf16.msra.mxu0 0
  %591 = vmatprep.subr.bf16.mxu0 0
  %592 = vmatpush1.bf16.msra.mxu0 0
  %593 = vmatprep.subr.bf16.mxu0 0
  %594 = vmatpush1.bf16.msra.mxu0 0
  %595 = vmatprep.subr.bf16.mxu0 0
  %596 = vmatpush1.bf16.msra.mxu0 0
  %597 = vmatprep.subr.bf16.mxu0 0
  %598 = vmatpush1.bf16.msra.mxu0 0
  %599 = vmatprep.subr.bf16.mxu0 0
  %600 = vmatpush1.bf16.msra.mxu0 0
  %601 = vmatprep.subr.bf16.mxu0 0
  %602 = vmatpush1.bf16.msra.mxu0 0
  %603 = vmatprep.mubr.bf16.mxu0 0
  %604 = vmatmul.mubr.bf16.gmra.mrb[0].mxu0 %v570
  %v605 = vpop.f32.mrb[0].mxu0
  %v606 = vadd.f32 0.0, %v605
  %v607 = vpop.f32.mrb[0].mxu0
  %v608 = vadd.f32 0.0, %v607
  %v609 = vpop.f32.mrb[0].mxu0
  %v610 = vpop.f32.mrb[0].mxu0
  %611 = vdwg.mxu0
  %612 = vmatprep.subr.bf16.mxu0 %v162
  %613 = vmatpush1.bf16.msra.mxu0 %v161
  %614 = vmatprep.subr.bf16.mxu0 %v166
  %615 = vmatpush1.bf16.msra.mxu0 %v165
  %616 = vmatprep.subr.bf16.mxu0 %v170
  %617 = vmatpush1.bf16.msra.mxu0 %v169
  %618 = vmatprep.subr.bf16.mxu0 %v174
  %619 = vmatpush1.bf16.msra.mxu0 %v173
  %620 = vmatprep.subr.bf16.mxu0 %v178
  %621 = vmatpush1.bf16.msra.mxu0 %v177
  %622 = vmatprep.subr.bf16.mxu0 %v182
  %623 = vmatpush1.bf16.msra.mxu0 %v181
  %624 = vmatprep.subr.bf16.mxu0 %v186
  %625 = vmatpush1.bf16.msra.mxu0 %v185
  %626 = vmatprep.subr.bf16.mxu0 %v190
  %627 = vmatpush1.bf16.msra.mxu0 %v189
  %628 = vmatprep.subr.bf16.mxu0 0
  %629 = vmatpush1.bf16.msra.mxu0 0
  %630 = vmatprep.subr.bf16.mxu0 0
  %631 = vmatpush1.bf16.msra.mxu0 0
  %632 = vmatprep.subr.bf16.mxu0 0
  %633 = vmatpush1.bf16.msra.mxu0 0
  %634 = vmatprep.subr.bf16.mxu0 0
  %635 = vmatpush1.bf16.msra.mxu0 0
  %636 = vmatprep.subr.bf16.mxu0 0
  %637 = vmatpush1.bf16.msra.mxu0 0
  %638 = vmatprep.subr.bf16.mxu0 0
  %639 = vmatpush1.bf16.msra.mxu0 0
  %640 = vmatprep.subr.bf16.mxu0 0
  %641 = vmatpush1.bf16.msra.mxu0 0
  %642 = vmatprep.subr.bf16.mxu0 0
  %643 = vmatpush1.bf16.msra.mxu0 0
  %644 = vmatprep.mubr.bf16.mxu0 0
  %645 = vmatmul.mubr.bf16.gmra.mrb[0].mxu0 %v570
  %v646 = vpop.f32.mrb[0].mxu0
  %v647 = vadd.f32 0.0, %v646
  %v648 = vpop.f32.mrb[0].mxu0
  %v649 = vadd.f32 0.0, %v648
  %v650 = vpop.f32.mrb[0].mxu0
  %v651 = vpop.f32.mrb[0].mxu0
  %652 = vdwg.mxu0
  %v653 = vadd.f32 %v566, %v606
  %v654 = vadd.f32 %v567, %v608
  %v655 = vadd.f32 %v568, %v647
  %v656 = vadd.f32 %v569, %v649
  %v657 = vxor.u32 %v653, 2147483648
  %v658 = vmul.f32 %v657, 1.442695
  %v659 = vpow.pop %v658
  %v660 = vadd.f32 %v659, 1.0
  %v661 = vrcp.pop %v660
  %v662 = vmul.f32 1.0, %v661
  %v663 = vxor.u32 %v654, 2147483648
  %v664 = vmul.f32 %v663, 1.442695
  %v665 = vpow.pop %v664
  %v666 = vadd.f32 %v665, 1.0
  %v667 = vrcp.pop %v666
  %v668 = vmul.f32 1.0, %v667
  %v669 = vtanh.pop %v655
  %v670 = vxor.u32 %v656, 2147483648
  %v671 = vmul.f32 %v670, 1.442695
  %v672 = vpow.pop %v671
  %v673 = vadd.f32 %v672, 1.0
  %v674 = vrcp.pop %v673
  %v675 = vmul.f32 1.0, %v674
  %v676 = vmul.f32 %v668, %v562
  %v677 = vmul.f32 %v662, %v669
  %v678 = vadd.f32 %v676, %v677
  %v679 = vtanh.pop %v678
  %v680 = vmul.f32 %v675, %v679
  %s681 = scalar_lea.vmem %s0, 128
  %v682 = vld [vmem:[%s681] sm:$0xff]
  %v683 = vld [vmem:[%s681 + $0x8] sm:$0xff]
  %v684 = vld [vmem:[%s681 + $0x10] sm:$0xff]
  %v685 = vld [vmem:[%s681 + $0x18] sm:$0xff]
  %v686 = vpack.c.bf16 %v680, %v680
  %687 = vmatprep.subr.bf16.mxu0 %v160
  %688 = vmatpush1.bf16.msra.mxu0 %v159
  %689 = vmatprep.subr.bf16.mxu0 %v164
  %690 = vmatpush1.bf16.msra.mxu0 %v163
  %691 = vmatprep.subr.bf16.mxu0 %v168
  %692 = vmatpush1.bf16.msra.mxu0 %v167
  %693 = vmatprep.subr.bf16.mxu0 %v172
  %694 = vmatpush1.bf16.msra.mxu0 %v171
  %695 = vmatprep.subr.bf16.mxu0 %v176
  %696 = vmatpush1.bf16.msra.mxu0 %v175
  %697 = vmatprep.subr.bf16.mxu0 %v180
  %698 = vmatpush1.bf16.msra.mxu0 %v179
  %699 = vmatprep.subr.bf16.mxu0 %v184
  %700 = vmatpush1.bf16.msra.mxu0 %v183
  %701 = vmatprep.subr.bf16.mxu0 %v188
  %702 = vmatpush1.bf16.msra.mxu0 %v187
  %703 = vmatprep.subr.bf16.mxu0 0
  %704 = vmatpush1.bf16.msra.mxu0 0
  %705 = vmatprep.subr.bf16.mxu0 0
  %706 = vmatpush1.bf16.msra.mxu0 0
  %707 = vmatprep.subr.bf16.mxu0 0
  %708 = vmatpush1.bf16.msra.mxu0 0
  %709 = vmatprep.subr.bf16.mxu0 0
  %710 = vmatpush1.bf16.msra.mxu0 0
  %711 = vmatprep.subr.bf16.mxu0 0
  %712 = vmatpush1.bf16.msra.mxu0 0
  %713 = vmatprep.subr.bf16.mxu0 0
  %714 = vmatpush1.bf16.msra.mxu0 0
  %715 = vmatprep.subr.bf16.mxu0 0
  %716 = vmatpush1.bf16.msra.mxu0 0
  %717 = vmatprep.subr.bf16.mxu0 0
  %718 = vmatpush1.bf16.msra.mxu0 0
  %719 = vmatprep.mubr.bf16.mxu0 0
  %720 = vmatmul.mubr.bf16.gmra.mrb[0].mxu0 %v686
  %v721 = vpop.f32.mrb[0].mxu0
  %v722 = vadd.f32 0.0, %v721
  %v723 = vpop.f32.mrb[0].mxu0
  %v724 = vadd.f32 0.0, %v723
  %v725 = vpop.f32.mrb[0].mxu0
  %v726 = vpop.f32.mrb[0].mxu0
  %727 = vdwg.mxu0
  %728 = vmatprep.subr.bf16.mxu0 %v162
  %729 = vmatpush1.bf16.msra.mxu0 %v161
  %730 = vmatprep.subr.bf16.mxu0 %v166
  %731 = vmatpush1.bf16.msra.mxu0 %v165
  %732 = vmatprep.subr.bf16.mxu0 %v170
  %733 = vmatpush1.bf16.msra.mxu0 %v169
  %734 = vmatprep.subr.bf16.mxu0 %v174
  %735 = vmatpush1.bf16.msra.mxu0 %v173
  %736 = vmatprep.subr.bf16.mxu0 %v178
  %737 = vmatpush1.bf16.msra.mxu0 %v177
  %738 = vmatprep.subr.bf16.mxu0 %v182
  %739 = vmatpush1.bf16.msra.mxu0 %v181
  %740 = vmatprep.subr.bf16.mxu0 %v186
  %741 = vmatpush1.bf16.msra.mxu0 %v185
  %742 = vmatprep.subr.bf16.mxu0 %v190
  %743 = vmatpush1.bf16.msra.mxu0 %v189
  %744 = vmatprep.subr.bf16.mxu0 0
  %745 = vmatpush1.bf16.msra.mxu0 0
  %746 = vmatprep.subr.bf16.mxu0 0
  %747 = vmatpush1.bf16.msra.mxu0 0
  %748 = vmatprep.subr.bf16.mxu0 0
  %749 = vmatpush1.bf16.msra.mxu0 0
  %750 = vmatprep.subr.bf16.mxu0 0
  %751 = vmatpush1.bf16.msra.mxu0 0
  %752 = vmatprep.subr.bf16.mxu0 0
  %753 = vmatpush1.bf16.msra.mxu0 0
  %754 = vmatprep.subr.bf16.mxu0 0
  %755 = vmatpush1.bf16.msra.mxu0 0
  %756 = vmatprep.subr.bf16.mxu0 0
  %757 = vmatpush1.bf16.msra.mxu0 0
  %758 = vmatprep.subr.bf16.mxu0 0
  %759 = vmatpush1.bf16.msra.mxu0 0
  %760 = vmatprep.mubr.bf16.mxu0 0
  %761 = vmatmul.mubr.bf16.gmra.mrb[0].mxu0 %v686
  %v762 = vpop.f32.mrb[0].mxu0
  %v763 = vadd.f32 0.0, %v762
  %v764 = vpop.f32.mrb[0].mxu0
  %v765 = vadd.f32 0.0, %v764
  %v766 = vpop.f32.mrb[0].mxu0
  %v767 = vpop.f32.mrb[0].mxu0
  %768 = vdwg.mxu0
  %v769 = vadd.f32 %v682, %v722
  %v770 = vadd.f32 %v683, %v724
  %v771 = vadd.f32 %v684, %v763
  %v772 = vadd.f32 %v685, %v765
  %v773 = vxor.u32 %v769, 2147483648
  %v774 = vmul.f32 %v773, 1.442695
  %v775 = vpow.pop %v774
  %v776 = vadd.f32 %v775, 1.0
  %v777 = vrcp.pop %v776
  %v778 = vmul.f32 1.0, %v777
  %v779 = vxor.u32 %v770, 2147483648
  %v780 = vmul.f32 %v779, 1.442695
  %v781 = vpow.pop %v780
  %v782 = vadd.f32 %v781, 1.0
  %v783 = vrcp.pop %v782
  %v784 = vmul.f32 1.0, %v783
  %v785 = vtanh.pop %v771
  %v786 = vxor.u32 %v772, 2147483648
  %v787 = vmul.f32 %v786, 1.442695
  %v788 = vpow.pop %v787
  %v789 = vadd.f32 %v788, 1.0
  %v790 = vrcp.pop %v789
  %v791 = vmul.f32 1.0, %v790
  %v792 = vmul.f32 %v784, %v678
  %v793 = vmul.f32 %v778, %v785
  %v794 = vadd.f32 %v792, %v793
  %v795 = vtanh.pop %v794
  %v796 = vmul.f32 %v791, %v795
  %s797 = scalar_lea.vmem %s0, 160
  %v798 = vld [vmem:[%s797] sm:$0xff]
  %v799 = vld [vmem:[%s797 + $0x8] sm:$0xff]
  %v800 = vld [vmem:[%s797 + $0x10] sm:$0xff]
  %v801 = vld [vmem:[%s797 + $0x18] sm:$0xff]
  %v802 = vpack.c.bf16 %v796, %v796
  %803 = vmatprep.subr.bf16.mxu0 %v160
  %804 = vmatpush1.bf16.msra.mxu0 %v159
  %805 = vmatprep.subr.bf16.mxu0 %v164
  %806 = vmatpush1.bf16.msra.mxu0 %v163
  %807 = vmatprep.subr.bf16.mxu0 %v168
  %808 = vmatpush1.bf16.msra.mxu0 %v167
  %809 = vmatprep.subr.bf16.mxu0 %v172
  %810 = vmatpush1.bf16.msra.mxu0 %v171
  %811 = vmatprep.subr.bf16.mxu0 %v176
  %812 = vmatpush1.bf16.msra.mxu0 %v175
  %813 = vmatprep.subr.bf16.mxu0 %v180
  %814 = vmatpush1.bf16.msra.mxu0 %v179
  %815 = vmatprep.subr.bf16.mxu0 %v184
  %816 = vmatpush1.bf16.msra.mxu0 %v183
  %817 = vmatprep.subr.bf16.mxu0 %v188
  %818 = vmatpush1.bf16.msra.mxu0 %v187
  %819 = vmatprep.subr.bf16.mxu0 0
  %820 = vmatpush1.bf16.msra.mxu0 0
  %821 = vmatprep.subr.bf16.mxu0 0
  %822 = vmatpush1.bf16.msra.mxu0 0
  %823 = vmatprep.subr.bf16.mxu0 0
  %824 = vmatpush1.bf16.msra.mxu0 0
  %825 = vmatprep.subr.bf16.mxu0 0
  %826 = vmatpush1.bf16.msra.mxu0 0
  %827 = vmatprep.subr.bf16.mxu0 0
  %828 = vmatpush1.bf16.msra.mxu0 0
  %829 = vmatprep.subr.bf16.mxu0 0
  %830 = vmatpush1.bf16.msra.mxu0 0
  %831 = vmatprep.subr.bf16.mxu0 0
  %832 = vmatpush1.bf16.msra.mxu0 0
  %833 = vmatprep.subr.bf16.mxu0 0
  %834 = vmatpush1.bf16.msra.mxu0 0
  %835 = vmatprep.mubr.bf16.mxu0 0
  %836 = vmatmul.mubr.bf16.gmra.mrb[0].mxu0 %v802
  %v837 = vpop.f32.mrb[0].mxu0
  %v838 = vadd.f32 0.0, %v837
  %v839 = vpop.f32.mrb[0].mxu0
  %v840 = vadd.f32 0.0, %v839
  %v841 = vpop.f32.mrb[0].mxu0
  %v842 = vpop.f32.mrb[0].mxu0
  %843 = vdwg.mxu0
  %844 = vmatprep.subr.bf16.mxu0 %v162
  %845 = vmatpush1.bf16.msra.mxu0 %v161
  %846 = vmatprep.subr.bf16.mxu0 %v166
  %847 = vmatpush1.bf16.msra.mxu0 %v165
  %848 = vmatprep.subr.bf16.mxu0 %v170
  %849 = vmatpush1.bf16.msra.mxu0 %v169
  %850 = vmatprep.subr.bf16.mxu0 %v174
  %851 = vmatpush1.bf16.msra.mxu0 %v173
  %852 = vmatprep.subr.bf16.mxu0 %v178
  %853 = vmatpush1.bf16.msra.mxu0 %v177
  %854 = vmatprep.subr.bf16.mxu0 %v182
  %855 = vmatpush1.bf16.msra.mxu0 %v181
  %856 = vmatprep.subr.bf16.mxu0 %v186
  %857 = vmatpush1.bf16.msra.mxu0 %v185
  %858 = vmatprep.subr.bf16.mxu0 %v190
  %859 = vmatpush1.bf16.msra.mxu0 %v189
  %860 = vmatprep.subr.bf16.mxu0 0
  %861 = vmatpush1.bf16.msra.mxu0 0
  %862 = vmatprep.subr.bf16.mxu0 0
  %863 = vmatpush1.bf16.msra.mxu0 0
  %864 = vmatprep.subr.bf16.mxu0 0
  %865 = vmatpush1.bf16.msra.mxu0 0
  %866 = vmatprep.subr.bf16.mxu0 0
  %867 = vmatpush1.bf16.msra.mxu0 0
  %868 = vmatprep.subr.bf16.mxu0 0
  %869 = vmatpush1.bf16.msra.mxu0 0
  %870 = vmatprep.subr.bf16.mxu0 0
  %871 = vmatpush1.bf16.msra.mxu0 0
  %872 = vmatprep.subr.bf16.mxu0 0
  %873 = vmatpush1.bf16.msra.mxu0 0
  %874 = vmatprep.subr.bf16.mxu0 0
  %875 = vmatpush1.bf16.msra.mxu0 0
  %876 = vmatprep.mubr.bf16.mxu0 0
  %877 = vmatmul.mubr.bf16.gmra.mrb[0].mxu0 %v802
  %v878 = vpop.f32.mrb[0].mxu0
  %v879 = vadd.f32 0.0, %v878
  %v880 = vpop.f32.mrb[0].mxu0
  %v881 = vadd.f32 0.0, %v880
  %v882 = vpop.f32.mrb[0].mxu0
  %v883 = vpop.f32.mrb[0].mxu0
  %884 = vdwg.mxu0
  %v885 = vadd.f32 %v798, %v838
  %v886 = vadd.f32 %v799, %v840
  %v887 = vadd.f32 %v800, %v879
  %v888 = vadd.f32 %v801, %v881
  %v889 = vxor.u32 %v885, 2147483648
  %v890 = vmul.f32 %v889, 1.442695
  %v891 = vpow.pop %v890
  %v892 = vadd.f32 %v891, 1.0
  %v893 = vrcp.pop %v892
  %v894 = vmul.f32 1.0, %v893
  %v895 = vxor.u32 %v886, 2147483648
  %v896 = vmul.f32 %v895, 1.442695
  %v897 = vpow.pop %v896
  %v898 = vadd.f32 %v897, 1.0
  %v899 = vrcp.pop %v898
  %v900 = vmul.f32 1.0, %v899
  %v901 = vtanh.pop %v887
  %v902 = vxor.u32 %v888, 2147483648
  %v903 = vmul.f32 %v902, 1.442695
  %v904 = vpow.pop %v903
  %v905 = vadd.f32 %v904, 1.0
  %v906 = vrcp.pop %v905
  %v907 = vmul.f32 1.0, %v906
  %v908 = vmul.f32 %v900, %v794
  %v909 = vmul.f32 %v894, %v901
  %v910 = vadd.f32 %v908, %v909
  %v911 = vtanh.pop %v910
  %v912 = vmul.f32 %v907, %v911
  %s913 = scalar_lea.vmem %s0, 192
  %v914 = vld [vmem:[%s913] sm:$0xff]
  %v915 = vld [vmem:[%s913 + $0x8] sm:$0xff]
  %v916 = vld [vmem:[%s913 + $0x10] sm:$0xff]
  %v917 = vld [vmem:[%s913 + $0x18] sm:$0xff]
  %v918 = vpack.c.bf16 %v912, %v912
  %919 = vmatprep.subr.bf16.mxu0 %v160
  %920 = vmatpush1.bf16.msra.mxu0 %v159
  %921 = vmatprep.subr.bf16.mxu0 %v164
  %922 = vmatpush1.bf16.msra.mxu0 %v163
  %923 = vmatprep.subr.bf16.mxu0 %v168
  %924 = vmatpush1.bf16.msra.mxu0 %v167
  %925 = vmatprep.subr.bf16.mxu0 %v172
  %926 = vmatpush1.bf16.msra.mxu0 %v171
  %927 = vmatprep.subr.bf16.mxu0 %v176
  %928 = vmatpush1.bf16.msra.mxu0 %v175
  %929 = vmatprep.subr.bf16.mxu0 %v180
  %930 = vmatpush1.bf16.msra.mxu0 %v179
  %931 = vmatprep.subr.bf16.mxu0 %v184
  %932 = vmatpush1.bf16.msra.mxu0 %v183
  %933 = vmatprep.subr.bf16.mxu0 %v188
  %934 = vmatpush1.bf16.msra.mxu0 %v187
  %935 = vmatprep.subr.bf16.mxu0 0
  %936 = vmatpush1.bf16.msra.mxu0 0
  %937 = vmatprep.subr.bf16.mxu0 0
  %938 = vmatpush1.bf16.msra.mxu0 0
  %939 = vmatprep.subr.bf16.mxu0 0
  %940 = vmatpush1.bf16.msra.mxu0 0
  %941 = vmatprep.subr.bf16.mxu0 0
  %942 = vmatpush1.bf16.msra.mxu0 0
  %943 = vmatprep.subr.bf16.mxu0 0
  %944 = vmatpush1.bf16.msra.mxu0 0
  %945 = vmatprep.subr.bf16.mxu0 0
  %946 = vmatpush1.bf16.msra.mxu0 0
  %947 = vmatprep.subr.bf16.mxu0 0
  %948 = vmatpush1.bf16.msra.mxu0 0
  %949 = vmatprep.subr.bf16.mxu0 0
  %950 = vmatpush1.bf16.msra.mxu0 0
  %951 = vmatprep.mubr.bf16.mxu0 0
  %952 = vmatmul.mubr.bf16.gmra.mrb[0].mxu0 %v918
  %v953 = vpop.f32.mrb[0].mxu0
  %v954 = vadd.f32 0.0, %v953
  %v955 = vpop.f32.mrb[0].mxu0
  %v956 = vadd.f32 0.0, %v955
  %v957 = vpop.f32.mrb[0].mxu0
  %v958 = vpop.f32.mrb[0].mxu0
  %959 = vdwg.mxu0
  %960 = vmatprep.subr.bf16.mxu0 %v162
  %961 = vmatpush1.bf16.msra.mxu0 %v161
  %962 = vmatprep.subr.bf16.mxu0 %v166
  %963 = vmatpush1.bf16.msra.mxu0 %v165
  %964 = vmatprep.subr.bf16.mxu0 %v170
  %965 = vmatpush1.bf16.msra.mxu0 %v169
  %966 = vmatprep.subr.bf16.mxu0 %v174
  %967 = vmatpush1.bf16.msra.mxu0 %v173
  %968 = vmatprep.subr.bf16.mxu0 %v178
  %969 = vmatpush1.bf16.msra.mxu0 %v177
  %970 = vmatprep.subr.bf16.mxu0 %v182
  %971 = vmatpush1.bf16.msra.mxu0 %v181
  %972 = vmatprep.subr.bf16.mxu0 %v186
  %973 = vmatpush1.bf16.msra.mxu0 %v185
  %974 = vmatprep.subr.bf16.mxu0 %v190
  %975 = vmatpush1.bf16.msra.mxu0 %v189
  %976 = vmatprep.subr.bf16.mxu0 0
  %977 = vmatpush1.bf16.msra.mxu0 0
  %978 = vmatprep.subr.bf16.mxu0 0
  %979 = vmatpush1.bf16.msra.mxu0 0
  %980 = vmatprep.subr.bf16.mxu0 0
  %981 = vmatpush1.bf16.msra.mxu0 0
  %982 = vmatprep.subr.bf16.mxu0 0
  %983 = vmatpush1.bf16.msra.mxu0 0
  %984 = vmatprep.subr.bf16.mxu0 0
  %985 = vmatpush1.bf16.msra.mxu0 0
  %986 = vmatprep.subr.bf16.mxu0 0
  %987 = vmatpush1.bf16.msra.mxu0 0
  %988 = vmatprep.subr.bf16.mxu0 0
  %989 = vmatpush1.bf16.msra.mxu0 0
  %990 = vmatprep.subr.bf16.mxu0 0
  %991 = vmatpush1.bf16.msra.mxu0 0
  %992 = vmatprep.mubr.bf16.mxu0 0
  %993 = vmatmul.mubr.bf16.gmra.mrb[0].mxu0 %v918
  %v994 = vpop.f32.mrb[0].mxu0
  %v995 = vadd.f32 0.0, %v994
  %v996 = vpop.f32.mrb[0].mxu0
  %v997 = vadd.f32 0.0, %v996
  %v998 = vpop.f32.mrb[0].mxu0
  %v999 = vpop.f32.mrb[0].mxu0
  %1000 = vdwg.mxu0
  %v1001 = vadd.f32 %v914, %v954
  %v1002 = vadd.f32 %v915, %v956
  %v1003 = vadd.f32 %v916, %v995
  %v1004 = vadd.f32 %v917, %v997
  %v1005 = vxor.u32 %v1001, 2147483648
  %v1006 = vmul.f32 %v1005, 1.442695
  %v1007 = vpow.pop %v1006
  %v1008 = vadd.f32 %v1007, 1.0
  %v1009 = vrcp.pop %v1008
  %v1010 = vmul.f32 1.0, %v1009
  %v1011 = vxor.u32 %v1002, 2147483648
  %v1012 = vmul.f32 %v1011, 1.442695
  %v1013 = vpow.pop %v1012
  %v1014 = vadd.f32 %v1013, 1.0
  %v1015 = vrcp.pop %v1014
  %v1016 = vmul.f32 1.0, %v1015
  %v1017 = vtanh.pop %v1003
  %v1018 = vxor.u32 %v1004, 2147483648
  %v1019 = vmul.f32 %v1018, 1.442695
  %v1020 = vpow.pop %v1019
  %v1021 = vadd.f32 %v1020, 1.0
  %v1022 = vrcp.pop %v1021
  %v1023 = vmul.f32 1.0, %v1022
  %v1024 = vmul.f32 %v1016, %v910
  %v1025 = vmul.f32 %v1010, %v1017
  %v1026 = vadd.f32 %v1024, %v1025
  %v1027 = vtanh.pop %v1026
  %v1028 = vmul.f32 %v1023, %v1027
  %s1029 = scalar_lea.vmem %s0, 224
  %v1030 = vld [vmem:[%s1029] sm:$0xff]
  %v1031 = vld [vmem:[%s1029 + $0x8] sm:$0xff]
  %v1032 = vld [vmem:[%s1029 + $0x10] sm:$0xff]
  %v1033 = vld [vmem:[%s1029 + $0x18] sm:$0xff]
  %v1034 = vpack.c.bf16 %v1028, %v1028
  %1035 = vmatprep.subr.bf16.mxu0 %v160
  %1036 = vmatpush1.bf16.msra.mxu0 %v159
  %1037 = vmatprep.subr.bf16.mxu0 %v164
  %1038 = vmatpush1.bf16.msra.mxu0 %v163
  %1039 = vmatprep.subr.bf16.mxu0 %v168
  %1040 = vmatpush1.bf16.msra.mxu0 %v167
  %1041 = vmatprep.subr.bf16.mxu0 %v172
  %1042 = vmatpush1.bf16.msra.mxu0 %v171
  %1043 = vmatprep.subr.bf16.mxu0 %v176
  %1044 = vmatpush1.bf16.msra.mxu0 %v175
  %1045 = vmatprep.subr.bf16.mxu0 %v180
  %1046 = vmatpush1.bf16.msra.mxu0 %v179
  %1047 = vmatprep.subr.bf16.mxu0 %v184
  %1048 = vmatpush1.bf16.msra.mxu0 %v183
  %1049 = vmatprep.subr.bf16.mxu0 %v188
  %1050 = vmatpush1.bf16.msra.mxu0 %v187
  %1051 = vmatprep.subr.bf16.mxu0 0
  %1052 = vmatpush1.bf16.msra.mxu0 0
  %1053 = vmatprep.subr.bf16.mxu0 0
  %1054 = vmatpush1.bf16.msra.mxu0 0
  %1055 = vmatprep.subr.bf16.mxu0 0
  %1056 = vmatpush1.bf16.msra.mxu0 0
  %1057 = vmatprep.subr.bf16.mxu0 0
  %1058 = vmatpush1.bf16.msra.mxu0 0
  %1059 = vmatprep.subr.bf16.mxu0 0
  %1060 = vmatpush1.bf16.msra.mxu0 0
  %1061 = vmatprep.subr.bf16.mxu0 0
  %1062 = vmatpush1.bf16.msra.mxu0 0
  %1063 = vmatprep.subr.bf16.mxu0 0
  %1064 = vmatpush1.bf16.msra.mxu0 0
  %1065 = vmatprep.subr.bf16.mxu0 0
  %1066 = vmatpush1.bf16.msra.mxu0 0
  %1067 = vmatprep.mubr.bf16.mxu0 0
  %1068 = vmatmul.mubr.bf16.gmra.mrb[0].mxu0 %v1034
  %v1069 = vpop.f32.mrb[0].mxu0
  %v1070 = vadd.f32 0.0, %v1069
  %v1071 = vpop.f32.mrb[0].mxu0
  %v1072 = vadd.f32 0.0, %v1071
  %v1073 = vpop.f32.mrb[0].mxu0
  %v1074 = vpop.f32.mrb[0].mxu0
  %1075 = vdwg.mxu0
  %1076 = vmatprep.subr.bf16.mxu0 %v162
  %1077 = vmatpush1.bf16.msra.mxu0 %v161
  %1078 = vmatprep.subr.bf16.mxu0 %v166
  %1079 = vmatpush1.bf16.msra.mxu0 %v165
  %1080 = vmatprep.subr.bf16.mxu0 %v170
  %1081 = vmatpush1.bf16.msra.mxu0 %v169
  %1082 = vmatprep.subr.bf16.mxu0 %v174
  %1083 = vmatpush1.bf16.msra.mxu0 %v173
  %1084 = vmatprep.subr.bf16.mxu0 %v178
  %1085 = vmatpush1.bf16.msra.mxu0 %v177
  %1086 = vmatprep.subr.bf16.mxu0 %v182
  %1087 = vmatpush1.bf16.msra.mxu0 %v181
  %1088 = vmatprep.subr.bf16.mxu0 %v186
  %1089 = vmatpush1.bf16.msra.mxu0 %v185
  %1090 = vmatprep.subr.bf16.mxu0 %v190
  %1091 = vmatpush1.bf16.msra.mxu0 %v189
  %1092 = vmatprep.subr.bf16.mxu0 0
  %1093 = vmatpush1.bf16.msra.mxu0 0
  %1094 = vmatprep.subr.bf16.mxu0 0
  %1095 = vmatpush1.bf16.msra.mxu0 0
  %1096 = vmatprep.subr.bf16.mxu0 0
  %1097 = vmatpush1.bf16.msra.mxu0 0
  %1098 = vmatprep.subr.bf16.mxu0 0
  %1099 = vmatpush1.bf16.msra.mxu0 0
  %1100 = vmatprep.subr.bf16.mxu0 0
  %1101 = vmatpush1.bf16.msra.mxu0 0
  %1102 = vmatprep.subr.bf16.mxu0 0
  %1103 = vmatpush1.bf16.msra.mxu0 0
  %1104 = vmatprep.subr.bf16.mxu0 0
  %1105 = vmatpush1.bf16.msra.mxu0 0
  %1106 = vmatprep.subr.bf16.mxu0 0
  %1107 = vmatpush1.bf16.msra.mxu0 0
  %1108 = vmatprep.mubr.bf16.mxu0 0
  %1109 = vmatmul.mubr.bf16.gmra.mrb[0].mxu0 %v1034
  %v1110 = vpop.f32.mrb[0].mxu0
  %v1111 = vadd.f32 0.0, %v1110
  %v1112 = vpop.f32.mrb[0].mxu0
  %v1113 = vadd.f32 0.0, %v1112
  %v1114 = vpop.f32.mrb[0].mxu0
  %v1115 = vpop.f32.mrb[0].mxu0
  %1116 = vdwg.mxu0
  %v1117 = vadd.f32 %v1030, %v1070
  %v1118 = vadd.f32 %v1031, %v1072
  %v1119 = vadd.f32 %v1032, %v1111
  %v1120 = vadd.f32 %v1033, %v1113
  %v1121 = vxor.u32 %v1117, 2147483648
  %v1122 = vmul.f32 %v1121, 1.442695
  %v1123 = vpow.pop %v1122
  %v1124 = vadd.f32 %v1123, 1.0
  %v1125 = vrcp.pop %v1124
  %v1126 = vmul.f32 1.0, %v1125
  %v1127 = vxor.u32 %v1118, 2147483648
  %v1128 = vmul.f32 %v1127, 1.442695
  %v1129 = vpow.pop %v1128
  %v1130 = vadd.f32 %v1129, 1.0
  %v1131 = vrcp.pop %v1130
  %v1132 = vmul.f32 1.0, %v1131
  %v1133 = vtanh.pop %v1119
  %v1134 = vxor.u32 %v1120, 2147483648
  %v1135 = vmul.f32 %v1134, 1.442695
  %v1136 = vpow.pop %v1135
  %v1137 = vadd.f32 %v1136, 1.0
  %v1138 = vrcp.pop %v1137
  %v1139 = vmul.f32 1.0, %v1138
  %v1140 = vmul.f32 %v1132, %v1026
  %v1141 = vmul.f32 %v1126, %v1133
  %v1142 = vadd.f32 %v1140, %v1141
  %v1143 = vtanh.pop %v1142
  %v1144 = vmul.f32 %v1139, %v1143
  %1145 = vst [vmem:[#allocation2] sm:$0xff] %v1144
  %1146 = vst [vmem:[#allocation3] sm:$0xff] %v1142
  // Predicated region
  $region22: #{rnn_classifier_forward.1} parent=0 // pred_check
    %p1147 = pneg %p18
  $region23: #{rnn_classifier_forward.1} parent=0 // pred_check_branch
    %1149 = sbr.rel (%p1147) target = $region25
  $region24: #{rnn_classifier_forward.1} parent=0 // pred_region
    %v1150 = vpack.c.bf16 %v1144, %v1144
    %v1151 = vld [vmem:[%s2] sm:$0xf]
    %v1152 = vld [vmem:[%s2 + $0x4] sm:$0xf]
    %v1153 = vld [vmem:[%s2 + $0x8] sm:$0xf]
    %v1154 = vld [vmem:[%s2 + $0xc] sm:$0xf]
    %v1155 = vld [vmem:[%s2 + $0x10] sm:$0xf]
    %v1156 = vld [vmem:[%s2 + $0x14] sm:$0xf]
    %v1157 = vld [vmem:[%s2 + $0x18] sm:$0xf]
    %v1158 = vld [vmem:[%s2 + $0x1c] sm:$0xf]
    %v1159 = vld [vmem:[%s2 + $0x20] sm:$0xf]
    %v1160 = vld [vmem:[%s2 + $0x24] sm:$0xf]
    %v1161 = vld [vmem:[%s2 + $0x28] sm:$0xf]
    %v1162 = vld [vmem:[%s2 + $0x2c] sm:$0xf]
    %v1163 = vld [vmem:[%s2 + $0x30] sm:$0xf]
    %v1164 = vld [vmem:[%s2 + $0x34] sm:$0xf]
    %v1165 = vld [vmem:[%s2 + $0x38] sm:$0xf]
    %v1166 = vld [vmem:[%s2 + $0x3c] sm:$0xf]
    %v1167 = vld [vmem:[%s3] sm:$0x1]
    %v1169 = vlaneseq
    %v1170 = vshrl.u32 %v1169, 7
    %v1171 = vsub.s32 0, %v1170
    %v1172 = vrot.slane %v1167, %v1171
    %v1190 = vunpack.c.l.b16 %v1151
    %v1191 = vunpack.c.l.b16 %v1152
    %v1192 = vunpack.c.l.b16 %v1153
    %v1193 = vunpack.c.l.b16 %v1154
    %v1194 = vunpack.c.l.b16 %v1155
    %v1195 = vunpack.c.l.b16 %v1156
    %v1196 = vunpack.c.l.b16 %v1157
    %v1197 = vunpack.c.l.b16 %v1158
    %v1198 = vunpack.c.l.b16 %v1159
    %v1199 = vunpack.c.l.b16 %v1160
    %v1200 = vunpack.c.l.b16 %v1161
    %v1201 = vunpack.c.l.b16 %v1162
    %v1202 = vunpack.c.l.b16 %v1163
    %v1203 = vunpack.c.l.b16 %v1164
    %v1204 = vunpack.c.l.b16 %v1165
    %v1205 = vunpack.c.l.b16 %v1166
    %v1206 = vpack.c.b16 %v1191, %v1190
    %v1207 = vpack.c.b16 %v1193, %v1192
    %v1208 = vpack.c.b16 %v1195, %v1194
    %v1209 = vpack.c.b16 %v1197, %v1196
    %v1210 = vpack.c.b16 %v1199, %v1198
    %v1211 = vpack.c.b16 %v1201, %v1200
    %v1212 = vpack.c.b16 %v1203, %v1202
    %v1213 = vpack.c.b16 %v1205, %v1204
    %1222 = vmatprep.subr.bf16.mxu0 0
    %1223 = vmatpush1.bf16.msra.mxu0 %v1206
    %1224 = vmatprep.subr.bf16.mxu0 0
    %1225 = vmatpush1.bf16.msra.mxu0 %v1207
    %1226 = vmatprep.subr.bf16.mxu0 0
    %1227 = vmatpush1.bf16.msra.mxu0 %v1208
    %1228 = vmatprep.subr.bf16.mxu0 0
    %1229 = vmatpush1.bf16.msra.mxu0 %v1209
    %1230 = vmatprep.subr.bf16.mxu0 0
    %1231 = vmatpush1.bf16.msra.mxu0 %v1210
    %1232 = vmatprep.subr.bf16.mxu0 0
    %1233 = vmatpush1.bf16.msra.mxu0 %v1211
    %1234 = vmatprep.subr.bf16.mxu0 0
    %1235 = vmatpush1.bf16.msra.mxu0 %v1212
    %1236 = vmatprep.subr.bf16.mxu0 0
    %1237 = vmatpush1.bf16.msra.mxu0 %v1213
    %1238 = vmatprep.subr.bf16.mxu0 0
    %1239 = vmatpush1.bf16.msra.mxu0 0
    %1240 = vmatprep.subr.bf16.mxu0 0
    %1241 = vmatpush1.bf16.msra.mxu0 0
    %1242 = vmatprep.subr.bf16.mxu0 0
    %1243 = vmatpush1.bf16.msra.mxu0 0
    %1244 = vmatprep.subr.bf16.mxu0 0
    %1245 = vmatpush1.bf16.msra.mxu0 0
    %1246 = vmatprep.subr.bf16.mxu0 0
    %1247 = vmatpush1.bf16.msra.mxu0 0
    %1248 = vmatprep.subr.bf16.mxu0 0
    %1249 = vmatpush1.bf16.msra.mxu0 0
    %1250 = vmatprep.subr.bf16.mxu0 0
    %1251 = vmatpush1.bf16.msra.mxu0 0
    %1252 = vmatprep.subr.bf16.mxu0 0
    %1253 = vmatpush1.bf16.msra.mxu0 0
    %1254 = vmatprep.mubr.bf16.mxu0 0
    %1255 = vmatmul.mubr.bf16.gmra.mrb[0].mxu0 %v1150
    %v1256 = vpop.f32.mrb[0].mxu0
    %v1257 = vadd.f32 %v1172, %v1256
    %v1258 = vpop.f32.mrb[0].mxu0
    %v1259 = vpop.f32.mrb[0].mxu0
    %v1260 = vpop.f32.mrb[0].mxu0
    %1261 = vdwg.mxu0
    %1262 = vst [vmem:[%s4] sm:$0xff] %v1257
  $region25: #{rnn_classifier_forward.1} parent=0 // pred_fallthru
    _
  // Predicated region
  $region26: #{rnn_classifier_forward.1} parent=0 // pred_check
    _
  $region27: #{rnn_classifier_forward.1} parent=0 // pred_check_branch
    %1264 = sbr.rel (0) target = $region29
  $region28: #{rnn_classifier_forward.1} parent=0 // pred_region
    _
  $region29: #{rnn_classifier_forward.1} parent=0 // pred_fallthru
    _
  // Predicated region
  $region30: #{rnn_classifier_forward.1} parent=0 // pred_check
    _
  $region31: #{rnn_classifier_forward.1} parent=0 // pred_check_branch
    %1266 = sbr.rel (0) target = $region33
  $region32: #{rnn_classifier_forward.1} parent=0 // pred_region
    _
  $region33: #{rnn_classifier_forward.1} parent=0 // pred_fallthru
    _

</llo_original>
